<compile_context>
chip_gen: v5e
topology: v5e:2x2
jax: 0.10.0
libtpu: 0.0.40
codegen_flags: <defaults>
</compile_context>

<pallas_src>
import jax
import jax.numpy as jnp
from jax.experimental import pallas as pl
from jax.experimental.pallas import tpu as pltpu


def _round_up(n, m):
    return ((n + m - 1) // m) * m


# ----------------------------------------------------------------------------
# Fused Pallas kernel: whole TCN stack + head for one batch tile.
# ----------------------------------------------------------------------------

def _make_tcn_kernel(layer_meta, *, K, L, TB, C_pad, MO_pad, P,
                     off_head, bi_head):
    n_layers = len(layer_meta)

    def kernel(x_ref, w_ref, b_ref, o_ref, xp_ref, res_ref):
        # Zero the causal left pad every step (see header: a program_id guard
        # is unsafe under megacore sharding of the parallel axis; this store
        # is TB*P*C_pad f32 — negligible).
        if P:
            xp_ref[:, :P, :] = jnp.zeros((TB, P, C_pad), jnp.float32)

        x0 = x_ref[...]                                  # (TB, L, C_pad) f32
        xp_ref[:, P:P + L, :] = x0
        res_ref[...] = x0.reshape(TB * L, C_pad)         # layer input / residual
        b_all = b_ref[...]                               # (NB, W_pad) f32

        def bias_row(i, width):
            return b_all[i:i + 1, :width]                # (1, width) f32

        def causal_conv(w_off, bi, d):
            # K accumulated bf16 matmuls on the MXU, f32 accumulation.
            # Taps are static slices of the zero-padded activation scratch,
            # so dilations with shift >= L read only the zero pad (exact).
            acc = None
            for k in range(K):
                start = P - (K - 1 - k) * d              # static, >= 0
                tap = xp_ref[:, start:start + L, :]      # (TB, L, C_pad) f32
                tap = tap.reshape(TB * L, C_pad).astype(jnp.bfloat16)
                wk = w_ref[w_off + k * C_pad:w_off + (k + 1) * C_pad, :C_pad]
                part = jnp.dot(tap, wk, preferred_element_type=jnp.float32)
                acc = part if acc is None else acc + part
            return acc + bias_row(bi, C_pad)

        act = None
        for li, lm in enumerate(layer_meta):
            d = lm["dilation"]
            # conv1 -> chomp -> relu (dropout = identity at inference)
            h = jnp.maximum(causal_conv(lm["off1"], lm["bi1"], d), 0.0)
            xp_ref[:, P:P + L, :] = h.reshape(TB, L, C_pad)
            # conv2 -> chomp -> relu
            out = jnp.maximum(causal_conv(lm["off2"], lm["bi2"], d), 0.0)

            xin = res_ref[...]                           # reload layer input
            if lm["offd"] is not None:                   # 1x1 downsample conv
                wd = w_ref[lm["offd"]:lm["offd"] + C_pad, :C_pad]
                res = (jnp.dot(xin.astype(jnp.bfloat16), wd,
                               preferred_element_type=jnp.float32)
                       + bias_row(lm["bid"], C_pad))
            else:
                res = xin
            act = jnp.maximum(out + res, 0.0)            # (TB*L, C_pad) f32

            if li < n_layers - 1:
                xp_ref[:, P:P + L, :] = act.reshape(TB, L, C_pad)
                res_ref[...] = act

        # Fused head: last timestep only, lane-dense (TB, MO_pad) output.
        last = act.reshape(TB, L, C_pad)[:, L - 1, :]    # (TB, C_pad)
        hw = w_ref[off_head:off_head + C_pad, :MO_pad]
        o_ref[...] = (jnp.dot(last.astype(jnp.bfloat16), hw,
                              preferred_element_type=jnp.float32)
                      + bias_row(bi_head, MO_pad))

    return kernel


# ----------------------------------------------------------------------------
# One-time parameter preparation: pack every weight into ONE lane-dense bf16
# slab (+ one f32 bias slab); all transposes / padding are hoisted here.
# ----------------------------------------------------------------------------

def prepare_params(params, *, input_size, channels, kernel_size, output_size,
                   multi_variate):
    K = kernel_size
    C_pad = _round_up(max(input_size, channels), 128)
    M, O = multi_variate, output_size
    MO_pad = _round_up(M * O, 128)
    W_pad = max(C_pad, MO_pad)

    w_parts, b_rows = [], []
    row = 0

    def add_w(arr):                      # (r, c<=W_pad) f32 -> slab rows
        nonlocal row
        r, c = arr.shape
        part = jnp.zeros((r, W_pad), jnp.float32).at[:, :c].set(arr)
        w_parts.append(part)
        off = row
        row += r
        return off

    def add_b(vec):
        b_rows.append(jnp.zeros((W_pad,), jnp.float32).at[:vec.shape[0]].set(vec))
        return len(b_rows) - 1

    def pack_conv(w):                    # (Cout, Cin, K) -> (K*C_pad, C_pad)
        co, ci, _ = w.shape
        wp = jnp.zeros((K, C_pad, C_pad), jnp.float32)
        wp = wp.at[:, :ci, :co].set(jnp.transpose(w, (2, 1, 0)))
        return wp.reshape(K * C_pad, C_pad)

    layer_meta = []
    for lp in params["layers"]:
        off1 = add_w(pack_conv(lp["w1"])); bi1 = add_b(lp["b1"])
        off2 = add_w(pack_conv(lp["w2"])); bi2 = add_b(lp["b2"])
        if lp["wd"] is not None:
            wd = lp["wd"][:, :, 0]       # (Cout, Cin)
            co, ci = wd.shape
            wdp = jnp.zeros((C_pad, C_pad), jnp.float32).at[:ci, :co].set(wd.T)
            offd = add_w(wdp); bid = add_b(lp["bd"])
        else:
            offd, bid = None, None
        layer_meta.append(dict(dilation=int(lp["dilation"]), off1=off1, bi1=bi1,
                               off2=off2, bi2=bi2, offd=offd, bid=bid))

    hw = jnp.zeros((C_pad, MO_pad), jnp.float32)
    hb = jnp.zeros((MO_pad,), jnp.float32)
    for m, (Wm, bm) in enumerate(params["head"]):
        hw = hw.at[:Wm.shape[1], m * O:(m + 1) * O].set(Wm.T)
        hb = hb.at[m * O:(m + 1) * O].set(bm)
    off_head = add_w(hw)
    bi_head = add_b(hb)

    w_slab = jnp.concatenate(w_parts, axis=0).astype(jnp.bfloat16)
    NB = _round_up(len(b_rows), 8)
    b_slab = (jnp.zeros((NB, W_pad), jnp.float32)
              .at[:len(b_rows)].set(jnp.stack(b_rows, axis=0)))

    return dict(w_slab=w_slab, b_slab=b_slab, layer_meta=tuple(layer_meta),
                off_head=off_head, bi_head=bi_head, K=K, C_pad=C_pad,
                MO_pad=MO_pad, M=M, O=O)


# ----------------------------------------------------------------------------
# TCNGenerator forward (single fused pallas_call)
# ----------------------------------------------------------------------------

def tcn_generator_forward(x, cond_input, prep, *, input_length, batch_tile=None):
    """x: (B, input_length, Fx); cond_input: (B, Fc) or None.
    Returns (B, output_size, multi_variate), matching the PyTorch forward."""
    B = x.shape[0]
    if cond_input is not None:
        cond_r = jnp.broadcast_to(
            cond_input[:, None, :], (B, input_length, cond_input.shape[-1]))
        x = jnp.concatenate([x, cond_r], axis=2)
    x = x.astype(jnp.float32)
    L, Cin = x.shape[1], x.shape[2]

    K, C_pad, MO_pad = prep["K"], prep["C_pad"], prep["MO_pad"]
    M, O = prep["M"], prep["O"]
    layer_meta = prep["layer_meta"]
    w_slab, b_slab = prep["w_slab"], prep["b_slab"]

    # Batch tile: fill the MXU M dimension (TB*L >= 128) without over-padding
    # tiny batches.  (With real batches on v7x, pick TB so num_tiles >= 2 so
    # the "parallel" axis actually shards across both TensorCores.)
    if batch_tile is None:
        batch_tile = max(1, min(8, 128 // max(1, L)))
    TB = batch_tile
    B_pad = _round_up(B, TB)
    num_tiles = B_pad // TB

    # Lane-pad channels and batch with zeros (exact; sliced off afterwards).
    xp = jnp.zeros((B_pad, L, C_pad), jnp.float32).at[:B, :, :Cin].set(x)

    d_max = max(lm["dilation"] for lm in layer_meta)
    P = _round_up((K - 1) * d_max, 8)    # sublane-aligned causal left pad

    kernel = _make_tcn_kernel(layer_meta, K=K, L=L, TB=TB, C_pad=C_pad,
                              MO_pad=MO_pad, P=P,
                              off_head=prep["off_head"],
                              bi_head=prep["bi_head"])

    # Rough VMEM footprint (double-buffered worst case).  Only raise the
    # scoped limit when needed; never lower it below the per-chip default.
    est = (2 * TB * L * C_pad * 4            # x tile (x2 pipeline buffers)
           + 2 * int(w_slab.size) * 2        # bf16 weight slab
           + 2 * int(b_slab.size) * 4        # f32 bias slab
           + 2 * TB * MO_pad * 4             # output tile
           + TB * (P + L) * C_pad * 4        # padded-activation scratch
           + TB * L * C_pad * 4)             # residual scratch
    vmem_limit = None
    if est * 3 // 2 > (16 << 20):
        vmem_limit = int(min(96 << 20, est * 3 // 2 + (4 << 20)))

    def build(weight_mode):
        def const_spec(shape):
            if weight_mode is None:
                return pl.BlockSpec(shape, lambda g: (0, 0))
            return pl.BlockSpec(shape, lambda g: (0, 0),
                                pipeline_mode=weight_mode)

        return pl.pallas_call(
            kernel,
            out_shape=jax.ShapeDtypeStruct((B_pad, MO_pad), jnp.float32),
            grid=(num_tiles,),
            in_specs=[pl.BlockSpec((TB, L, C_pad), lambda g: (g, 0, 0)),
                      const_spec(tuple(w_slab.shape)),
                      const_spec(tuple(b_slab.shape))],
            out_specs=pl.BlockSpec((TB, MO_pad), lambda g: (g, 0)),
            scratch_shapes=[
                pltpu.VMEM((TB, P + L, C_pad), jnp.float32),   # padded acts
                pltpu.VMEM((TB * L, C_pad), jnp.float32),      # residual
            ],
            compiler_params=pltpu.CompilerParams(
                dimension_semantics=("parallel",),
                vmem_limit_bytes=vmem_limit),
        )

    try:
        # Weights/biases never change across grid steps -> single-buffer them.
        y = build(pl.Buffered(1))(xp, w_slab, b_slab)
    except Exception:
        # Fallback if this jax build rejects pipeline_mode on pallas_call
        # inputs: default double buffering (only costs VMEM, not correctness).
        y = build(None)(xp, w_slab, b_slab)

    y = y[:B, :M * O]                        # drop batch / lane padding
    # stack([linear_m(last)], axis=2) -> (B, O, M); output_function=None.
    return jnp.transpose(y.reshape(B, M, O), (0, 2, 1))


# ----------------------------------------------------------------------------
# Parameter setup (glue, plain JAX): deterministic synthetic weights.
# Weight-norm folded:  w = g * v / ||v||  (norm over all dims but dim 0).
# ----------------------------------------------------------------------------

def init_params(key, *, input_size, channels, num_layers, kernel_size,
                output_size, multi_variate):
    layers = []
    cin = input_size
    keys = jax.random.split(key, num_layers + 1)
    for i in range(num_layers):
        cout = channels
        lk = jax.random.split(keys[i], 8)

        def wn(v, g):
            nrm = jnp.sqrt(jnp.sum(v * v, axis=(1, 2), keepdims=True))
            return g[:, None, None] * v / nrm

        v1 = 0.01 * jax.random.normal(lk[0], (cout, cin, kernel_size), jnp.float32)
        g1 = jax.random.uniform(lk[1], (cout,), jnp.float32, 0.5, 1.5)
        w1 = wn(v1, g1)
        b1 = 0.1 * jax.random.normal(lk[2], (cout,), jnp.float32)

        v2 = 0.01 * jax.random.normal(lk[3], (cout, cout, kernel_size), jnp.float32)
        g2 = jax.random.uniform(lk[4], (cout,), jnp.float32, 0.5, 1.5)
        w2 = wn(v2, g2)
        b2 = 0.1 * jax.random.normal(lk[5], (cout,), jnp.float32)

        if cin != cout:  # downsample 1x1 conv (no weight norm in reference)
            wd = 0.01 * jax.random.normal(lk[6], (cout, cin, 1), jnp.float32)
            bd = 0.1 * jax.random.normal(lk[7], (cout,), jnp.float32)
        else:
            wd, bd = None, None

        layers.append(dict(w1=w1, b1=b1, w2=w2, b2=b2, wd=wd, bd=bd,
                           dilation=2 ** i))
        cin = cout

    hk = jax.random.split(keys[-1], 2 * multi_variate)
    head = []
    for m in range(multi_variate):
        W = 0.01 * jax.random.normal(hk[2 * m], (output_size, channels), jnp.float32)
        b = 0.1 * jax.random.normal(hk[2 * m + 1], (output_size,), jnp.float32)
        head.append((W, b))
    return dict(layers=layers, head=head)


# ----------------------------------------------------------------------------
# Pure-JAX reference (correctness check), mirrors the PyTorch graph in NCL.
# ----------------------------------------------------------------------------

def reference_forward(x, cond_input, params, *, input_length):
    B = x.shape[0]
    if cond_input is not None:
        cond_r = jnp.broadcast_to(
            cond_input[:, None, :], (B, input_length, cond_input.shape[-1]))
        x = jnp.concatenate([x, cond_r], axis=2)
    h = jnp.transpose(x, (0, 2, 1))  # NCL
    L = h.shape[-1]

    def conv1d(a, w, b, dil, pad):
        y = jax.lax.conv_general_dilated(
            a, w, window_strides=(1,), padding=[(pad, pad)],
            rhs_dilation=(dil,), dimension_numbers=("NCH", "OIH", "NCH"))
        return y + b[None, :, None]

    for lp in params["layers"]:
        d = lp["dilation"]
        K = lp["w1"].shape[-1]
        pad = (K - 1) * d
        out = jax.nn.relu(conv1d(h, lp["w1"], lp["b1"], d, pad)[:, :, :L])
        out = jax.nn.relu(conv1d(out, lp["w2"], lp["b2"], d, pad)[:, :, :L])
        res = h if lp["wd"] is None else conv1d(h, lp["wd"], lp["bd"], 1, 0)
        h = jax.nn.relu(out + res)

    last = h[:, :, -1]
    outs = [last @ W.T + b for (W, b) in params["head"]]
    return jnp.stack(outs, axis=2)


# ----------------------------------------------------------------------------

if __name__ == "__main__":
    # Small config consistent with the module (kernel_size=2, causal TCN).
    B = 2
    input_length = 16
    x_features = 4
    cond_features = 2
    input_size = x_features + cond_features   # after cond concat
    channels = 8
    num_layers = 3
    kernel_size = 2
    output_size = 1
    multi_variate = 2

    key = jax.random.PRNGKey(0)
    kx, kc, kp = jax.random.split(key, 3)
    x = jax.random.normal(kx, (B, input_length, x_features), jnp.float32)
    cond = jax.random.normal(kc, (B, cond_features), jnp.float32)

    params = init_params(
        kp, input_size=input_size, channels=channels, num_layers=num_layers,
        kernel_size=kernel_size, output_size=output_size,
        multi_variate=multi_variate)
    prep = prepare_params(
        params, input_size=input_size, channels=channels,
        kernel_size=kernel_size, output_size=output_size,
        multi_variate=multi_variate)

    out = tcn_generator_forward(x, cond, prep, input_length=input_length)
    out = jax.block_until_ready(out)
    assert out.shape == (B, output_size, multi_variate), out.shape

    ref = reference_forward(x, cond, params, input_length=input_length)
    # Tolerance covers bf16 matmul inputs (f32 accumulation) in the kernel.
    assert jnp.allclose(out, ref, atol=1e-2, rtol=1e-2), (
        float(jnp.max(jnp.abs(out - ref))))

    print("KERNEL_OK")
</pallas_src>

<mosaic_0001>
module attributes {stable_mosaic.version = 11 : i64} {
  func.func @kernel(%arg0: i32, %arg1: memref<8x16x128xf32, #tpu.memory_space<vmem>>, %arg2: memref<1792x128xbf16, #tpu.memory_space<vmem>>, %arg3: memref<8x128xf32, #tpu.memory_space<vmem>>, %arg4: memref<8x128xf32, #tpu.memory_space<vmem>>, %arg5: memref<8x24x128xf32, #tpu.memory_space<vmem>>, %arg6: memref<128x128xf32, #tpu.memory_space<vmem>>) attributes {dimension_semantics = [#tpu.dimension_semantics<parallel>], iteration_bounds = array<i64: 1>, scalar_prefetch = 0 : i64, scratch_operands = 2 : i64, tpu.core_type = #tpu.core_type<tc>, window_params = [{transform_indices = @transform_0, window_bounds = array<i64: 8, 16, 128>}, {pipeline_mode = #tpu.pipeline_mode<synchronous>, transform_indices = @transform_1, window_bounds = array<i64: 1792, 128>}, {pipeline_mode = #tpu.pipeline_mode<synchronous>, transform_indices = @transform_2, window_bounds = array<i64: 8, 128>}, {transform_indices = @transform_3, window_bounds = array<i64: 8, 128>}]} {
    %cst = arith.constant 0.000000e+00 : f32
    %0 = vector.broadcast %cst : f32 to vector<8x8x128xf32>
    %c0 = arith.constant 0 : index
    %c0_0 = arith.constant 0 : index
    %c0_1 = arith.constant 0 : index
    %1 = vector.load %arg5[%c0, %c0_0, %c0_1] : memref<8x24x128xf32, #tpu.memory_space<vmem>>, vector<8x8x128xf32>
    tpu.vector_store %arg5[%c0, %c0_0, %c0_1], %0 {strides = array<i32>} : memref<8x24x128xf32, #tpu.memory_space<vmem>>, vector<8x8x128xf32>,
    %c0_2 = arith.constant 0 : index
    %c0_3 = arith.constant 0 : index
    %c0_4 = arith.constant 0 : index
    %2 = vector.load %arg1[%c0_2, %c0_3, %c0_4] : memref<8x16x128xf32, #tpu.memory_space<vmem>>, vector<8x16x128xf32>
    %c0_5 = arith.constant 0 : index
    %c8 = arith.constant 8 : index
    %c0_6 = arith.constant 0 : index
    %3 = vector.load %arg5[%c0_5, %c8, %c0_6] : memref<8x24x128xf32, #tpu.memory_space<vmem>>, vector<8x16x128xf32>
    tpu.vector_store %arg5[%c0_5, %c8, %c0_6], %2 {strides = array<i32>} : memref<8x24x128xf32, #tpu.memory_space<vmem>>, vector<8x16x128xf32>,
    %4 = vector.shape_cast %2 : vector<8x16x128xf32> to vector<128x128xf32>
    %c0_7 = arith.constant 0 : index
    %c0_8 = arith.constant 0 : index
    %5 = vector.load %arg6[%c0_7, %c0_8] : memref<128x128xf32, #tpu.memory_space<vmem>>, vector<128x128xf32>
    tpu.vector_store %arg6[%c0_7, %c0_8], %4 {strides = array<i32>} : memref<128x128xf32, #tpu.memory_space<vmem>>, vector<128x128xf32>,
    %c0_9 = arith.constant 0 : index
    %c0_10 = arith.constant 0 : index
    %6 = vector.load %arg3[%c0_9, %c0_10] : memref<8x128xf32, #tpu.memory_space<vmem>>, vector<8x128xf32>
    %c0_11 = arith.constant 0 : index
    %c7 = arith.constant 7 : index
    %c0_12 = arith.constant 0 : index
    %7 = vector.load %arg5[%c0_11, %c7, %c0_12] : memref<8x24x128xf32, #tpu.memory_space<vmem>>, vector<8x16x128xf32>
    %8 = vector.shape_cast %7 : vector<8x16x128xf32> to vector<128x128xf32>
    %9 = arith.truncf %8 : vector<128x128xf32> to vector<128x128xbf16>
    %c0_13 = arith.constant 0 : index
    %c0_14 = arith.constant 0 : index
    %10 = vector.load %arg2[%c0_13, %c0_14] : memref<1792x128xbf16, #tpu.memory_space<vmem>>, vector<128x128xbf16>
    %cst_15 = arith.constant dense<0.000000e+00> : vector<128x128xf32>
    %11 = tpu.matmul %9, %10, %cst_15 {dimension_numbers = #tpu.dot_dimension_numbers<[1], [0], [0], [1], [0, 0, 1, 1], [], []>} : vector<128x128xbf16>, vector<128x128xbf16>, vector<128x128xf32> -> vector<128x128xf32>
    %c0_16 = arith.constant 0 : index
    %c8_17 = arith.constant 8 : index
    %c0_18 = arith.constant 0 : index
    %12 = vector.load %arg5[%c0_16, %c8_17, %c0_18] : memref<8x24x128xf32, #tpu.memory_space<vmem>>, vector<8x16x128xf32>
    %13 = vector.shape_cast %12 : vector<8x16x128xf32> to vector<128x128xf32>
    %14 = arith.truncf %13 : vector<128x128xf32> to vector<128x128xbf16>
    %c128 = arith.constant 128 : index
    %c0_19 = arith.constant 0 : index
    %15 = vector.load %arg2[%c128, %c0_19] : memref<1792x128xbf16, #tpu.memory_space<vmem>>, vector<128x128xbf16>
    %cst_20 = arith.constant dense<0.000000e+00> : vector<128x128xf32>
    %16 = tpu.matmul %14, %15, %cst_20 {dimension_numbers = #tpu.dot_dimension_numbers<[1], [0], [0], [1], [0, 0, 1, 1], [], []>} : vector<128x128xbf16>, vector<128x128xbf16>, vector<128x128xf32> -> vector<128x128xf32>
    %17 = arith.addf %11, %16 : vector<128x128xf32>
    %18 = vector.extract_strided_slice %6 {offsets = [0, 0], sizes = [1, 128], strides = [1, 1]} : vector<8x128xf32> to vector<1x128xf32>
    %19 = vector.broadcast %18 : vector<1x128xf32> to vector<128x128xf32>
    %20 = arith.addf %17, %19 : vector<128x128xf32>
    %cst_21 = arith.constant 0.000000e+00 : f32
    %21 = vector.broadcast %cst_21 : f32 to vector<128x128xf32>
    %22 = arith.maximumf %20, %21 : vector<128x128xf32>
    %23 = vector.shape_cast %22 : vector<128x128xf32> to vector<8x16x128xf32>
    %c0_22 = arith.constant 0 : index
    %c8_23 = arith.constant 8 : index
    %c0_24 = arith.constant 0 : index
    %24 = vector.load %arg5[%c0_22, %c8_23, %c0_24] : memref<8x24x128xf32, #tpu.memory_space<vmem>>, vector<8x16x128xf32>
    tpu.vector_store %arg5[%c0_22, %c8_23, %c0_24], %23 {strides = array<i32>} : memref<8x24x128xf32, #tpu.memory_space<vmem>>, vector<8x16x128xf32>,
    %c0_25 = arith.constant 0 : index
    %c7_26 = arith.constant 7 : index
    %c0_27 = arith.constant 0 : index
    %25 = vector.load %arg5[%c0_25, %c7_26, %c0_27] : memref<8x24x128xf32, #tpu.memory_space<vmem>>, vector<8x16x128xf32>
    %26 = vector.shape_cast %25 : vector<8x16x128xf32> to vector<128x128xf32>
    %27 = arith.truncf %26 : vector<128x128xf32> to vector<128x128xbf16>
    %c256 = arith.constant 256 : index
    %c0_28 = arith.constant 0 : index
    %28 = vector.load %arg2[%c256, %c0_28] : memref<1792x128xbf16, #tpu.memory_space<vmem>>, vector<128x128xbf16>
    %cst_29 = arith.constant dense<0.000000e+00> : vector<128x128xf32>
    %29 = tpu.matmul %27, %28, %cst_29 {dimension_numbers = #tpu.dot_dimension_numbers<[1], [0], [0], [1], [0, 0, 1, 1], [], []>} : vector<128x128xbf16>, vector<128x128xbf16>, vector<128x128xf32> -> vector<128x128xf32>
    %c0_30 = arith.constant 0 : index
    %c8_31 = arith.constant 8 : index
    %c0_32 = arith.constant 0 : index
    %30 = vector.load %arg5[%c0_30, %c8_31, %c0_32] : memref<8x24x128xf32, #tpu.memory_space<vmem>>, vector<8x16x128xf32>
    %31 = vector.shape_cast %30 : vector<8x16x128xf32> to vector<128x128xf32>
    %32 = arith.truncf %31 : vector<128x128xf32> to vector<128x128xbf16>
    %c384 = arith.constant 384 : index
    %c0_33 = arith.constant 0 : index
    %33 = vector.load %arg2[%c384, %c0_33] : memref<1792x128xbf16, #tpu.memory_space<vmem>>, vector<128x128xbf16>
    %cst_34 = arith.constant dense<0.000000e+00> : vector<128x128xf32>
    %34 = tpu.matmul %32, %33, %cst_34 {dimension_numbers = #tpu.dot_dimension_numbers<[1], [0], [0], [1], [0, 0, 1, 1], [], []>} : vector<128x128xbf16>, vector<128x128xbf16>, vector<128x128xf32> -> vector<128x128xf32>
    %35 = arith.addf %29, %34 : vector<128x128xf32>
    %36 = vector.extract_strided_slice %6 {offsets = [1, 0], sizes = [1, 128], strides = [1, 1]} : vector<8x128xf32> to vector<1x128xf32>
    %37 = vector.broadcast %36 : vector<1x128xf32> to vector<128x128xf32>
    %38 = arith.addf %35, %37 : vector<128x128xf32>
    %cst_35 = arith.constant 0.000000e+00 : f32
    %39 = vector.broadcast %cst_35 : f32 to vector<128x128xf32>
    %40 = arith.maximumf %38, %39 : vector<128x128xf32>
    %c0_36 = arith.constant 0 : index
    %c0_37 = arith.constant 0 : index
    %41 = vector.load %arg6[%c0_36, %c0_37] : memref<128x128xf32, #tpu.memory_space<vmem>>, vector<128x128xf32>
    %c512 = arith.constant 512 : index
    %c0_38 = arith.constant 0 : index
    %42 = vector.load %arg2[%c512, %c0_38] : memref<1792x128xbf16, #tpu.memory_space<vmem>>, vector<128x128xbf16>
    %43 = arith.truncf %41 : vector<128x128xf32> to vector<128x128xbf16>
    %cst_39 = arith.constant dense<0.000000e+00> : vector<128x128xf32>
    %44 = tpu.matmul %43, %42, %cst_39 {dimension_numbers = #tpu.dot_dimension_numbers<[1], [0], [0], [1], [0, 0, 1, 1], [], []>} : vector<128x128xbf16>, vector<128x128xbf16>, vector<128x128xf32> -> vector<128x128xf32>
    %45 = vector.extract_strided_slice %6 {offsets = [2, 0], sizes = [1, 128], strides = [1, 1]} : vector<8x128xf32> to vector<1x128xf32>
    %46 = vector.broadcast %45 : vector<1x128xf32> to vector<128x128xf32>
    %47 = arith.addf %44, %46 : vector<128x128xf32>
    %48 = arith.addf %40, %47 : vector<128x128xf32>
    %cst_40 = arith.constant 0.000000e+00 : f32
    %49 = vector.broadcast %cst_40 : f32 to vector<128x128xf32>
    %50 = arith.maximumf %48, %49 : vector<128x128xf32>
    %51 = vector.shape_cast %50 : vector<128x128xf32> to vector<8x16x128xf32>
    %c0_41 = arith.constant 0 : index
    %c8_42 = arith.constant 8 : index
    %c0_43 = arith.constant 0 : index
    %52 = vector.load %arg5[%c0_41, %c8_42, %c0_43] : memref<8x24x128xf32, #tpu.memory_space<vmem>>, vector<8x16x128xf32>
    tpu.vector_store %arg5[%c0_41, %c8_42, %c0_43], %51 {strides = array<i32>} : memref<8x24x128xf32, #tpu.memory_space<vmem>>, vector<8x16x128xf32>,
    %c0_44 = arith.constant 0 : index
    %c0_45 = arith.constant 0 : index
    %53 = vector.load %arg6[%c0_44, %c0_45] : memref<128x128xf32, #tpu.memory_space<vmem>>, vector<128x128xf32>
    tpu.vector_store %arg6[%c0_44, %c0_45], %50 {strides = array<i32>} : memref<128x128xf32, #tpu.memory_space<vmem>>, vector<128x128xf32>,
    %c0_46 = arith.constant 0 : index
    %c6 = arith.constant 6 : index
    %c0_47 = arith.constant 0 : index
    %54 = vector.load %arg5[%c0_46, %c6, %c0_47] : memref<8x24x128xf32, #tpu.memory_space<vmem>>, vector<8x16x128xf32>
    %55 = vector.shape_cast %54 : vector<8x16x128xf32> to vector<128x128xf32>
    %56 = arith.truncf %55 : vector<128x128xf32> to vector<128x128xbf16>
    %c640 = arith.constant 640 : index
    %c0_48 = arith.constant 0 : index
    %57 = vector.load %arg2[%c640, %c0_48] : memref<1792x128xbf16, #tpu.memory_space<vmem>>, vector<128x128xbf16>
    %cst_49 = arith.constant dense<0.000000e+00> : vector<128x128xf32>
    %58 = tpu.matmul %56, %57, %cst_49 {dimension_numbers = #tpu.dot_dimension_numbers<[1], [0], [0], [1], [0, 0, 1, 1], [], []>} : vector<128x128xbf16>, vector<128x128xbf16>, vector<128x128xf32> -> vector<128x128xf32>
    %c0_50 = arith.constant 0 : index
    %c8_51 = arith.constant 8 : index
    %c0_52 = arith.constant 0 : index
    %59 = vector.load %arg5[%c0_50, %c8_51, %c0_52] : memref<8x24x128xf32, #tpu.memory_space<vmem>>, vector<8x16x128xf32>
    %60 = vector.shape_cast %59 : vector<8x16x128xf32> to vector<128x128xf32>
    %61 = arith.truncf %60 : vector<128x128xf32> to vector<128x128xbf16>
    %c768 = arith.constant 768 : index
    %c0_53 = arith.constant 0 : index
    %62 = vector.load %arg2[%c768, %c0_53] : memref<1792x128xbf16, #tpu.memory_space<vmem>>, vector<128x128xbf16>
    %cst_54 = arith.constant dense<0.000000e+00> : vector<128x128xf32>
    %63 = tpu.matmul %61, %62, %cst_54 {dimension_numbers = #tpu.dot_dimension_numbers<[1], [0], [0], [1], [0, 0, 1, 1], [], []>} : vector<128x128xbf16>, vector<128x128xbf16>, vector<128x128xf32> -> vector<128x128xf32>
    %64 = arith.addf %58, %63 : vector<128x128xf32>
    %65 = vector.extract_strided_slice %6 {offsets = [3, 0], sizes = [1, 128], strides = [1, 1]} : vector<8x128xf32> to vector<1x128xf32>
    %66 = vector.broadcast %65 : vector<1x128xf32> to vector<128x128xf32>
    %67 = arith.addf %64, %66 : vector<128x128xf32>
    %cst_55 = arith.constant 0.000000e+00 : f32
    %68 = vector.broadcast %cst_55 : f32 to vector<128x128xf32>
    %69 = arith.maximumf %67, %68 : vector<128x128xf32>
    %70 = vector.shape_cast %69 : vector<128x128xf32> to vector<8x16x128xf32>
    %c0_56 = arith.constant 0 : index
    %c8_57 = arith.constant 8 : index
    %c0_58 = arith.constant 0 : index
    %71 = vector.load %arg5[%c0_56, %c8_57, %c0_58] : memref<8x24x128xf32, #tpu.memory_space<vmem>>, vector<8x16x128xf32>
    tpu.vector_store %arg5[%c0_56, %c8_57, %c0_58], %70 {strides = array<i32>} : memref<8x24x128xf32, #tpu.memory_space<vmem>>, vector<8x16x128xf32>,
    %c0_59 = arith.constant 0 : index
    %c6_60 = arith.constant 6 : index
    %c0_61 = arith.constant 0 : index
    %72 = vector.load %arg5[%c0_59, %c6_60, %c0_61] : memref<8x24x128xf32, #tpu.memory_space<vmem>>, vector<8x16x128xf32>
    %73 = vector.shape_cast %72 : vector<8x16x128xf32> to vector<128x128xf32>
    %74 = arith.truncf %73 : vector<128x128xf32> to vector<128x128xbf16>
    %c896 = arith.constant 896 : index
    %c0_62 = arith.constant 0 : index
    %75 = vector.load %arg2[%c896, %c0_62] : memref<1792x128xbf16, #tpu.memory_space<vmem>>, vector<128x128xbf16>
    %cst_63 = arith.constant dense<0.000000e+00> : vector<128x128xf32>
    %76 = tpu.matmul %74, %75, %cst_63 {dimension_numbers = #tpu.dot_dimension_numbers<[1], [0], [0], [1], [0, 0, 1, 1], [], []>} : vector<128x128xbf16>, vector<128x128xbf16>, vector<128x128xf32> -> vector<128x128xf32>
    %c0_64 = arith.constant 0 : index
    %c8_65 = arith.constant 8 : index
    %c0_66 = arith.constant 0 : index
    %77 = vector.load %arg5[%c0_64, %c8_65, %c0_66] : memref<8x24x128xf32, #tpu.memory_space<vmem>>, vector<8x16x128xf32>
    %78 = vector.shape_cast %77 : vector<8x16x128xf32> to vector<128x128xf32>
    %79 = arith.truncf %78 : vector<128x128xf32> to vector<128x128xbf16>
    %c1024 = arith.constant 1024 : index
    %c0_67 = arith.constant 0 : index
    %80 = vector.load %arg2[%c1024, %c0_67] : memref<1792x128xbf16, #tpu.memory_space<vmem>>, vector<128x128xbf16>
    %cst_68 = arith.constant dense<0.000000e+00> : vector<128x128xf32>
    %81 = tpu.matmul %79, %80, %cst_68 {dimension_numbers = #tpu.dot_dimension_numbers<[1], [0], [0], [1], [0, 0, 1, 1], [], []>} : vector<128x128xbf16>, vector<128x128xbf16>, vector<128x128xf32> -> vector<128x128xf32>
    %82 = arith.addf %76, %81 : vector<128x128xf32>
    %83 = vector.extract_strided_slice %6 {offsets = [4, 0], sizes = [1, 128], strides = [1, 1]} : vector<8x128xf32> to vector<1x128xf32>
    %84 = vector.broadcast %83 : vector<1x128xf32> to vector<128x128xf32>
    %85 = arith.addf %82, %84 : vector<128x128xf32>
    %cst_69 = arith.constant 0.000000e+00 : f32
    %86 = vector.broadcast %cst_69 : f32 to vector<128x128xf32>
    %87 = arith.maximumf %85, %86 : vector<128x128xf32>
    %c0_70 = arith.constant 0 : index
    %c0_71 = arith.constant 0 : index
    %88 = vector.load %arg6[%c0_70, %c0_71] : memref<128x128xf32, #tpu.memory_space<vmem>>, vector<128x128xf32>
    %89 = arith.addf %87, %88 : vector<128x128xf32>
    %cst_72 = arith.constant 0.000000e+00 : f32
    %90 = vector.broadcast %cst_72 : f32 to vector<128x128xf32>
    %91 = arith.maximumf %89, %90 : vector<128x128xf32>
    %92 = vector.shape_cast %91 : vector<128x128xf32> to vector<8x16x128xf32>
    %c0_73 = arith.constant 0 : index
    %c8_74 = arith.constant 8 : index
    %c0_75 = arith.constant 0 : index
    %93 = vector.load %arg5[%c0_73, %c8_74, %c0_75] : memref<8x24x128xf32, #tpu.memory_space<vmem>>, vector<8x16x128xf32>
    tpu.vector_store %arg5[%c0_73, %c8_74, %c0_75], %92 {strides = array<i32>} : memref<8x24x128xf32, #tpu.memory_space<vmem>>, vector<8x16x128xf32>,
    %c0_76 = arith.constant 0 : index
    %c0_77 = arith.constant 0 : index
    %94 = vector.load %arg6[%c0_76, %c0_77] : memref<128x128xf32, #tpu.memory_space<vmem>>, vector<128x128xf32>
    tpu.vector_store %arg6[%c0_76, %c0_77], %91 {strides = array<i32>} : memref<128x128xf32, #tpu.memory_space<vmem>>, vector<128x128xf32>,
    %c0_78 = arith.constant 0 : index
    %c4 = arith.constant 4 : index
    %c0_79 = arith.constant 0 : index
    %95 = vector.load %arg5[%c0_78, %c4, %c0_79] : memref<8x24x128xf32, #tpu.memory_space<vmem>>, vector<8x16x128xf32>
    %96 = vector.shape_cast %95 : vector<8x16x128xf32> to vector<128x128xf32>
    %97 = arith.truncf %96 : vector<128x128xf32> to vector<128x128xbf16>
    %c1152 = arith.constant 1152 : index
    %c0_80 = arith.constant 0 : index
    %98 = vector.load %arg2[%c1152, %c0_80] : memref<1792x128xbf16, #tpu.memory_space<vmem>>, vector<128x128xbf16>
    %cst_81 = arith.constant dense<0.000000e+00> : vector<128x128xf32>
    %99 = tpu.matmul %97, %98, %cst_81 {dimension_numbers = #tpu.dot_dimension_numbers<[1], [0], [0], [1], [0, 0, 1, 1], [], []>} : vector<128x128xbf16>, vector<128x128xbf16>, vector<128x128xf32> -> vector<128x128xf32>
    %c0_82 = arith.constant 0 : index
    %c8_83 = arith.constant 8 : index
    %c0_84 = arith.constant 0 : index
    %100 = vector.load %arg5[%c0_82, %c8_83, %c0_84] : memref<8x24x128xf32, #tpu.memory_space<vmem>>, vector<8x16x128xf32>
    %101 = vector.shape_cast %100 : vector<8x16x128xf32> to vector<128x128xf32>
    %102 = arith.truncf %101 : vector<128x128xf32> to vector<128x128xbf16>
    %c1280 = arith.constant 1280 : index
    %c0_85 = arith.constant 0 : index
    %103 = vector.load %arg2[%c1280, %c0_85] : memref<1792x128xbf16, #tpu.memory_space<vmem>>, vector<128x128xbf16>
    %cst_86 = arith.constant dense<0.000000e+00> : vector<128x128xf32>
    %104 = tpu.matmul %102, %103, %cst_86 {dimension_numbers = #tpu.dot_dimension_numbers<[1], [0], [0], [1], [0, 0, 1, 1], [], []>} : vector<128x128xbf16>, vector<128x128xbf16>, vector<128x128xf32> -> vector<128x128xf32>
    %105 = arith.addf %99, %104 : vector<128x128xf32>
    %106 = vector.extract_strided_slice %6 {offsets = [5, 0], sizes = [1, 128], strides = [1, 1]} : vector<8x128xf32> to vector<1x128xf32>
    %107 = vector.broadcast %106 : vector<1x128xf32> to vector<128x128xf32>
    %108 = arith.addf %105, %107 : vector<128x128xf32>
    %cst_87 = arith.constant 0.000000e+00 : f32
    %109 = vector.broadcast %cst_87 : f32 to vector<128x128xf32>
    %110 = arith.maximumf %108, %109 : vector<128x128xf32>
    %111 = vector.shape_cast %110 : vector<128x128xf32> to vector<8x16x128xf32>
    %c0_88 = arith.constant 0 : index
    %c8_89 = arith.constant 8 : index
    %c0_90 = arith.constant 0 : index
    %112 = vector.load %arg5[%c0_88, %c8_89, %c0_90] : memref<8x24x128xf32, #tpu.memory_space<vmem>>, vector<8x16x128xf32>
    tpu.vector_store %arg5[%c0_88, %c8_89, %c0_90], %111 {strides = array<i32>} : memref<8x24x128xf32, #tpu.memory_space<vmem>>, vector<8x16x128xf32>,
    %c0_91 = arith.constant 0 : index
    %c4_92 = arith.constant 4 : index
    %c0_93 = arith.constant 0 : index
    %113 = vector.load %arg5[%c0_91, %c4_92, %c0_93] : memref<8x24x128xf32, #tpu.memory_space<vmem>>, vector<8x16x128xf32>
    %114 = vector.shape_cast %113 : vector<8x16x128xf32> to vector<128x128xf32>
    %115 = arith.truncf %114 : vector<128x128xf32> to vector<128x128xbf16>
    %c1408 = arith.constant 1408 : index
    %c0_94 = arith.constant 0 : index
    %116 = vector.load %arg2[%c1408, %c0_94] : memref<1792x128xbf16, #tpu.memory_space<vmem>>, vector<128x128xbf16>
    %cst_95 = arith.constant dense<0.000000e+00> : vector<128x128xf32>
    %117 = tpu.matmul %115, %116, %cst_95 {dimension_numbers = #tpu.dot_dimension_numbers<[1], [0], [0], [1], [0, 0, 1, 1], [], []>} : vector<128x128xbf16>, vector<128x128xbf16>, vector<128x128xf32> -> vector<128x128xf32>
    %c0_96 = arith.constant 0 : index
    %c8_97 = arith.constant 8 : index
    %c0_98 = arith.constant 0 : index
    %118 = vector.load %arg5[%c0_96, %c8_97, %c0_98] : memref<8x24x128xf32, #tpu.memory_space<vmem>>, vector<8x16x128xf32>
    %119 = vector.shape_cast %118 : vector<8x16x128xf32> to vector<128x128xf32>
    %120 = arith.truncf %119 : vector<128x128xf32> to vector<128x128xbf16>
    %c1536 = arith.constant 1536 : index
    %c0_99 = arith.constant 0 : index
    %121 = vector.load %arg2[%c1536, %c0_99] : memref<1792x128xbf16, #tpu.memory_space<vmem>>, vector<128x128xbf16>
    %cst_100 = arith.constant dense<0.000000e+00> : vector<128x128xf32>
    %122 = tpu.matmul %120, %121, %cst_100 {dimension_numbers = #tpu.dot_dimension_numbers<[1], [0], [0], [1], [0, 0, 1, 1], [], []>} : vector<128x128xbf16>, vector<128x128xbf16>, vector<128x128xf32> -> vector<128x128xf32>
    %123 = arith.addf %117, %122 : vector<128x128xf32>
    %124 = vector.extract_strided_slice %6 {offsets = [6, 0], sizes = [1, 128], strides = [1, 1]} : vector<8x128xf32> to vector<1x128xf32>
    %125 = vector.broadcast %124 : vector<1x128xf32> to vector<128x128xf32>
    %126 = arith.addf %123, %125 : vector<128x128xf32>
    %cst_101 = arith.constant 0.000000e+00 : f32
    %127 = vector.broadcast %cst_101 : f32 to vector<128x128xf32>
    %128 = arith.maximumf %126, %127 : vector<128x128xf32>
    %c0_102 = arith.constant 0 : index
    %c0_103 = arith.constant 0 : index
    %129 = vector.load %arg6[%c0_102, %c0_103] : memref<128x128xf32, #tpu.memory_space<vmem>>, vector<128x128xf32>
    %130 = arith.addf %128, %129 : vector<128x128xf32>
    %cst_104 = arith.constant 0.000000e+00 : f32
    %131 = vector.broadcast %cst_104 : f32 to vector<128x128xf32>
    %132 = arith.maximumf %130, %131 : vector<128x128xf32>
    %133 = vector.shape_cast %132 : vector<128x128xf32> to vector<8x16x128xf32>
    %134 = vector.extract_strided_slice %133 {offsets = [0, 15, 0], sizes = [8, 1, 128], strides = [1, 1, 1]} : vector<8x16x128xf32> to vector<8x1x128xf32>
    %135 = vector.shape_cast %134 : vector<8x1x128xf32> to vector<8x128xf32>
    %c1664 = arith.constant 1664 : index
    %c0_105 = arith.constant 0 : index
    %136 = vector.load %arg2[%c1664, %c0_105] : memref<1792x128xbf16, #tpu.memory_space<vmem>>, vector<128x128xbf16>
    %137 = arith.truncf %135 : vector<8x128xf32> to vector<8x128xbf16>
    %cst_106 = arith.constant dense<0.000000e+00> : vector<8x128xf32>
    %138 = tpu.matmul %137, %136, %cst_106 {dimension_numbers = #tpu.dot_dimension_numbers<[1], [0], [0], [1], [0, 0, 1, 1], [], []>} : vector<8x128xbf16>, vector<128x128xbf16>, vector<8x128xf32> -> vector<8x128xf32>
    %139 = vector.extract_strided_slice %6 {offsets = [7, 0], sizes = [1, 128], strides = [1, 1]} : vector<8x128xf32> to vector<1x128xf32>
    %140 = vector.broadcast %139 : vector<1x128xf32> to vector<8x128xf32>
    %141 = arith.addf %138, %140 : vector<8x128xf32>
    %c0_107 = arith.constant 0 : index
    %c0_108 = arith.constant 0 : index
    %142 = vector.load %arg4[%c0_107, %c0_108] : memref<8x128xf32, #tpu.memory_space<vmem>>, vector<8x128xf32>
    tpu.vector_store %arg4[%c0_107, %c0_108], %141 {strides = array<i32>} : memref<8x128xf32, #tpu.memory_space<vmem>>, vector<8x128xf32>,
    return
  }
  func.func @transform_0(%arg0: i32) -> (i32, i32, i32) {
    %c0_i32 = arith.constant 0 : i32
    %c0_i32_0 = arith.constant 0 : i32
    %c0_i32_1 = arith.constant 0 : i32
    return %arg0, %c0_i32, %c0_i32_0 : i32, i32, i32
  }
  func.func @transform_1(%arg0: i32) -> (i32, i32) {
    %c0_i32 = arith.constant 0 : i32
    %c0_i32_0 = arith.constant 0 : i32
    %c0_i32_1 = arith.constant 0 : i32
    return %c0_i32, %c0_i32_0 : i32, i32
  }
  func.func @transform_2(%arg0: i32) -> (i32, i32) {
    %c0_i32 = arith.constant 0 : i32
    %c0_i32_0 = arith.constant 0 : i32
    %c0_i32_1 = arith.constant 0 : i32
    return %c0_i32, %c0_i32_0 : i32, i32
  }
  func.func @transform_3(%arg0: i32) -> (i32, i32) {
    %c0_i32 = arith.constant 0 : i32
    %c0_i32_0 = arith.constant 0 : i32
    return %arg0, %c0_i32 : i32, i32
  }
}

module attributes {stable_mosaic.version = 11 : i64} {
  func.func @kernel(%arg0: i32, %arg1: memref<8x16x128xf32, #tpu.memory_space<vmem>>, %arg2: memref<1792x128xbf16, #tpu.memory_space<vmem>>, %arg3: memref<8x128xf32, #tpu.memory_space<vmem>>, %arg4: memref<8x128xf32, #tpu.memory_space<vmem>>, %arg5: memref<8x24x128xf32, #tpu.memory_space<vmem>>, %arg6: memref<128x128xf32, #tpu.memory_space<vmem>>) attributes {dimension_semantics = [#tpu.dimension_semantics<parallel>], iteration_bounds = array<i64: 1>, scalar_prefetch = 0 : i64, scratch_operands = 2 : i64, tpu.core_type = #tpu.core_type<tc>, window_params = [{transform_indices = @transform_0, window_bounds = array<i64: 8, 16, 128>}, {pipeline_mode = #tpu.pipeline_mode<synchronous>, transform_indices = @transform_1, window_bounds = array<i64: 1792, 128>}, {pipeline_mode = #tpu.pipeline_mode<synchronous>, transform_indices = @transform_2, window_bounds = array<i64: 8, 128>}, {transform_indices = @transform_3, window_bounds = array<i64: 8, 128>}]} {
    %cst = arith.constant 0.000000e+00 : f32
    %0 = vector.broadcast %cst : f32 to vector<8x8x128xf32>
    %c0 = arith.constant 0 : index
    %c0_0 = arith.constant 0 : index
    %c0_1 = arith.constant 0 : index
    %1 = vector.load %arg5[%c0, %c0_0, %c0_1] : memref<8x24x128xf32, #tpu.memory_space<vmem>>, vector<8x8x128xf32>
    tpu.vector_store %arg5[%c0, %c0_0, %c0_1], %0 {strides = array<i32>} : memref<8x24x128xf32, #tpu.memory_space<vmem>>, vector<8x8x128xf32>,
    %c0_2 = arith.constant 0 : index
    %c0_3 = arith.constant 0 : index
    %c0_4 = arith.constant 0 : index
    %2 = vector.load %arg1[%c0_2, %c0_3, %c0_4] : memref<8x16x128xf32, #tpu.memory_space<vmem>>, vector<8x16x128xf32>
    %c0_5 = arith.constant 0 : index
    %c8 = arith.constant 8 : index
    %c0_6 = arith.constant 0 : index
    %3 = vector.load %arg5[%c0_5, %c8, %c0_6] : memref<8x24x128xf32, #tpu.memory_space<vmem>>, vector<8x16x128xf32>
    tpu.vector_store %arg5[%c0_5, %c8, %c0_6], %2 {strides = array<i32>} : memref<8x24x128xf32, #tpu.memory_space<vmem>>, vector<8x16x128xf32>,
    %4 = vector.shape_cast %2 : vector<8x16x128xf32> to vector<128x128xf32>
    %c0_7 = arith.constant 0 : index
    %c0_8 = arith.constant 0 : index
    %5 = vector.load %arg6[%c0_7, %c0_8] : memref<128x128xf32, #tpu.memory_space<vmem>>, vector<128x128xf32>
    tpu.vector_store %arg6[%c0_7, %c0_8], %4 {strides = array<i32>} : memref<128x128xf32, #tpu.memory_space<vmem>>, vector<128x128xf32>,
    %c0_9 = arith.constant 0 : index
    %c0_10 = arith.constant 0 : index
    %6 = vector.load %arg3[%c0_9, %c0_10] : memref<8x128xf32, #tpu.memory_space<vmem>>, vector<8x128xf32>
    %c0_11 = arith.constant 0 : index
    %c7 = arith.constant 7 : index
    %c0_12 = arith.constant 0 : index
    %7 = vector.load %arg5[%c0_11, %c7, %c0_12] : memref<8x24x128xf32, #tpu.memory_space<vmem>>, vector<8x16x128xf32>
    %8 = vector.shape_cast %7 : vector<8x16x128xf32> to vector<128x128xf32>
    %9 = arith.truncf %8 : vector<128x128xf32> to vector<128x128xbf16>
    %c0_13 = arith.constant 0 : index
    %c0_14 = arith.constant 0 : index
    %10 = vector.load %arg2[%c0_13, %c0_14] : memref<1792x128xbf16, #tpu.memory_space<vmem>>, vector<128x128xbf16>
    %cst_15 = arith.constant dense<0.000000e+00> : vector<128x128xf32>
    %11 = tpu.matmul %9, %10, %cst_15 {dimension_numbers = #tpu.dot_dimension_numbers<[1], [0], [0], [1], [0, 0, 1, 1], [], []>} : vector<128x128xbf16>, vector<128x128xbf16>, vector<128x128xf32> -> vector<128x128xf32>
    %c0_16 = arith.constant 0 : index
    %c8_17 = arith.constant 8 : index
    %c0_18 = arith.constant 0 : index
    %12 = vector.load %arg5[%c0_16, %c8_17, %c0_18] : memref<8x24x128xf32, #tpu.memory_space<vmem>>, vector<8x16x128xf32>
    %13 = vector.shape_cast %12 : vector<8x16x128xf32> to vector<128x128xf32>
    %14 = arith.truncf %13 : vector<128x128xf32> to vector<128x128xbf16>
    %c128 = arith.constant 128 : index
    %c0_19 = arith.constant 0 : index
    %15 = vector.load %arg2[%c128, %c0_19] : memref<1792x128xbf16, #tpu.memory_space<vmem>>, vector<128x128xbf16>
    %cst_20 = arith.constant dense<0.000000e+00> : vector<128x128xf32>
    %16 = tpu.matmul %14, %15, %cst_20 {dimension_numbers = #tpu.dot_dimension_numbers<[1], [0], [0], [1], [0, 0, 1, 1], [], []>} : vector<128x128xbf16>, vector<128x128xbf16>, vector<128x128xf32> -> vector<128x128xf32>
    %17 = arith.addf %11, %16 : vector<128x128xf32>
    %18 = vector.extract_strided_slice %6 {offsets = [0, 0], sizes = [1, 128], strides = [1, 1]} : vector<8x128xf32> to vector<1x128xf32>
    %19 = vector.broadcast %18 : vector<1x128xf32> to vector<128x128xf32>
    %20 = arith.addf %17, %19 : vector<128x128xf32>
    %cst_21 = arith.constant 0.000000e+00 : f32
    %21 = vector.broadcast %cst_21 : f32 to vector<128x128xf32>
    %22 = arith.maximumf %20, %21 : vector<128x128xf32>
    %23 = vector.shape_cast %22 : vector<128x128xf32> to vector<8x16x128xf32>
    %c0_22 = arith.constant 0 : index
    %c8_23 = arith.constant 8 : index
    %c0_24 = arith.constant 0 : index
    %24 = vector.load %arg5[%c0_22, %c8_23, %c0_24] : memref<8x24x128xf32, #tpu.memory_space<vmem>>, vector<8x16x128xf32>
    tpu.vector_store %arg5[%c0_22, %c8_23, %c0_24], %23 {strides = array<i32>} : memref<8x24x128xf32, #tpu.memory_space<vmem>>, vector<8x16x128xf32>,
    %c0_25 = arith.constant 0 : index
    %c7_26 = arith.constant 7 : index
    %c0_27 = arith.constant 0 : index
    %25 = vector.load %arg5[%c0_25, %c7_26, %c0_27] : memref<8x24x128xf32, #tpu.memory_space<vmem>>, vector<8x16x128xf32>
    %26 = vector.shape_cast %25 : vector<8x16x128xf32> to vector<128x128xf32>
    %27 = arith.truncf %26 : vector<128x128xf32> to vector<128x128xbf16>
    %c256 = arith.constant 256 : index
    %c0_28 = arith.constant 0 : index
    %28 = vector.load %arg2[%c256, %c0_28] : memref<1792x128xbf16, #tpu.memory_space<vmem>>, vector<128x128xbf16>
    %cst_29 = arith.constant dense<0.000000e+00> : vector<128x128xf32>
    %29 = tpu.matmul %27, %28, %cst_29 {dimension_numbers = #tpu.dot_dimension_numbers<[1], [0], [0], [1], [0, 0, 1, 1], [], []>} : vector<128x128xbf16>, vector<128x128xbf16>, vector<128x128xf32> -> vector<128x128xf32>
    %c0_30 = arith.constant 0 : index
    %c8_31 = arith.constant 8 : index
    %c0_32 = arith.constant 0 : index
    %30 = vector.load %arg5[%c0_30, %c8_31, %c0_32] : memref<8x24x128xf32, #tpu.memory_space<vmem>>, vector<8x16x128xf32>
    %31 = vector.shape_cast %30 : vector<8x16x128xf32> to vector<128x128xf32>
    %32 = arith.truncf %31 : vector<128x128xf32> to vector<128x128xbf16>
    %c384 = arith.constant 384 : index
    %c0_33 = arith.constant 0 : index
    %33 = vector.load %arg2[%c384, %c0_33] : memref<1792x128xbf16, #tpu.memory_space<vmem>>, vector<128x128xbf16>
    %cst_34 = arith.constant dense<0.000000e+00> : vector<128x128xf32>
    %34 = tpu.matmul %32, %33, %cst_34 {dimension_numbers = #tpu.dot_dimension_numbers<[1], [0], [0], [1], [0, 0, 1, 1], [], []>} : vector<128x128xbf16>, vector<128x128xbf16>, vector<128x128xf32> -> vector<128x128xf32>
    %35 = arith.addf %29, %34 : vector<128x128xf32>
    %36 = vector.extract_strided_slice %6 {offsets = [1, 0], sizes = [1, 128], strides = [1, 1]} : vector<8x128xf32> to vector<1x128xf32>
    %37 = vector.broadcast %36 : vector<1x128xf32> to vector<128x128xf32>
    %38 = arith.addf %35, %37 : vector<128x128xf32>
    %cst_35 = arith.constant 0.000000e+00 : f32
    %39 = vector.broadcast %cst_35 : f32 to vector<128x128xf32>
    %40 = arith.maximumf %38, %39 : vector<128x128xf32>
    %c0_36 = arith.constant 0 : index
    %c0_37 = arith.constant 0 : index
    %41 = vector.load %arg6[%c0_36, %c0_37] : memref<128x128xf32, #tpu.memory_space<vmem>>, vector<128x128xf32>
    %c512 = arith.constant 512 : index
    %c0_38 = arith.constant 0 : index
    %42 = vector.load %arg2[%c512, %c0_38] : memref<1792x128xbf16, #tpu.memory_space<vmem>>, vector<128x128xbf16>
    %43 = arith.truncf %41 : vector<128x128xf32> to vector<128x128xbf16>
    %cst_39 = arith.constant dense<0.000000e+00> : vector<128x128xf32>
    %44 = tpu.matmul %43, %42, %cst_39 {dimension_numbers = #tpu.dot_dimension_numbers<[1], [0], [0], [1], [0, 0, 1, 1], [], []>} : vector<128x128xbf16>, vector<128x128xbf16>, vector<128x128xf32> -> vector<128x128xf32>
    %45 = vector.extract_strided_slice %6 {offsets = [2, 0], sizes = [1, 128], strides = [1, 1]} : vector<8x128xf32> to vector<1x128xf32>
    %46 = vector.broadcast %45 : vector<1x128xf32> to vector<128x128xf32>
    %47 = arith.addf %44, %46 : vector<128x128xf32>
    %48 = arith.addf %40, %47 : vector<128x128xf32>
    %cst_40 = arith.constant 0.000000e+00 : f32
    %49 = vector.broadcast %cst_40 : f32 to vector<128x128xf32>
    %50 = arith.maximumf %48, %49 : vector<128x128xf32>
    %51 = vector.shape_cast %50 : vector<128x128xf32> to vector<8x16x128xf32>
    %c0_41 = arith.constant 0 : index
    %c8_42 = arith.constant 8 : index
    %c0_43 = arith.constant 0 : index
    %52 = vector.load %arg5[%c0_41, %c8_42, %c0_43] : memref<8x24x128xf32, #tpu.memory_space<vmem>>, vector<8x16x128xf32>
    tpu.vector_store %arg5[%c0_41, %c8_42, %c0_43], %51 {strides = array<i32>} : memref<8x24x128xf32, #tpu.memory_space<vmem>>, vector<8x16x128xf32>,
    %c0_44 = arith.constant 0 : index
    %c0_45 = arith.constant 0 : index
    %53 = vector.load %arg6[%c0_44, %c0_45] : memref<128x128xf32, #tpu.memory_space<vmem>>, vector<128x128xf32>
    tpu.vector_store %arg6[%c0_44, %c0_45], %50 {strides = array<i32>} : memref<128x128xf32, #tpu.memory_space<vmem>>, vector<128x128xf32>,
    %c0_46 = arith.constant 0 : index
    %c6 = arith.constant 6 : index
    %c0_47 = arith.constant 0 : index
    %54 = vector.load %arg5[%c0_46, %c6, %c0_47] : memref<8x24x128xf32, #tpu.memory_space<vmem>>, vector<8x16x128xf32>
    %55 = vector.shape_cast %54 : vector<8x16x128xf32> to vector<128x128xf32>
    %56 = arith.truncf %55 : vector<128x128xf32> to vector<128x128xbf16>
    %c640 = arith.constant 640 : index
    %c0_48 = arith.constant 0 : index
    %57 = vector.load %arg2[%c640, %c0_48] : memref<1792x128xbf16, #tpu.memory_space<vmem>>, vector<128x128xbf16>
    %cst_49 = arith.constant dense<0.000000e+00> : vector<128x128xf32>
    %58 = tpu.matmul %56, %57, %cst_49 {dimension_numbers = #tpu.dot_dimension_numbers<[1], [0], [0], [1], [0, 0, 1, 1], [], []>} : vector<128x128xbf16>, vector<128x128xbf16>, vector<128x128xf32> -> vector<128x128xf32>
    %c0_50 = arith.constant 0 : index
    %c8_51 = arith.constant 8 : index
    %c0_52 = arith.constant 0 : index
    %59 = vector.load %arg5[%c0_50, %c8_51, %c0_52] : memref<8x24x128xf32, #tpu.memory_space<vmem>>, vector<8x16x128xf32>
    %60 = vector.shape_cast %59 : vector<8x16x128xf32> to vector<128x128xf32>
    %61 = arith.truncf %60 : vector<128x128xf32> to vector<128x128xbf16>
    %c768 = arith.constant 768 : index
    %c0_53 = arith.constant 0 : index
    %62 = vector.load %arg2[%c768, %c0_53] : memref<1792x128xbf16, #tpu.memory_space<vmem>>, vector<128x128xbf16>
    %cst_54 = arith.constant dense<0.000000e+00> : vector<128x128xf32>
    %63 = tpu.matmul %61, %62, %cst_54 {dimension_numbers = #tpu.dot_dimension_numbers<[1], [0], [0], [1], [0, 0, 1, 1], [], []>} : vector<128x128xbf16>, vector<128x128xbf16>, vector<128x128xf32> -> vector<128x128xf32>
    %64 = arith.addf %58, %63 : vector<128x128xf32>
    %65 = vector.extract_strided_slice %6 {offsets = [3, 0], sizes = [1, 128], strides = [1, 1]} : vector<8x128xf32> to vector<1x128xf32>
    %66 = vector.broadcast %65 : vector<1x128xf32> to vector<128x128xf32>
    %67 = arith.addf %64, %66 : vector<128x128xf32>
    %cst_55 = arith.constant 0.000000e+00 : f32
    %68 = vector.broadcast %cst_55 : f32 to vector<128x128xf32>
    %69 = arith.maximumf %67, %68 : vector<128x128xf32>
    %70 = vector.shape_cast %69 : vector<128x128xf32> to vector<8x16x128xf32>
    %c0_56 = arith.constant 0 : index
    %c8_57 = arith.constant 8 : index
    %c0_58 = arith.constant 0 : index
    %71 = vector.load %arg5[%c0_56, %c8_57, %c0_58] : memref<8x24x128xf32, #tpu.memory_space<vmem>>, vector<8x16x128xf32>
    tpu.vector_store %arg5[%c0_56, %c8_57, %c0_58], %70 {strides = array<i32>} : memref<8x24x128xf32, #tpu.memory_space<vmem>>, vector<8x16x128xf32>,
    %c0_59 = arith.constant 0 : index
    %c6_60 = arith.constant 6 : index
    %c0_61 = arith.constant 0 : index
    %72 = vector.load %arg5[%c0_59, %c6_60, %c0_61] : memref<8x24x128xf32, #tpu.memory_space<vmem>>, vector<8x16x128xf32>
    %73 = vector.shape_cast %72 : vector<8x16x128xf32> to vector<128x128xf32>
    %74 = arith.truncf %73 : vector<128x128xf32> to vector<128x128xbf16>
    %c896 = arith.constant 896 : index
    %c0_62 = arith.constant 0 : index
    %75 = vector.load %arg2[%c896, %c0_62] : memref<1792x128xbf16, #tpu.memory_space<vmem>>, vector<128x128xbf16>
    %cst_63 = arith.constant dense<0.000000e+00> : vector<128x128xf32>
    %76 = tpu.matmul %74, %75, %cst_63 {dimension_numbers = #tpu.dot_dimension_numbers<[1], [0], [0], [1], [0, 0, 1, 1], [], []>} : vector<128x128xbf16>, vector<128x128xbf16>, vector<128x128xf32> -> vector<128x128xf32>
    %c0_64 = arith.constant 0 : index
    %c8_65 = arith.constant 8 : index
    %c0_66 = arith.constant 0 : index
    %77 = vector.load %arg5[%c0_64, %c8_65, %c0_66] : memref<8x24x128xf32, #tpu.memory_space<vmem>>, vector<8x16x128xf32>
    %78 = vector.shape_cast %77 : vector<8x16x128xf32> to vector<128x128xf32>
    %79 = arith.truncf %78 : vector<128x128xf32> to vector<128x128xbf16>
    %c1024 = arith.constant 1024 : index
    %c0_67 = arith.constant 0 : index
    %80 = vector.load %arg2[%c1024, %c0_67] : memref<1792x128xbf16, #tpu.memory_space<vmem>>, vector<128x128xbf16>
    %cst_68 = arith.constant dense<0.000000e+00> : vector<128x128xf32>
    %81 = tpu.matmul %79, %80, %cst_68 {dimension_numbers = #tpu.dot_dimension_numbers<[1], [0], [0], [1], [0, 0, 1, 1], [], []>} : vector<128x128xbf16>, vector<128x128xbf16>, vector<128x128xf32> -> vector<128x128xf32>
    %82 = arith.addf %76, %81 : vector<128x128xf32>
    %83 = vector.extract_strided_slice %6 {offsets = [4, 0], sizes = [1, 128], strides = [1, 1]} : vector<8x128xf32> to vector<1x128xf32>
    %84 = vector.broadcast %83 : vector<1x128xf32> to vector<128x128xf32>
    %85 = arith.addf %82, %84 : vector<128x128xf32>
    %cst_69 = arith.constant 0.000000e+00 : f32
    %86 = vector.broadcast %cst_69 : f32 to vector<128x128xf32>
    %87 = arith.maximumf %85, %86 : vector<128x128xf32>
    %c0_70 = arith.constant 0 : index
    %c0_71 = arith.constant 0 : index
    %88 = vector.load %arg6[%c0_70, %c0_71] : memref<128x128xf32, #tpu.memory_space<vmem>>, vector<128x128xf32>
    %89 = arith.addf %87, %88 : vector<128x128xf32>
    %cst_72 = arith.constant 0.000000e+00 : f32
    %90 = vector.broadcast %cst_72 : f32 to vector<128x128xf32>
    %91 = arith.maximumf %89, %90 : vector<128x128xf32>
    %92 = vector.shape_cast %91 : vector<128x128xf32> to vector<8x16x128xf32>
    %c0_73 = arith.constant 0 : index
    %c8_74 = arith.constant 8 : index
    %c0_75 = arith.constant 0 : index
    %93 = vector.load %arg5[%c0_73, %c8_74, %c0_75] : memref<8x24x128xf32, #tpu.memory_space<vmem>>, vector<8x16x128xf32>
    tpu.vector_store %arg5[%c0_73, %c8_74, %c0_75], %92 {strides = array<i32>} : memref<8x24x128xf32, #tpu.memory_space<vmem>>, vector<8x16x128xf32>,
    %c0_76 = arith.constant 0 : index
    %c0_77 = arith.constant 0 : index
    %94 = vector.load %arg6[%c0_76, %c0_77] : memref<128x128xf32, #tpu.memory_space<vmem>>, vector<128x128xf32>
    tpu.vector_store %arg6[%c0_76, %c0_77], %91 {strides = array<i32>} : memref<128x128xf32, #tpu.memory_space<vmem>>, vector<128x128xf32>,
    %c0_78 = arith.constant 0 : index
    %c4 = arith.constant 4 : index
    %c0_79 = arith.constant 0 : index
    %95 = vector.load %arg5[%c0_78, %c4, %c0_79] : memref<8x24x128xf32, #tpu.memory_space<vmem>>, vector<8x16x128xf32>
    %96 = vector.shape_cast %95 : vector<8x16x128xf32> to vector<128x128xf32>
    %97 = arith.truncf %96 : vector<128x128xf32> to vector<128x128xbf16>
    %c1152 = arith.constant 1152 : index
    %c0_80 = arith.constant 0 : index
    %98 = vector.load %arg2[%c1152, %c0_80] : memref<1792x128xbf16, #tpu.memory_space<vmem>>, vector<128x128xbf16>
    %cst_81 = arith.constant dense<0.000000e+00> : vector<128x128xf32>
    %99 = tpu.matmul %97, %98, %cst_81 {dimension_numbers = #tpu.dot_dimension_numbers<[1], [0], [0], [1], [0, 0, 1, 1], [], []>} : vector<128x128xbf16>, vector<128x128xbf16>, vector<128x128xf32> -> vector<128x128xf32>
    %c0_82 = arith.constant 0 : index
    %c8_83 = arith.constant 8 : index
    %c0_84 = arith.constant 0 : index
    %100 = vector.load %arg5[%c0_82, %c8_83, %c0_84] : memref<8x24x128xf32, #tpu.memory_space<vmem>>, vector<8x16x128xf32>
    %101 = vector.shape_cast %100 : vector<8x16x128xf32> to vector<128x128xf32>
    %102 = arith.truncf %101 : vector<128x128xf32> to vector<128x128xbf16>
    %c1280 = arith.constant 1280 : index
    %c0_85 = arith.constant 0 : index
    %103 = vector.load %arg2[%c1280, %c0_85] : memref<1792x128xbf16, #tpu.memory_space<vmem>>, vector<128x128xbf16>
    %cst_86 = arith.constant dense<0.000000e+00> : vector<128x128xf32>
    %104 = tpu.matmul %102, %103, %cst_86 {dimension_numbers = #tpu.dot_dimension_numbers<[1], [0], [0], [1], [0, 0, 1, 1], [], []>} : vector<128x128xbf16>, vector<128x128xbf16>, vector<128x128xf32> -> vector<128x128xf32>
    %105 = arith.addf %99, %104 : vector<128x128xf32>
    %106 = vector.extract_strided_slice %6 {offsets = [5, 0], sizes = [1, 128], strides = [1, 1]} : vector<8x128xf32> to vector<1x128xf32>
    %107 = vector.broadcast %106 : vector<1x128xf32> to vector<128x128xf32>
    %108 = arith.addf %105, %107 : vector<128x128xf32>
    %cst_87 = arith.constant 0.000000e+00 : f32
    %109 = vector.broadcast %cst_87 : f32 to vector<128x128xf32>
    %110 = arith.maximumf %108, %109 : vector<128x128xf32>
    %111 = vector.shape_cast %110 : vector<128x128xf32> to vector<8x16x128xf32>
    %c0_88 = arith.constant 0 : index
    %c8_89 = arith.constant 8 : index
    %c0_90 = arith.constant 0 : index
    %112 = vector.load %arg5[%c0_88, %c8_89, %c0_90] : memref<8x24x128xf32, #tpu.memory_space<vmem>>, vector<8x16x128xf32>
    tpu.vector_store %arg5[%c0_88, %c8_89, %c0_90], %111 {strides = array<i32>} : memref<8x24x128xf32, #tpu.memory_space<vmem>>, vector<8x16x128xf32>,
    %c0_91 = arith.constant 0 : index
    %c4_92 = arith.constant 4 : index
    %c0_93 = arith.constant 0 : index
    %113 = vector.load %arg5[%c0_91, %c4_92, %c0_93] : memref<8x24x128xf32, #tpu.memory_space<vmem>>, vector<8x16x128xf32>
    %114 = vector.shape_cast %113 : vector<8x16x128xf32> to vector<128x128xf32>
    %115 = arith.truncf %114 : vector<128x128xf32> to vector<128x128xbf16>
    %c1408 = arith.constant 1408 : index
    %c0_94 = arith.constant 0 : index
    %116 = vector.load %arg2[%c1408, %c0_94] : memref<1792x128xbf16, #tpu.memory_space<vmem>>, vector<128x128xbf16>
    %cst_95 = arith.constant dense<0.000000e+00> : vector<128x128xf32>
    %117 = tpu.matmul %115, %116, %cst_95 {dimension_numbers = #tpu.dot_dimension_numbers<[1], [0], [0], [1], [0, 0, 1, 1], [], []>} : vector<128x128xbf16>, vector<128x128xbf16>, vector<128x128xf32> -> vector<128x128xf32>
    %c0_96 = arith.constant 0 : index
    %c8_97 = arith.constant 8 : index
    %c0_98 = arith.constant 0 : index
    %118 = vector.load %arg5[%c0_96, %c8_97, %c0_98] : memref<8x24x128xf32, #tpu.memory_space<vmem>>, vector<8x16x128xf32>
    %119 = vector.shape_cast %118 : vector<8x16x128xf32> to vector<128x128xf32>
    %120 = arith.truncf %119 : vector<128x128xf32> to vector<128x128xbf16>
    %c1536 = arith.constant 1536 : index
    %c0_99 = arith.constant 0 : index
    %121 = vector.load %arg2[%c1536, %c0_99] : memref<1792x128xbf16, #tpu.memory_space<vmem>>, vector<128x128xbf16>
    %cst_100 = arith.constant dense<0.000000e+00> : vector<128x128xf32>
    %122 = tpu.matmul %120, %121, %cst_100 {dimension_numbers = #tpu.dot_dimension_numbers<[1], [0], [0], [1], [0, 0, 1, 1], [], []>} : vector<128x128xbf16>, vector<128x128xbf16>, vector<128x128xf32> -> vector<128x128xf32>
    %123 = arith.addf %117, %122 : vector<128x128xf32>
    %124 = vector.extract_strided_slice %6 {offsets = [6, 0], sizes = [1, 128], strides = [1, 1]} : vector<8x128xf32> to vector<1x128xf32>
    %125 = vector.broadcast %124 : vector<1x128xf32> to vector<128x128xf32>
    %126 = arith.addf %123, %125 : vector<128x128xf32>
    %cst_101 = arith.constant 0.000000e+00 : f32
    %127 = vector.broadcast %cst_101 : f32 to vector<128x128xf32>
    %128 = arith.maximumf %126, %127 : vector<128x128xf32>
    %c0_102 = arith.constant 0 : index
    %c0_103 = arith.constant 0 : index
    %129 = vector.load %arg6[%c0_102, %c0_103] : memref<128x128xf32, #tpu.memory_space<vmem>>, vector<128x128xf32>
    %130 = arith.addf %128, %129 : vector<128x128xf32>
    %cst_104 = arith.constant 0.000000e+00 : f32
    %131 = vector.broadcast %cst_104 : f32 to vector<128x128xf32>
    %132 = arith.maximumf %130, %131 : vector<128x128xf32>
    %133 = vector.shape_cast %132 : vector<128x128xf32> to vector<8x16x128xf32>
    %134 = vector.extract_strided_slice %133 {offsets = [0, 15, 0], sizes = [8, 1, 128], strides = [1, 1, 1]} : vector<8x16x128xf32> to vector<8x1x128xf32>
    %135 = vector.shape_cast %134 : vector<8x1x128xf32> to vector<8x128xf32>
    %c1664 = arith.constant 1664 : index
    %c0_105 = arith.constant 0 : index
    %136 = vector.load %arg2[%c1664, %c0_105] : memref<1792x128xbf16, #tpu.memory_space<vmem>>, vector<128x128xbf16>
    %137 = arith.truncf %135 : vector<8x128xf32> to vector<8x128xbf16>
    %cst_106 = arith.constant dense<0.000000e+00> : vector<8x128xf32>
    %138 = tpu.matmul %137, %136, %cst_106 {dimension_numbers = #tpu.dot_dimension_numbers<[1], [0], [0], [1], [0, 0, 1, 1], [], []>} : vector<8x128xbf16>, vector<128x128xbf16>, vector<8x128xf32> -> vector<8x128xf32>
    %139 = vector.extract_strided_slice %6 {offsets = [7, 0], sizes = [1, 128], strides = [1, 1]} : vector<8x128xf32> to vector<1x128xf32>
    %140 = vector.broadcast %139 : vector<1x128xf32> to vector<8x128xf32>
    %141 = arith.addf %138, %140 : vector<8x128xf32>
    %c0_107 = arith.constant 0 : index
    %c0_108 = arith.constant 0 : index
    %142 = vector.load %arg4[%c0_107, %c0_108] : memref<8x128xf32, #tpu.memory_space<vmem>>, vector<8x128xf32>
    tpu.vector_store %arg4[%c0_107, %c0_108], %141 {strides = array<i32>} : memref<8x128xf32, #tpu.memory_space<vmem>>, vector<8x128xf32>,
    return
  }
  func.func @transform_0(%arg0: i32) -> (i32, i32, i32) {
    %c0_i32 = arith.constant 0 : i32
    %c0_i32_0 = arith.constant 0 : i32
    %c0_i32_1 = arith.constant 0 : i32
    return %arg0, %c0_i32, %c0_i32_0 : i32, i32, i32
  }
  func.func @transform_1(%arg0: i32) -> (i32, i32) {
    %c0_i32 = arith.constant 0 : i32
    %c0_i32_0 = arith.constant 0 : i32
    %c0_i32_1 = arith.constant 0 : i32
    return %c0_i32, %c0_i32_0 : i32, i32
  }
  func.func @transform_2(%arg0: i32) -> (i32, i32) {
    %c0_i32 = arith.constant 0 : i32
    %c0_i32_0 = arith.constant 0 : i32
    %c0_i32_1 = arith.constant 0 : i32
    return %c0_i32, %c0_i32_0 : i32, i32
  }
  func.func @transform_3(%arg0: i32) -> (i32, i32) {
    %c0_i32 = arith.constant 0 : i32
    %c0_i32_0 = arith.constant 0 : i32
    return %arg0, %c0_i32 : i32, i32
  }
}

</mosaic_0001>

<llo_original>
// kernel: tpu_custom_call.1
$region0: #{tpu_custom_call.1}
  #allocation0 [shape = 'u32[]', space=smem, size = 0x4, offset = 0x4, fixed_abs, tag = 'smem constant byte address 0x4 - core index']
  #allocation1 [shape = 'u32[72,128]{1,0:T(1,128)}', space=vmem, size = 0x9000, scoped, tag = 'internal scratch']
  #allocation2 [shape = 'f32[8,24,128]{2,1,0:T(8,128)}', space=vmem, size = 0x18000, scoped, tag = 'scratch operand']
  #allocation3 [shape = 'f32[128,128]{1,0:T(8,128)}', space=vmem, size = 0x10000, scoped, tag = 'scratch operand']
  %s0 = inlined_call_operand.hbm [shape: f32[8,16,128], index: 0, kind: input, shape index: {}]
  %s1 = inlined_call_operand.hbm [shape: bf16[1792,128], index: 1, kind: input, shape index: {}]
  %s2 = inlined_call_operand.hbm [shape: f32[8,128], index: 2, kind: input, shape index: {}]
  %s3 = inlined_call_operand.hbm [shape: f32[8,128], index: 3, kind: output, shape index: {}]
  %s4 = sld [smem:[#allocation0]]
  $region34: #{tpu_custom_call.1} parent=0
    _
  %s6 = ssub.s32 1, %s4
  %s7 = scalar_select 0, %s6, %s4
  $region1: #{tpu_custom_call.1} parent=0
    #allocation4 [shape = 'u8[65536]{0}', space=vmem, size = 0x10000, scoped, tag = 'input window, operand 0, single buffered']
    #allocation5 [shape = 's32[1]{0}', space=sflag, size = 0x4, scoped, tag = 'scoped memory for tpu_custom_call.1']
    #allocation6 [shape = 's32[1]{0}', space=sflag, size = 0x4, scoped, tag = 'scoped memory for tpu_custom_call.1']
    #allocation7 [shape = 'u8[458752]{0}', space=vmem, size = 0x70000, scoped, tag = 'input window, operand 1, single buffered']
    #allocation8 [shape = 's32[1]{0}', space=sflag, size = 0x4, scoped, tag = 'scoped memory for tpu_custom_call.1']
    #allocation9 [shape = 'u8[4096]{0}', space=vmem, size = 0x1000, scoped, tag = 'input window, operand 2, single buffered']
    #allocation10 [shape = 'u8[4096]{0}', space=vmem, size = 0x1000, scoped, tag = 'output window, operand 0, single buffered']
    %8 = vsyncpa [#allocation5], 0
    %9 = vsyncpa [#allocation8], 0
    %10 = vsyncpa [#allocation6], 0
    // Predicated region
    $region2: #{tpu_custom_call.1} parent=1 // pred_check
      _
    $region3: #{tpu_custom_call.1} parent=1 // pred_check_branch
      %12 = sbr.rel (0) target = $region5
    $region4: #{tpu_custom_call.1} parent=1 // pred_region
      %14 = vsyncadd [#allocation5], 0
      %s15 = sshll.u32 %s0, 4
      %s16 = int_to_ptr.hbm [resolvable:$true] %s15
      %s17 = sshll.u32 [#allocation4], 4
      %s18 = int_to_ptr.vmem [resolvable:$true] %s17
      %23 = dma.hbm_to_vmem [thread:$0]  %s16, 2048, %s18, [#allocation5], 128, 128, 8
    $region5: #{tpu_custom_call.1} parent=1 // pred_fallthru
      _
    // Predicated region
    $region6: #{tpu_custom_call.1} parent=1 // pred_check
      _
    $region7: #{tpu_custom_call.1} parent=1 // pred_check_branch
      %25 = sbr.rel (0) target = $region9
    $region8: #{tpu_custom_call.1} parent=1 // pred_region
      %27 = vsyncadd [#allocation8], 0
      %s28 = sshll.u32 %s1, 4
      %s29 = int_to_ptr.hbm [resolvable:$true] %s28
      %s30 = sshll.u32 [#allocation7], 4
      %s31 = int_to_ptr.vmem [resolvable:$true] %s30
      %36 = dma.hbm_to_vmem [thread:$0]  %s29, 14336, %s31, [#allocation8], 64, 64, 4
    $region9: #{tpu_custom_call.1} parent=1 // pred_fallthru
      _
    // Predicated region
    $region10: #{tpu_custom_call.1} parent=1 // pred_check
      _
    $region11: #{tpu_custom_call.1} parent=1 // pred_check_branch
      %38 = sbr.rel (0) target = $region13
    $region12: #{tpu_custom_call.1} parent=1 // pred_region
      %40 = vsyncadd [#allocation8], 0
      %s42 = sshll.u32 %s2, 4
      %s43 = int_to_ptr.hbm [resolvable:$true] %s42
      %s44 = sshll.u32 [#allocation9], 4
      %s45 = int_to_ptr.vmem [resolvable:$true] %s44
      %47 = dma.hbm_to_vmem [thread:$0]  %s43, 128, %s45, [#allocation8]
    $region13: #{tpu_custom_call.1} parent=1 // pred_fallthru
      _
    // Predicated region
    $region14: #{tpu_custom_call.1} parent=1 // pred_check
      _
    $region15: #{tpu_custom_call.1} parent=1 // pred_check_branch
      %49 = sbr.rel (0) target = $region17
    $region16: #{tpu_custom_call.1} parent=1 // pred_region
      %51 = dma.done [#allocation5], 2048
    $region17: #{tpu_custom_call.1} parent=1 // pred_fallthru
      _
    // Predicated region
    $region18: #{tpu_custom_call.1} parent=1 // pred_check
      _
    $region19: #{tpu_custom_call.1} parent=1 // pred_check_branch
      %53 = sbr.rel (0) target = $region21
    $region20: #{tpu_custom_call.1} parent=1 // pred_region
      %55 = dma.done [#allocation8], 14336
    $region21: #{tpu_custom_call.1} parent=1 // pred_fallthru
      _
    // Predicated region
    $region22: #{tpu_custom_call.1} parent=1 // pred_check
      _
    $region23: #{tpu_custom_call.1} parent=1 // pred_check_branch
      %57 = sbr.rel (0) target = $region25
    $region24: #{tpu_custom_call.1} parent=1 // pred_region
      %59 = dma.done [#allocation8], 128
    $region25: #{tpu_custom_call.1} parent=1 // pred_fallthru
      _
    %60 = vst [vmem:[#allocation2] sm:$0xff] 0.0
    %61 = vst [vmem:[#allocation2 + $0x18] sm:$0xff] 0.0
    %62 = vst [vmem:[#allocation2 + $0x30] sm:$0xff] 0.0
    %63 = vst [vmem:[#allocation2 + $0x48] sm:$0xff] 0.0
    %64 = vst [vmem:[#allocation2 + $0x60] sm:$0xff] 0.0
    %65 = vst [vmem:[#allocation2 + $0x78] sm:$0xff] 0.0
    %66 = vst [vmem:[#allocation2 + $0x90] sm:$0xff] 0.0
    %67 = vst [vmem:[#allocation2 + $0xa8] sm:$0xff] 0.0
    %v68 = vld [vmem:[#allocation4] sm:$0xff]
    %v69 = vld [vmem:[#allocation4 + $0x8] sm:$0xff]
    %v70 = vld [vmem:[#allocation4 + $0x10] sm:$0xff]
    %v71 = vld [vmem:[#allocation4 + $0x18] sm:$0xff]
    %v72 = vld [vmem:[#allocation4 + $0x20] sm:$0xff]
    %v73 = vld [vmem:[#allocation4 + $0x28] sm:$0xff]
    %v74 = vld [vmem:[#allocation4 + $0x30] sm:$0xff]
    %v75 = vld [vmem:[#allocation4 + $0x38] sm:$0xff]
    %v76 = vld [vmem:[#allocation4 + $0x40] sm:$0xff]
    %v77 = vld [vmem:[#allocation4 + $0x48] sm:$0xff]
    %v78 = vld [vmem:[#allocation4 + $0x50] sm:$0xff]
    %v79 = vld [vmem:[#allocation4 + $0x58] sm:$0xff]
    %v80 = vld [vmem:[#allocation4 + $0x60] sm:$0xff]
    %v81 = vld [vmem:[#allocation4 + $0x68] sm:$0xff]
    %v82 = vld [vmem:[#allocation4 + $0x70] sm:$0xff]
    %v83 = vld [vmem:[#allocation4 + $0x78] sm:$0xff]
    %84 = vst [vmem:[#allocation2 + $0x8] sm:$0xff] %v68
    %85 = vst [vmem:[#allocation2 + $0x10] sm:$0xff] %v69
    %86 = vst [vmem:[#allocation2 + $0x20] sm:$0xff] %v70
    %87 = vst [vmem:[#allocation2 + $0x28] sm:$0xff] %v71
    %88 = vst [vmem:[#allocation2 + $0x38] sm:$0xff] %v72
    %89 = vst [vmem:[#allocation2 + $0x40] sm:$0xff] %v73
    %90 = vst [vmem:[#allocation2 + $0x50] sm:$0xff] %v74
    %91 = vst [vmem:[#allocation2 + $0x58] sm:$0xff] %v75
    %92 = vst [vmem:[#allocation2 + $0x68] sm:$0xff] %v76
    %93 = vst [vmem:[#allocation2 + $0x70] sm:$0xff] %v77
    %94 = vst [vmem:[#allocation2 + $0x80] sm:$0xff] %v78
    %95 = vst [vmem:[#allocation2 + $0x88] sm:$0xff] %v79
    %96 = vst [vmem:[#allocation2 + $0x98] sm:$0xff] %v80
    %97 = vst [vmem:[#allocation2 + $0xa0] sm:$0xff] %v81
    %98 = vst [vmem:[#allocation2 + $0xb0] sm:$0xff] %v82
    %99 = vst [vmem:[#allocation2 + $0xb8] sm:$0xff] %v83
    %100 = vst [vmem:[#allocation3] sm:$0xff] %v68
    %101 = vst [vmem:[#allocation3 + $0x8] sm:$0xff] %v69
    %102 = vst [vmem:[#allocation3 + $0x10] sm:$0xff] %v70
    %103 = vst [vmem:[#allocation3 + $0x18] sm:$0xff] %v71
    %104 = vst [vmem:[#allocation3 + $0x20] sm:$0xff] %v72
    %105 = vst [vmem:[#allocation3 + $0x28] sm:$0xff] %v73
    %106 = vst [vmem:[#allocation3 + $0x30] sm:$0xff] %v74
    %107 = vst [vmem:[#allocation3 + $0x38] sm:$0xff] %v75
    %108 = vst [vmem:[#allocation3 + $0x40] sm:$0xff] %v76
    %109 = vst [vmem:[#allocation3 + $0x48] sm:$0xff] %v77
    %110 = vst [vmem:[#allocation3 + $0x50] sm:$0xff] %v78
    %111 = vst [vmem:[#allocation3 + $0x58] sm:$0xff] %v79
    %112 = vst [vmem:[#allocation3 + $0x60] sm:$0xff] %v80
    %113 = vst [vmem:[#allocation3 + $0x68] sm:$0xff] %v81
    %114 = vst [vmem:[#allocation3 + $0x70] sm:$0xff] %v82
    %115 = vst [vmem:[#allocation3 + $0x78] sm:$0xff] %v83
    %v116 = vld [vmem:[#allocation9] sm:$0xff]
    %v117 = vld [vmem:[#allocation2 + $0x7] sm:$0xff]
    %v118 = vld [vmem:[#allocation2 + $0xf] sm:$0xff]
    %v119 = vld [vmem:[#allocation2 + $0x1f] sm:$0xff]
    %v120 = vld [vmem:[#allocation2 + $0x27] sm:$0xff]
    %v121 = vld [vmem:[#allocation2 + $0x37] sm:$0xff]
    %v122 = vld [vmem:[#allocation2 + $0x3f] sm:$0xff]
    %v123 = vld [vmem:[#allocation2 + $0x4f] sm:$0xff]
    %v124 = vld [vmem:[#allocation2 + $0x57] sm:$0xff]
    %v125 = vld [vmem:[#allocation2 + $0x67] sm:$0xff]
    %v126 = vld [vmem:[#allocation2 + $0x6f] sm:$0xff]
    %v127 = vld [vmem:[#allocation2 + $0x7f] sm:$0xff]
    %v128 = vld [vmem:[#allocation2 + $0x87] sm:$0xff]
    %v129 = vld [vmem:[#allocation2 + $0x97] sm:$0xff]
    %v130 = vld [vmem:[#allocation2 + $0x9f] sm:$0xff]
    %v131 = vld [vmem:[#allocation2 + $0xaf] sm:$0xff]
    %v132 = vld [vmem:[#allocation2 + $0xb7] sm:$0xff]
    %v133 = vpack.c.bf16 %v118, %v117
    %v134 = vpack.c.bf16 %v120, %v119
    %v135 = vpack.c.bf16 %v122, %v121
    %v136 = vpack.c.bf16 %v124, %v123
    %v137 = vpack.c.bf16 %v126, %v125
    %v138 = vpack.c.bf16 %v128, %v127
    %v139 = vpack.c.bf16 %v130, %v129
    %v140 = vpack.c.bf16 %v132, %v131
    %v141 = vld [vmem:[#allocation7] sm:$0xf]
    %v142 = vld [vmem:[#allocation7 + $0x4] sm:$0xf]
    %v143 = vld [vmem:[#allocation7 + $0x8] sm:$0xf]
    %v144 = vld [vmem:[#allocation7 + $0xc] sm:$0xf]
    %v145 = vld [vmem:[#allocation7 + $0x10] sm:$0xf]
    %v146 = vld [vmem:[#allocation7 + $0x14] sm:$0xf]
    %v147 = vld [vmem:[#allocation7 + $0x18] sm:$0xf]
    %v148 = vld [vmem:[#allocation7 + $0x1c] sm:$0xf]
    %v149 = vld [vmem:[#allocation7 + $0x20] sm:$0xf]
    %v150 = vld [vmem:[#allocation7 + $0x24] sm:$0xf]
    %v151 = vld [vmem:[#allocation7 + $0x28] sm:$0xf]
    %v152 = vld [vmem:[#allocation7 + $0x2c] sm:$0xf]
    %v153 = vld [vmem:[#allocation7 + $0x30] sm:$0xf]
    %v154 = vld [vmem:[#allocation7 + $0x34] sm:$0xf]
    %v155 = vld [vmem:[#allocation7 + $0x38] sm:$0xf]
    %v156 = vld [vmem:[#allocation7 + $0x3c] sm:$0xf]
    %v157 = vld [vmem:[#allocation2 + $0x8] sm:$0xff]
    %v158 = vld [vmem:[#allocation2 + $0x10] sm:$0xff]
    %v159 = vld [vmem:[#allocation2 + $0x20] sm:$0xff]
    %v160 = vld [vmem:[#allocation2 + $0x28] sm:$0xff]
    %v161 = vld [vmem:[#allocation2 + $0x38] sm:$0xff]
    %v162 = vld [vmem:[#allocation2 + $0x40] sm:$0xff]
    %v163 = vld [vmem:[#allocation2 + $0x50] sm:$0xff]
    %v164 = vld [vmem:[#allocation2 + $0x58] sm:$0xff]
    %v165 = vld [vmem:[#allocation2 + $0x68] sm:$0xff]
    %v166 = vld [vmem:[#allocation2 + $0x70] sm:$0xff]
    %v167 = vld [vmem:[#allocation2 + $0x80] sm:$0xff]
    %v168 = vld [vmem:[#allocation2 + $0x88] sm:$0xff]
    %v169 = vld [vmem:[#allocation2 + $0x98] sm:$0xff]
    %v170 = vld [vmem:[#allocation2 + $0xa0] sm:$0xff]
    %v171 = vld [vmem:[#allocation2 + $0xb0] sm:$0xff]
    %v172 = vld [vmem:[#allocation2 + $0xb8] sm:$0xff]
    %v173 = vpack.c.bf16 %v158, %v157
    %v174 = vpack.c.bf16 %v160, %v159
    %v175 = vpack.c.bf16 %v162, %v161
    %v176 = vpack.c.bf16 %v164, %v163
    %v177 = vpack.c.bf16 %v166, %v165
    %v178 = vpack.c.bf16 %v168, %v167
    %v179 = vpack.c.bf16 %v170, %v169
    %v180 = vpack.c.bf16 %v172, %v171
    %v181 = vld [vmem:[#allocation7 + $0x40] sm:$0xf]
    %v182 = vld [vmem:[#allocation7 + $0x44] sm:$0xf]
    %v183 = vld [vmem:[#allocation7 + $0x48] sm:$0xf]
    %v184 = vld [vmem:[#allocation7 + $0x4c] sm:$0xf]
    %v185 = vld [vmem:[#allocation7 + $0x50] sm:$0xf]
    %v186 = vld [vmem:[#allocation7 + $0x54] sm:$0xf]
    %v187 = vld [vmem:[#allocation7 + $0x58] sm:$0xf]
    %v188 = vld [vmem:[#allocation7 + $0x5c] sm:$0xf]
    %v189 = vld [vmem:[#allocation7 + $0x60] sm:$0xf]
    %v190 = vld [vmem:[#allocation7 + $0x64] sm:$0xf]
    %v191 = vld [vmem:[#allocation7 + $0x68] sm:$0xf]
    %v192 = vld [vmem:[#allocation7 + $0x6c] sm:$0xf]
    %v193 = vld [vmem:[#allocation7 + $0x70] sm:$0xf]
    %v194 = vld [vmem:[#allocation7 + $0x74] sm:$0xf]
    %v195 = vld [vmem:[#allocation7 + $0x78] sm:$0xf]
    %v196 = vld [vmem:[#allocation7 + $0x7c] sm:$0xf]
    %v213 = vunpack.c.l.b16 %v181
    %v214 = vunpack.c.l.b16 %v182
    %v215 = vunpack.c.l.b16 %v183
    %v216 = vunpack.c.l.b16 %v184
    %v217 = vunpack.c.l.b16 %v185
    %v218 = vunpack.c.l.b16 %v186
    %v219 = vunpack.c.l.b16 %v187
    %v220 = vunpack.c.l.b16 %v188
    %v221 = vunpack.c.l.b16 %v189
    %v222 = vunpack.c.l.b16 %v190
    %v223 = vunpack.c.l.b16 %v191
    %v224 = vunpack.c.l.b16 %v192
    %v225 = vunpack.c.l.b16 %v193
    %v226 = vunpack.c.l.b16 %v194
    %v227 = vunpack.c.l.b16 %v195
    %v228 = vunpack.c.l.b16 %v196
    %v229 = vpack.c.b16 %v214, %v213
    %v230 = vpack.c.b16 %v216, %v215
    %v231 = vpack.c.b16 %v218, %v217
    %v232 = vpack.c.b16 %v220, %v219
    %v233 = vpack.c.b16 %v222, %v221
    %v234 = vpack.c.b16 %v224, %v223
    %v235 = vpack.c.b16 %v226, %v225
    %v236 = vpack.c.b16 %v228, %v227
    %245 = vmatpush.bf16.msra.mxu0 %v236
    %246 = vmatpush.bf16.msra.mxu0 %v235
    %247 = vmatpush.bf16.msra.mxu0 %v234
    %248 = vmatpush.bf16.msra.mxu0 %v233
    %249 = vmatpush.bf16.msra.mxu0 %v232
    %250 = vmatpush.bf16.msra.mxu0 %v231
    %251 = vmatpush.bf16.msra.mxu0 %v230
    %252 = vmatpush.bf16.msra.mxu0 %v229
    %253 = vmatmul.bf16.gmra.mxu0 %v173
    %v254 = vpop.f32.mrf.mxu0
    %v255 = vadd.f32 0.0, %v254
    %v256 = vpop.f32.mrf.mxu0
    %v257 = vadd.f32 0.0, %v256
    %258 = vmatmul.bf16.gmra.mxu0 %v174
    %v259 = vpop.f32.mrf.mxu0
    %v260 = vadd.f32 0.0, %v259
    %v261 = vpop.f32.mrf.mxu0
    %v262 = vadd.f32 0.0, %v261
    %263 = vmatmul.bf16.gmra.mxu0 %v175
    %v264 = vpop.f32.mrf.mxu0
    %v265 = vadd.f32 0.0, %v264
    %v266 = vpop.f32.mrf.mxu0
    %v267 = vadd.f32 0.0, %v266
    %268 = vmatmul.bf16.gmra.mxu0 %v176
    %v269 = vpop.f32.mrf.mxu0
    %v270 = vadd.f32 0.0, %v269
    %v271 = vpop.f32.mrf.mxu0
    %v272 = vadd.f32 0.0, %v271
    %273 = vmatmul.bf16.gmra.mxu0 %v177
    %v274 = vpop.f32.mrf.mxu0
    %v275 = vadd.f32 0.0, %v274
    %v276 = vpop.f32.mrf.mxu0
    %v277 = vadd.f32 0.0, %v276
    %278 = vmatmul.bf16.gmra.mxu0 %v178
    %v279 = vpop.f32.mrf.mxu0
    %v280 = vadd.f32 0.0, %v279
    %v281 = vpop.f32.mrf.mxu0
    %v282 = vadd.f32 0.0, %v281
    %283 = vmatmul.bf16.gmra.mxu0 %v179
    %v284 = vpop.f32.mrf.mxu0
    %v285 = vadd.f32 0.0, %v284
    %v286 = vpop.f32.mrf.mxu0
    %v287 = vadd.f32 0.0, %v286
    %288 = vmatmul.bf16.gmra.mxu0 %v180
    %v289 = vpop.f32.mrf.mxu0
    %v290 = vadd.f32 0.0, %v289
    %v291 = vpop.f32.mrf.mxu0
    %v292 = vadd.f32 0.0, %v291
    %293 = vdwg.mxu0
    %v310 = vunpack.c.l.b16 %v141
    %v311 = vunpack.c.l.b16 %v142
    %v312 = vunpack.c.l.b16 %v143
    %v313 = vunpack.c.l.b16 %v144
    %v314 = vunpack.c.l.b16 %v145
    %v315 = vunpack.c.l.b16 %v146
    %v316 = vunpack.c.l.b16 %v147
    %v317 = vunpack.c.l.b16 %v148
    %v318 = vunpack.c.l.b16 %v149
    %v319 = vunpack.c.l.b16 %v150
    %v320 = vunpack.c.l.b16 %v151
    %v321 = vunpack.c.l.b16 %v152
    %v322 = vunpack.c.l.b16 %v153
    %v323 = vunpack.c.l.b16 %v154
    %v324 = vunpack.c.l.b16 %v155
    %v325 = vunpack.c.l.b16 %v156
    %v326 = vpack.c.b16 %v311, %v310
    %v327 = vpack.c.b16 %v313, %v312
    %v328 = vpack.c.b16 %v315, %v314
    %v329 = vpack.c.b16 %v317, %v316
    %v330 = vpack.c.b16 %v319, %v318
    %v331 = vpack.c.b16 %v321, %v320
    %v332 = vpack.c.b16 %v323, %v322
    %v333 = vpack.c.b16 %v325, %v324
    %342 = vmatpush.bf16.msra.mxu0 %v333
    %343 = vmatpush.bf16.msra.mxu0 %v332
    %344 = vmatpush.bf16.msra.mxu0 %v331
    %345 = vmatpush.bf16.msra.mxu0 %v330
    %346 = vmatpush.bf16.msra.mxu0 %v329
    %347 = vmatpush.bf16.msra.mxu0 %v328
    %348 = vmatpush.bf16.msra.mxu0 %v327
    %349 = vmatpush.bf16.msra.mxu0 %v326
    %350 = vmatmul.bf16.gmra.mxu0 %v133
    %v351 = vpop.f32.mrf.mxu0
    %v352 = vadd.f32 %v255, %v351
    %v353 = vpop.f32.mrf.mxu0
    %v354 = vadd.f32 %v257, %v353
    %355 = vmatmul.bf16.gmra.mxu0 %v134
    %v356 = vpop.f32.mrf.mxu0
    %v357 = vadd.f32 %v260, %v356
    %v358 = vpop.f32.mrf.mxu0
    %v359 = vadd.f32 %v262, %v358
    %360 = vmatmul.bf16.gmra.mxu0 %v135
    %v361 = vpop.f32.mrf.mxu0
    %v362 = vadd.f32 %v265, %v361
    %v363 = vpop.f32.mrf.mxu0
    %v364 = vadd.f32 %v267, %v363
    %365 = vmatmul.bf16.gmra.mxu0 %v136
    %v366 = vpop.f32.mrf.mxu0
    %v367 = vadd.f32 %v270, %v366
    %v368 = vpop.f32.mrf.mxu0
    %v369 = vadd.f32 %v272, %v368
    %370 = vmatmul.bf16.gmra.mxu0 %v137
    %v371 = vpop.f32.mrf.mxu0
    %v372 = vadd.f32 %v275, %v371
    %v373 = vpop.f32.mrf.mxu0
    %v374 = vadd.f32 %v277, %v373
    %375 = vmatmul.bf16.gmra.mxu0 %v138
    %v376 = vpop.f32.mrf.mxu0
    %v377 = vadd.f32 %v280, %v376
    %v378 = vpop.f32.mrf.mxu0
    %v379 = vadd.f32 %v282, %v378
    %380 = vmatmul.bf16.gmra.mxu0 %v139
    %v381 = vpop.f32.mrf.mxu0
    %v382 = vadd.f32 %v285, %v381
    %v383 = vpop.f32.mrf.mxu0
    %v384 = vadd.f32 %v287, %v383
    %385 = vmatmul.bf16.gmra.mxu0 %v140
    %v386 = vpop.f32.mrf.mxu0
    %v387 = vadd.f32 %v290, %v386
    %v388 = vpop.f32.mrf.mxu0
    %v389 = vadd.f32 %v292, %v388
    %390 = vdwg.mxu0
    %v391 = vperm.slane %v116, 0
    %v392 = vadd.f32 %v352, %v391
    %v393 = vadd.f32 %v354, %v391
    %v394 = vadd.f32 %v357, %v391
    %v395 = vadd.f32 %v359, %v391
    %v396 = vadd.f32 %v362, %v391
    %v397 = vadd.f32 %v364, %v391
    %v398 = vadd.f32 %v367, %v391
    %v399 = vadd.f32 %v369, %v391
    %v400 = vadd.f32 %v372, %v391
    %v401 = vadd.f32 %v374, %v391
    %v402 = vadd.f32 %v377, %v391
    %v403 = vadd.f32 %v379, %v391
    %v404 = vadd.f32 %v382, %v391
    %v405 = vadd.f32 %v384, %v391
    %v406 = vadd.f32 %v387, %v391
    %v407 = vadd.f32 %v389, %v391
    %v408 = vmax.f32 %v392, 0.0
    %v409 = vmax.f32 %v393, 0.0
    %v410 = vmax.f32 %v394, 0.0
    %v411 = vmax.f32 %v395, 0.0
    %v412 = vmax.f32 %v396, 0.0
    %v413 = vmax.f32 %v397, 0.0
    %v414 = vmax.f32 %v398, 0.0
    %v415 = vmax.f32 %v399, 0.0
    %v416 = vmax.f32 %v400, 0.0
    %v417 = vmax.f32 %v401, 0.0
    %v418 = vmax.f32 %v402, 0.0
    %v419 = vmax.f32 %v403, 0.0
    %v420 = vmax.f32 %v404, 0.0
    %v421 = vmax.f32 %v405, 0.0
    %v422 = vmax.f32 %v406, 0.0
    %v423 = vmax.f32 %v407, 0.0
    %424 = vst [vmem:[#allocation2 + $0x8] sm:$0xff] %v408
    %425 = vst [vmem:[#allocation2 + $0x10] sm:$0xff] %v409
    %426 = vst [vmem:[#allocation2 + $0x20] sm:$0xff] %v410
    %427 = vst [vmem:[#allocation2 + $0x28] sm:$0xff] %v411
    %428 = vst [vmem:[#allocation2 + $0x38] sm:$0xff] %v412
    %429 = vst [vmem:[#allocation2 + $0x40] sm:$0xff] %v413
    %430 = vst [vmem:[#allocation2 + $0x50] sm:$0xff] %v414
    %431 = vst [vmem:[#allocation2 + $0x58] sm:$0xff] %v415
    %432 = vst [vmem:[#allocation2 + $0x68] sm:$0xff] %v416
    %433 = vst [vmem:[#allocation2 + $0x70] sm:$0xff] %v417
    %434 = vst [vmem:[#allocation2 + $0x80] sm:$0xff] %v418
    %435 = vst [vmem:[#allocation2 + $0x88] sm:$0xff] %v419
    %436 = vst [vmem:[#allocation2 + $0x98] sm:$0xff] %v420
    %437 = vst [vmem:[#allocation2 + $0xa0] sm:$0xff] %v421
    %438 = vst [vmem:[#allocation2 + $0xb0] sm:$0xff] %v422
    %439 = vst [vmem:[#allocation2 + $0xb8] sm:$0xff] %v423
    %v440 = vld [vmem:[#allocation2 + $0x7] sm:$0xff]
    %v441 = vld [vmem:[#allocation2 + $0xf] sm:$0xff]
    %v442 = vld [vmem:[#allocation2 + $0x1f] sm:$0xff]
    %v443 = vld [vmem:[#allocation2 + $0x27] sm:$0xff]
    %v444 = vld [vmem:[#allocation2 + $0x37] sm:$0xff]
    %v445 = vld [vmem:[#allocation2 + $0x3f] sm:$0xff]
    %v446 = vld [vmem:[#allocation2 + $0x4f] sm:$0xff]
    %v447 = vld [vmem:[#allocation2 + $0x57] sm:$0xff]
    %v448 = vld [vmem:[#allocation2 + $0x67] sm:$0xff]
    %v449 = vld [vmem:[#allocation2 + $0x6f] sm:$0xff]
    %v450 = vld [vmem:[#allocation2 + $0x7f] sm:$0xff]
    %v451 = vld [vmem:[#allocation2 + $0x87] sm:$0xff]
    %v452 = vld [vmem:[#allocation2 + $0x97] sm:$0xff]
    %v453 = vld [vmem:[#allocation2 + $0x9f] sm:$0xff]
    %v454 = vld [vmem:[#allocation2 + $0xaf] sm:$0xff]
    %v455 = vld [vmem:[#allocation2 + $0xb7] sm:$0xff]
    %v456 = vpack.c.bf16 %v441, %v440
    %v457 = vpack.c.bf16 %v443, %v442
    %v458 = vpack.c.bf16 %v445, %v444
    %v459 = vpack.c.bf16 %v447, %v446
    %v460 = vpack.c.bf16 %v449, %v448
    %v461 = vpack.c.bf16 %v451, %v450
    %v462 = vpack.c.bf16 %v453, %v452
    %v463 = vpack.c.bf16 %v455, %v454
    %v464 = vld [vmem:[#allocation7 + $0x80] sm:$0xf]
    %v465 = vld [vmem:[#allocation7 + $0x84] sm:$0xf]
    %v466 = vld [vmem:[#allocation7 + $0x88] sm:$0xf]
    %v467 = vld [vmem:[#allocation7 + $0x8c] sm:$0xf]
    %v468 = vld [vmem:[#allocation7 + $0x90] sm:$0xf]
    %v469 = vld [vmem:[#allocation7 + $0x94] sm:$0xf]
    %v470 = vld [vmem:[#allocation7 + $0x98] sm:$0xf]
    %v471 = vld [vmem:[#allocation7 + $0x9c] sm:$0xf]
    %v472 = vld [vmem:[#allocation7 + $0xa0] sm:$0xf]
    %v473 = vld [vmem:[#allocation7 + $0xa4] sm:$0xf]
    %v474 = vld [vmem:[#allocation7 + $0xa8] sm:$0xf]
    %v475 = vld [vmem:[#allocation7 + $0xac] sm:$0xf]
    %v476 = vld [vmem:[#allocation7 + $0xb0] sm:$0xf]
    %v477 = vld [vmem:[#allocation7 + $0xb4] sm:$0xf]
    %v478 = vld [vmem:[#allocation7 + $0xb8] sm:$0xf]
    %v479 = vld [vmem:[#allocation7 + $0xbc] sm:$0xf]
    %v480 = vld [vmem:[#allocation2 + $0x8] sm:$0xff]
    %v481 = vld [vmem:[#allocation2 + $0x10] sm:$0xff]
    %v482 = vld [vmem:[#allocation2 + $0x20] sm:$0xff]
    %v483 = vld [vmem:[#allocation2 + $0x28] sm:$0xff]
    %v484 = vld [vmem:[#allocation2 + $0x38] sm:$0xff]
    %v485 = vld [vmem:[#allocation2 + $0x40] sm:$0xff]
    %v486 = vld [vmem:[#allocation2 + $0x50] sm:$0xff]
    %v487 = vld [vmem:[#allocation2 + $0x58] sm:$0xff]
    %v488 = vld [vmem:[#allocation2 + $0x68] sm:$0xff]
    %v489 = vld [vmem:[#allocation2 + $0x70] sm:$0xff]
    %v490 = vld [vmem:[#allocation2 + $0x80] sm:$0xff]
    %v491 = vld [vmem:[#allocation2 + $0x88] sm:$0xff]
    %v492 = vld [vmem:[#allocation2 + $0x98] sm:$0xff]
    %v493 = vld [vmem:[#allocation2 + $0xa0] sm:$0xff]
    %v494 = vld [vmem:[#allocation2 + $0xb0] sm:$0xff]
    %v495 = vld [vmem:[#allocation2 + $0xb8] sm:$0xff]
    %v496 = vpack.c.bf16 %v481, %v480
    %v497 = vpack.c.bf16 %v483, %v482
    %v498 = vpack.c.bf16 %v485, %v484
    %v499 = vpack.c.bf16 %v487, %v486
    %v500 = vpack.c.bf16 %v489, %v488
    %v501 = vpack.c.bf16 %v491, %v490
    %v502 = vpack.c.bf16 %v493, %v492
    %v503 = vpack.c.bf16 %v495, %v494
    %v504 = vld [vmem:[#allocation7 + $0xc0] sm:$0xf]
    %v505 = vld [vmem:[#allocation7 + $0xc4] sm:$0xf]
    %v506 = vld [vmem:[#allocation7 + $0xc8] sm:$0xf]
    %v507 = vld [vmem:[#allocation7 + $0xcc] sm:$0xf]
    %v508 = vld [vmem:[#allocation7 + $0xd0] sm:$0xf]
    %v509 = vld [vmem:[#allocation7 + $0xd4] sm:$0xf]
    %v510 = vld [vmem:[#allocation7 + $0xd8] sm:$0xf]
    %v511 = vld [vmem:[#allocation7 + $0xdc] sm:$0xf]
    %v512 = vld [vmem:[#allocation7 + $0xe0] sm:$0xf]
    %v513 = vld [vmem:[#allocation7 + $0xe4] sm:$0xf]
    %v514 = vld [vmem:[#allocation7 + $0xe8] sm:$0xf]
    %v515 = vld [vmem:[#allocation7 + $0xec] sm:$0xf]
    %v516 = vld [vmem:[#allocation7 + $0xf0] sm:$0xf]
    %v517 = vld [vmem:[#allocation7 + $0xf4] sm:$0xf]
    %v518 = vld [vmem:[#allocation7 + $0xf8] sm:$0xf]
    %v519 = vld [vmem:[#allocation7 + $0xfc] sm:$0xf]
    %v536 = vunpack.c.l.b16 %v504
    %v537 = vunpack.c.l.b16 %v505
    %v538 = vunpack.c.l.b16 %v506
    %v539 = vunpack.c.l.b16 %v507
    %v540 = vunpack.c.l.b16 %v508
    %v541 = vunpack.c.l.b16 %v509
    %v542 = vunpack.c.l.b16 %v510
    %v543 = vunpack.c.l.b16 %v511
    %v544 = vunpack.c.l.b16 %v512
    %v545 = vunpack.c.l.b16 %v513
    %v546 = vunpack.c.l.b16 %v514
    %v547 = vunpack.c.l.b16 %v515
    %v548 = vunpack.c.l.b16 %v516
    %v549 = vunpack.c.l.b16 %v517
    %v550 = vunpack.c.l.b16 %v518
    %v551 = vunpack.c.l.b16 %v519
    %v552 = vpack.c.b16 %v537, %v536
    %v553 = vpack.c.b16 %v539, %v538
    %v554 = vpack.c.b16 %v541, %v540
    %v555 = vpack.c.b16 %v543, %v542
    %v556 = vpack.c.b16 %v545, %v544
    %v557 = vpack.c.b16 %v547, %v546
    %v558 = vpack.c.b16 %v549, %v548
    %v559 = vpack.c.b16 %v551, %v550
    %568 = vmatpush.bf16.msra.mxu0 %v559
    %569 = vmatpush.bf16.msra.mxu0 %v558
    %570 = vmatpush.bf16.msra.mxu0 %v557
    %571 = vmatpush.bf16.msra.mxu0 %v556
    %572 = vmatpush.bf16.msra.mxu0 %v555
    %573 = vmatpush.bf16.msra.mxu0 %v554
    %574 = vmatpush.bf16.msra.mxu0 %v553
    %575 = vmatpush.bf16.msra.mxu0 %v552
    %576 = vmatmul.bf16.gmra.mxu0 %v496
    %v577 = vpop.f32.mrf.mxu0
    %v578 = vadd.f32 0.0, %v577
    %v579 = vpop.f32.mrf.mxu0
    %v580 = vadd.f32 0.0, %v579
    %581 = vmatmul.bf16.gmra.mxu0 %v497
    %v582 = vpop.f32.mrf.mxu0
    %v583 = vadd.f32 0.0, %v582
    %v584 = vpop.f32.mrf.mxu0
    %v585 = vadd.f32 0.0, %v584
    %586 = vmatmul.bf16.gmra.mxu0 %v498
    %v587 = vpop.f32.mrf.mxu0
    %v588 = vadd.f32 0.0, %v587
    %v589 = vpop.f32.mrf.mxu0
    %v590 = vadd.f32 0.0, %v589
    %591 = vmatmul.bf16.gmra.mxu0 %v499
    %v592 = vpop.f32.mrf.mxu0
    %v593 = vadd.f32 0.0, %v592
    %v594 = vpop.f32.mrf.mxu0
    %v595 = vadd.f32 0.0, %v594
    %596 = vmatmul.bf16.gmra.mxu0 %v500
    %v597 = vpop.f32.mrf.mxu0
    %v598 = vadd.f32 0.0, %v597
    %v599 = vpop.f32.mrf.mxu0
    %v600 = vadd.f32 0.0, %v599
    %601 = vmatmul.bf16.gmra.mxu0 %v501
    %v602 = vpop.f32.mrf.mxu0
    %v603 = vadd.f32 0.0, %v602
    %v604 = vpop.f32.mrf.mxu0
    %v605 = vadd.f32 0.0, %v604
    %606 = vmatmul.bf16.gmra.mxu0 %v502
    %v607 = vpop.f32.mrf.mxu0
    %v608 = vadd.f32 0.0, %v607
    %v609 = vpop.f32.mrf.mxu0
    %v610 = vadd.f32 0.0, %v609
    %611 = vmatmul.bf16.gmra.mxu0 %v503
    %v612 = vpop.f32.mrf.mxu0
    %v613 = vadd.f32 0.0, %v612
    %v614 = vpop.f32.mrf.mxu0
    %v615 = vadd.f32 0.0, %v614
    %616 = vdwg.mxu0
    %v633 = vunpack.c.l.b16 %v464
    %v634 = vunpack.c.l.b16 %v465
    %v635 = vunpack.c.l.b16 %v466
    %v636 = vunpack.c.l.b16 %v467
    %v637 = vunpack.c.l.b16 %v468
    %v638 = vunpack.c.l.b16 %v469
    %v639 = vunpack.c.l.b16 %v470
    %v640 = vunpack.c.l.b16 %v471
    %v641 = vunpack.c.l.b16 %v472
    %v642 = vunpack.c.l.b16 %v473
    %v643 = vunpack.c.l.b16 %v474
    %v644 = vunpack.c.l.b16 %v475
    %v645 = vunpack.c.l.b16 %v476
    %v646 = vunpack.c.l.b16 %v477
    %v647 = vunpack.c.l.b16 %v478
    %v648 = vunpack.c.l.b16 %v479
    %v649 = vpack.c.b16 %v634, %v633
    %v650 = vpack.c.b16 %v636, %v635
    %v651 = vpack.c.b16 %v638, %v637
    %v652 = vpack.c.b16 %v640, %v639
    %v653 = vpack.c.b16 %v642, %v641
    %v654 = vpack.c.b16 %v644, %v643
    %v655 = vpack.c.b16 %v646, %v645
    %v656 = vpack.c.b16 %v648, %v647
    %665 = vmatpush.bf16.msra.mxu0 %v656
    %666 = vmatpush.bf16.msra.mxu0 %v655
    %667 = vmatpush.bf16.msra.mxu0 %v654
    %668 = vmatpush.bf16.msra.mxu0 %v653
    %669 = vmatpush.bf16.msra.mxu0 %v652
    %670 = vmatpush.bf16.msra.mxu0 %v651
    %671 = vmatpush.bf16.msra.mxu0 %v650
    %672 = vmatpush.bf16.msra.mxu0 %v649
    %673 = vmatmul.bf16.gmra.mxu0 %v456
    %v674 = vpop.f32.mrf.mxu0
    %v675 = vadd.f32 %v578, %v674
    %v676 = vpop.f32.mrf.mxu0
    %v677 = vadd.f32 %v580, %v676
    %678 = vmatmul.bf16.gmra.mxu0 %v457
    %v679 = vpop.f32.mrf.mxu0
    %v680 = vadd.f32 %v583, %v679
    %v681 = vpop.f32.mrf.mxu0
    %v682 = vadd.f32 %v585, %v681
    %683 = vmatmul.bf16.gmra.mxu0 %v458
    %v684 = vpop.f32.mrf.mxu0
    %v685 = vadd.f32 %v588, %v684
    %v686 = vpop.f32.mrf.mxu0
    %v687 = vadd.f32 %v590, %v686
    %688 = vmatmul.bf16.gmra.mxu0 %v459
    %v689 = vpop.f32.mrf.mxu0
    %v690 = vadd.f32 %v593, %v689
    %v691 = vpop.f32.mrf.mxu0
    %v692 = vadd.f32 %v595, %v691
    %693 = vmatmul.bf16.gmra.mxu0 %v460
    %v694 = vpop.f32.mrf.mxu0
    %v695 = vadd.f32 %v598, %v694
    %v696 = vpop.f32.mrf.mxu0
    %v697 = vadd.f32 %v600, %v696
    %698 = vmatmul.bf16.gmra.mxu0 %v461
    %v699 = vpop.f32.mrf.mxu0
    %v700 = vadd.f32 %v603, %v699
    %v701 = vpop.f32.mrf.mxu0
    %v702 = vadd.f32 %v605, %v701
    %703 = vmatmul.bf16.gmra.mxu0 %v462
    %v704 = vpop.f32.mrf.mxu0
    %v705 = vadd.f32 %v608, %v704
    %v706 = vpop.f32.mrf.mxu0
    %v707 = vadd.f32 %v610, %v706
    %708 = vmatmul.bf16.gmra.mxu0 %v463
    %v709 = vpop.f32.mrf.mxu0
    %v710 = vadd.f32 %v613, %v709
    %v711 = vpop.f32.mrf.mxu0
    %v712 = vadd.f32 %v615, %v711
    %713 = vdwg.mxu0
    %v714 = vperm.slane %v116, 1
    %v715 = vadd.f32 %v675, %v714
    %v716 = vadd.f32 %v677, %v714
    %v717 = vadd.f32 %v680, %v714
    %v718 = vadd.f32 %v682, %v714
    %v719 = vadd.f32 %v685, %v714
    %v720 = vadd.f32 %v687, %v714
    %v721 = vadd.f32 %v690, %v714
    %v722 = vadd.f32 %v692, %v714
    %v723 = vadd.f32 %v695, %v714
    %v724 = vadd.f32 %v697, %v714
    %v725 = vadd.f32 %v700, %v714
    %v726 = vadd.f32 %v702, %v714
    %v727 = vadd.f32 %v705, %v714
    %v728 = vadd.f32 %v707, %v714
    %v729 = vadd.f32 %v710, %v714
    %v730 = vadd.f32 %v712, %v714
    %v731 = vmax.f32 %v715, 0.0
    %v732 = vmax.f32 %v716, 0.0
    %v733 = vmax.f32 %v717, 0.0
    %v734 = vmax.f32 %v718, 0.0
    %v735 = vmax.f32 %v719, 0.0
    %v736 = vmax.f32 %v720, 0.0
    %v737 = vmax.f32 %v721, 0.0
    %v738 = vmax.f32 %v722, 0.0
    %v739 = vmax.f32 %v723, 0.0
    %v740 = vmax.f32 %v724, 0.0
    %v741 = vmax.f32 %v725, 0.0
    %v742 = vmax.f32 %v726, 0.0
    %v743 = vmax.f32 %v727, 0.0
    %v744 = vmax.f32 %v728, 0.0
    %v745 = vmax.f32 %v729, 0.0
    %v746 = vmax.f32 %v730, 0.0
    %v747 = vld [vmem:[#allocation3] sm:$0xff]
    %v748 = vld [vmem:[#allocation3 + $0x8] sm:$0xff]
    %v749 = vld [vmem:[#allocation3 + $0x10] sm:$0xff]
    %v750 = vld [vmem:[#allocation3 + $0x18] sm:$0xff]
    %v751 = vld [vmem:[#allocation3 + $0x20] sm:$0xff]
    %v752 = vld [vmem:[#allocation3 + $0x28] sm:$0xff]
    %v753 = vld [vmem:[#allocation3 + $0x30] sm:$0xff]
    %v754 = vld [vmem:[#allocation3 + $0x38] sm:$0xff]
    %v755 = vld [vmem:[#allocation3 + $0x40] sm:$0xff]
    %v756 = vld [vmem:[#allocation3 + $0x48] sm:$0xff]
    %v757 = vld [vmem:[#allocation3 + $0x50] sm:$0xff]
    %v758 = vld [vmem:[#allocation3 + $0x58] sm:$0xff]
    %v759 = vld [vmem:[#allocation3 + $0x60] sm:$0xff]
    %v760 = vld [vmem:[#allocation3 + $0x68] sm:$0xff]
    %v761 = vld [vmem:[#allocation3 + $0x70] sm:$0xff]
    %v762 = vld [vmem:[#allocation3 + $0x78] sm:$0xff]
    %v763 = vld [vmem:[#allocation7 + $0x100] sm:$0xf]
    %v764 = vld [vmem:[#allocation7 + $0x104] sm:$0xf]
    %v765 = vld [vmem:[#allocation7 + $0x108] sm:$0xf]
    %v766 = vld [vmem:[#allocation7 + $0x10c] sm:$0xf]
    %v767 = vld [vmem:[#allocation7 + $0x110] sm:$0xf]
    %v768 = vld [vmem:[#allocation7 + $0x114] sm:$0xf]
    %v769 = vld [vmem:[#allocation7 + $0x118] sm:$0xf]
    %v770 = vld [vmem:[#allocation7 + $0x11c] sm:$0xf]
    %v771 = vld [vmem:[#allocation7 + $0x120] sm:$0xf]
    %v772 = vld [vmem:[#allocation7 + $0x124] sm:$0xf]
    %v773 = vld [vmem:[#allocation7 + $0x128] sm:$0xf]
    %v774 = vld [vmem:[#allocation7 + $0x12c] sm:$0xf]
    %v775 = vld [vmem:[#allocation7 + $0x130] sm:$0xf]
    %v776 = vld [vmem:[#allocation7 + $0x134] sm:$0xf]
    %v777 = vld [vmem:[#allocation7 + $0x138] sm:$0xf]
    %v778 = vld [vmem:[#allocation7 + $0x13c] sm:$0xf]
    %v779 = vpack.c.bf16 %v748, %v747
    %v780 = vpack.c.bf16 %v750, %v749
    %v781 = vpack.c.bf16 %v752, %v751
    %v782 = vpack.c.bf16 %v754, %v753
    %v783 = vpack.c.bf16 %v756, %v755
    %v784 = vpack.c.bf16 %v758, %v757
    %v785 = vpack.c.bf16 %v760, %v759
    %v786 = vpack.c.bf16 %v762, %v761
    %v787 = vperm.slane %v116, 2
    %v804 = vunpack.c.l.b16 %v763
    %v805 = vunpack.c.l.b16 %v764
    %v806 = vunpack.c.l.b16 %v765
    %v807 = vunpack.c.l.b16 %v766
    %v808 = vunpack.c.l.b16 %v767
    %v809 = vunpack.c.l.b16 %v768
    %v810 = vunpack.c.l.b16 %v769
    %v811 = vunpack.c.l.b16 %v770
    %v812 = vunpack.c.l.b16 %v771
    %v813 = vunpack.c.l.b16 %v772
    %v814 = vunpack.c.l.b16 %v773
    %v815 = vunpack.c.l.b16 %v774
    %v816 = vunpack.c.l.b16 %v775
    %v817 = vunpack.c.l.b16 %v776
    %v818 = vunpack.c.l.b16 %v777
    %v819 = vunpack.c.l.b16 %v778
    %v820 = vpack.c.b16 %v805, %v804
    %v821 = vpack.c.b16 %v807, %v806
    %v822 = vpack.c.b16 %v809, %v808
    %v823 = vpack.c.b16 %v811, %v810
    %v824 = vpack.c.b16 %v813, %v812
    %v825 = vpack.c.b16 %v815, %v814
    %v826 = vpack.c.b16 %v817, %v816
    %v827 = vpack.c.b16 %v819, %v818
    %836 = vmatpush.bf16.msra.mxu0 %v827
    %837 = vmatpush.bf16.msra.mxu0 %v826
    %838 = vmatpush.bf16.msra.mxu0 %v825
    %839 = vmatpush.bf16.msra.mxu0 %v824
    %840 = vmatpush.bf16.msra.mxu0 %v823
    %841 = vmatpush.bf16.msra.mxu0 %v822
    %842 = vmatpush.bf16.msra.mxu0 %v821
    %843 = vmatpush.bf16.msra.mxu0 %v820
    %844 = vmatmul.bf16.gmra.mxu0 %v779
    %v845 = vpop.f32.mrf.mxu0
    %v846 = vadd.f32 %v787, %v845
    %v847 = vpop.f32.mrf.mxu0
    %v848 = vadd.f32 %v787, %v847
    %849 = vmatmul.bf16.gmra.mxu0 %v780
    %v850 = vpop.f32.mrf.mxu0
    %v851 = vadd.f32 %v787, %v850
    %v852 = vpop.f32.mrf.mxu0
    %v853 = vadd.f32 %v787, %v852
    %854 = vmatmul.bf16.gmra.mxu0 %v781
    %v855 = vpop.f32.mrf.mxu0
    %v856 = vadd.f32 %v787, %v855
    %v857 = vpop.f32.mrf.mxu0
    %v858 = vadd.f32 %v787, %v857
    %859 = vmatmul.bf16.gmra.mxu0 %v782
    %v860 = vpop.f32.mrf.mxu0
    %v861 = vadd.f32 %v787, %v860
    %v862 = vpop.f32.mrf.mxu0
    %v863 = vadd.f32 %v787, %v862
    %864 = vmatmul.bf16.gmra.mxu0 %v783
    %v865 = vpop.f32.mrf.mxu0
    %v866 = vadd.f32 %v787, %v865
    %v867 = vpop.f32.mrf.mxu0
    %v868 = vadd.f32 %v787, %v867
    %869 = vmatmul.bf16.gmra.mxu0 %v784
    %v870 = vpop.f32.mrf.mxu0
    %v871 = vadd.f32 %v787, %v870
    %v872 = vpop.f32.mrf.mxu0
    %v873 = vadd.f32 %v787, %v872
    %874 = vmatmul.bf16.gmra.mxu0 %v785
    %v875 = vpop.f32.mrf.mxu0
    %v876 = vadd.f32 %v787, %v875
    %v877 = vpop.f32.mrf.mxu0
    %v878 = vadd.f32 %v787, %v877
    %879 = vmatmul.bf16.gmra.mxu0 %v786
    %v880 = vpop.f32.mrf.mxu0
    %v881 = vadd.f32 %v787, %v880
    %v882 = vpop.f32.mrf.mxu0
    %v883 = vadd.f32 %v787, %v882
    %884 = vdwg.mxu0
    %v885 = vadd.f32 %v731, %v846
    %v886 = vadd.f32 %v732, %v848
    %v887 = vadd.f32 %v733, %v851
    %v888 = vadd.f32 %v734, %v853
    %v889 = vadd.f32 %v735, %v856
    %v890 = vadd.f32 %v736, %v858
    %v891 = vadd.f32 %v737, %v861
    %v892 = vadd.f32 %v738, %v863
    %v893 = vadd.f32 %v739, %v866
    %v894 = vadd.f32 %v740, %v868
    %v895 = vadd.f32 %v741, %v871
    %v896 = vadd.f32 %v742, %v873
    %v897 = vadd.f32 %v743, %v876
    %v898 = vadd.f32 %v744, %v878
    %v899 = vadd.f32 %v745, %v881
    %v900 = vadd.f32 %v746, %v883
    %v901 = vmax.f32 %v885, 0.0
    %v902 = vmax.f32 %v886, 0.0
    %v903 = vmax.f32 %v887, 0.0
    %v904 = vmax.f32 %v888, 0.0
    %v905 = vmax.f32 %v889, 0.0
    %v906 = vmax.f32 %v890, 0.0
    %v907 = vmax.f32 %v891, 0.0
    %v908 = vmax.f32 %v892, 0.0
    %v909 = vmax.f32 %v893, 0.0
    %v910 = vmax.f32 %v894, 0.0
    %v911 = vmax.f32 %v895, 0.0
    %v912 = vmax.f32 %v896, 0.0
    %v913 = vmax.f32 %v897, 0.0
    %v914 = vmax.f32 %v898, 0.0
    %v915 = vmax.f32 %v899, 0.0
    %v916 = vmax.f32 %v900, 0.0
    %917 = vst [vmem:[#allocation2 + $0x8] sm:$0xff] %v901
    %918 = vst [vmem:[#allocation2 + $0x10] sm:$0xff] %v902
    %919 = vst [vmem:[#allocation2 + $0x20] sm:$0xff] %v903
    %920 = vst [vmem:[#allocation2 + $0x28] sm:$0xff] %v904
    %921 = vst [vmem:[#allocation2 + $0x38] sm:$0xff] %v905
    %922 = vst [vmem:[#allocation2 + $0x40] sm:$0xff] %v906
    %923 = vst [vmem:[#allocation2 + $0x50] sm:$0xff] %v907
    %924 = vst [vmem:[#allocation2 + $0x58] sm:$0xff] %v908
    %925 = vst [vmem:[#allocation2 + $0x68] sm:$0xff] %v909
    %926 = vst [vmem:[#allocation2 + $0x70] sm:$0xff] %v910
    %927 = vst [vmem:[#allocation2 + $0x80] sm:$0xff] %v911
    %928 = vst [vmem:[#allocation2 + $0x88] sm:$0xff] %v912
    %929 = vst [vmem:[#allocation2 + $0x98] sm:$0xff] %v913
    %930 = vst [vmem:[#allocation2 + $0xa0] sm:$0xff] %v914
    %931 = vst [vmem:[#allocation2 + $0xb0] sm:$0xff] %v915
    %932 = vst [vmem:[#allocation2 + $0xb8] sm:$0xff] %v916
    %933 = vst [vmem:[#allocation3] sm:$0xff] %v901
    %934 = vst [vmem:[#allocation3 + $0x8] sm:$0xff] %v902
    %935 = vst [vmem:[#allocation3 + $0x10] sm:$0xff] %v903
    %936 = vst [vmem:[#allocation3 + $0x18] sm:$0xff] %v904
    %937 = vst [vmem:[#allocation3 + $0x20] sm:$0xff] %v905
    %938 = vst [vmem:[#allocation3 + $0x28] sm:$0xff] %v906
    %939 = vst [vmem:[#allocation3 + $0x30] sm:$0xff] %v907
    %940 = vst [vmem:[#allocation3 + $0x38] sm:$0xff] %v908
    %941 = vst [vmem:[#allocation3 + $0x40] sm:$0xff] %v909
    %942 = vst [vmem:[#allocation3 + $0x48] sm:$0xff] %v910
    %943 = vst [vmem:[#allocation3 + $0x50] sm:$0xff] %v911
    %944 = vst [vmem:[#allocation3 + $0x58] sm:$0xff] %v912
    %945 = vst [vmem:[#allocation3 + $0x60] sm:$0xff] %v913
    %946 = vst [vmem:[#allocation3 + $0x68] sm:$0xff] %v914
    %947 = vst [vmem:[#allocation3 + $0x70] sm:$0xff] %v915
    %948 = vst [vmem:[#allocation3 + $0x78] sm:$0xff] %v916
    %v949 = vld [vmem:[#allocation2 + $0x6] sm:$0xff]
    %v950 = vld [vmem:[#allocation2 + $0xe] sm:$0xff]
    %v951 = vld [vmem:[#allocation2 + $0x1e] sm:$0xff]
    %v952 = vld [vmem:[#allocation2 + $0x26] sm:$0xff]
    %v953 = vld [vmem:[#allocation2 + $0x36] sm:$0xff]
    %v954 = vld [vmem:[#allocation2 + $0x3e] sm:$0xff]
    %v955 = vld [vmem:[#allocation2 + $0x4e] sm:$0xff]
    %v956 = vld [vmem:[#allocation2 + $0x56] sm:$0xff]
    %v957 = vld [vmem:[#allocation2 + $0x66] sm:$0xff]
    %v958 = vld [vmem:[#allocation2 + $0x6e] sm:$0xff]
    %v959 = vld [vmem:[#allocation2 + $0x7e] sm:$0xff]
    %v960 = vld [vmem:[#allocation2 + $0x86] sm:$0xff]
    %v961 = vld [vmem:[#allocation2 + $0x96] sm:$0xff]
    %v962 = vld [vmem:[#allocation2 + $0x9e] sm:$0xff]
    %v963 = vld [vmem:[#allocation2 + $0xae] sm:$0xff]
    %v964 = vld [vmem:[#allocation2 + $0xb6] sm:$0xff]
    %v965 = vpack.c.bf16 %v950, %v949
    %v966 = vpack.c.bf16 %v952, %v951
    %v967 = vpack.c.bf16 %v954, %v953
    %v968 = vpack.c.bf16 %v956, %v955
    %v969 = vpack.c.bf16 %v958, %v957
    %v970 = vpack.c.bf16 %v960, %v959
    %v971 = vpack.c.bf16 %v962, %v961
    %v972 = vpack.c.bf16 %v964, %v963
    %v973 = vld [vmem:[#allocation7 + $0x140] sm:$0xf]
    %v974 = vld [vmem:[#allocation7 + $0x144] sm:$0xf]
    %v975 = vld [vmem:[#allocation7 + $0x148] sm:$0xf]
    %v976 = vld [vmem:[#allocation7 + $0x14c] sm:$0xf]
    %v977 = vld [vmem:[#allocation7 + $0x150] sm:$0xf]
    %v978 = vld [vmem:[#allocation7 + $0x154] sm:$0xf]
    %v979 = vld [vmem:[#allocation7 + $0x158] sm:$0xf]
    %v980 = vld [vmem:[#allocation7 + $0x15c] sm:$0xf]
    %v981 = vld [vmem:[#allocation7 + $0x160] sm:$0xf]
    %v982 = vld [vmem:[#allocation7 + $0x164] sm:$0xf]
    %v983 = vld [vmem:[#allocation7 + $0x168] sm:$0xf]
    %v984 = vld [vmem:[#allocation7 + $0x16c] sm:$0xf]
    %v985 = vld [vmem:[#allocation7 + $0x170] sm:$0xf]
    %v986 = vld [vmem:[#allocation7 + $0x174] sm:$0xf]
    %v987 = vld [vmem:[#allocation7 + $0x178] sm:$0xf]
    %v988 = vld [vmem:[#allocation7 + $0x17c] sm:$0xf]
    %v989 = vld [vmem:[#allocation2 + $0x8] sm:$0xff]
    %v990 = vld [vmem:[#allocation2 + $0x10] sm:$0xff]
    %v991 = vld [vmem:[#allocation2 + $0x20] sm:$0xff]
    %v992 = vld [vmem:[#allocation2 + $0x28] sm:$0xff]
    %v993 = vld [vmem:[#allocation2 + $0x38] sm:$0xff]
    %v994 = vld [vmem:[#allocation2 + $0x40] sm:$0xff]
    %v995 = vld [vmem:[#allocation2 + $0x50] sm:$0xff]
    %v996 = vld [vmem:[#allocation2 + $0x58] sm:$0xff]
    %v997 = vld [vmem:[#allocation2 + $0x68] sm:$0xff]
    %v998 = vld [vmem:[#allocation2 + $0x70] sm:$0xff]
    %v999 = vld [vmem:[#allocation2 + $0x80] sm:$0xff]
    %v1000 = vld [vmem:[#allocation2 + $0x88] sm:$0xff]
    %v1001 = vld [vmem:[#allocation2 + $0x98] sm:$0xff]
    %v1002 = vld [vmem:[#allocation2 + $0xa0] sm:$0xff]
    %v1003 = vld [vmem:[#allocation2 + $0xb0] sm:$0xff]
    %v1004 = vld [vmem:[#allocation2 + $0xb8] sm:$0xff]
    %v1005 = vpack.c.bf16 %v990, %v989
    %v1006 = vpack.c.bf16 %v992, %v991
    %v1007 = vpack.c.bf16 %v994, %v993
    %v1008 = vpack.c.bf16 %v996, %v995
    %v1009 = vpack.c.bf16 %v998, %v997
    %v1010 = vpack.c.bf16 %v1000, %v999
    %v1011 = vpack.c.bf16 %v1002, %v1001
    %v1012 = vpack.c.bf16 %v1004, %v1003
    %v1013 = vld [vmem:[#allocation7 + $0x180] sm:$0xf]
    %v1014 = vld [vmem:[#allocation7 + $0x184] sm:$0xf]
    %v1015 = vld [vmem:[#allocation7 + $0x188] sm:$0xf]
    %v1016 = vld [vmem:[#allocation7 + $0x18c] sm:$0xf]
    %v1017 = vld [vmem:[#allocation7 + $0x190] sm:$0xf]
    %v1018 = vld [vmem:[#allocation7 + $0x194] sm:$0xf]
    %v1019 = vld [vmem:[#allocation7 + $0x198] sm:$0xf]
    %v1020 = vld [vmem:[#allocation7 + $0x19c] sm:$0xf]
    %v1021 = vld [vmem:[#allocation7 + $0x1a0] sm:$0xf]
    %v1022 = vld [vmem:[#allocation7 + $0x1a4] sm:$0xf]
    %v1023 = vld [vmem:[#allocation7 + $0x1a8] sm:$0xf]
    %v1024 = vld [vmem:[#allocation7 + $0x1ac] sm:$0xf]
    %v1025 = vld [vmem:[#allocation7 + $0x1b0] sm:$0xf]
    %v1026 = vld [vmem:[#allocation7 + $0x1b4] sm:$0xf]
    %v1027 = vld [vmem:[#allocation7 + $0x1b8] sm:$0xf]
    %v1028 = vld [vmem:[#allocation7 + $0x1bc] sm:$0xf]
    %v1045 = vunpack.c.l.b16 %v1013
    %v1046 = vunpack.c.l.b16 %v1014
    %v1047 = vunpack.c.l.b16 %v1015
    %v1048 = vunpack.c.l.b16 %v1016
    %v1049 = vunpack.c.l.b16 %v1017
    %v1050 = vunpack.c.l.b16 %v1018
    %v1051 = vunpack.c.l.b16 %v1019
    %v1052 = vunpack.c.l.b16 %v1020
    %v1053 = vunpack.c.l.b16 %v1021
    %v1054 = vunpack.c.l.b16 %v1022
    %v1055 = vunpack.c.l.b16 %v1023
    %v1056 = vunpack.c.l.b16 %v1024
    %v1057 = vunpack.c.l.b16 %v1025
    %v1058 = vunpack.c.l.b16 %v1026
    %v1059 = vunpack.c.l.b16 %v1027
    %v1060 = vunpack.c.l.b16 %v1028
    %v1061 = vpack.c.b16 %v1046, %v1045
    %v1062 = vpack.c.b16 %v1048, %v1047
    %v1063 = vpack.c.b16 %v1050, %v1049
    %v1064 = vpack.c.b16 %v1052, %v1051
    %v1065 = vpack.c.b16 %v1054, %v1053
    %v1066 = vpack.c.b16 %v1056, %v1055
    %v1067 = vpack.c.b16 %v1058, %v1057
    %v1068 = vpack.c.b16 %v1060, %v1059
    %1077 = vmatpush.bf16.msra.mxu0 %v1068
    %1078 = vmatpush.bf16.msra.mxu0 %v1067
    %1079 = vmatpush.bf16.msra.mxu0 %v1066
    %1080 = vmatpush.bf16.msra.mxu0 %v1065
    %1081 = vmatpush.bf16.msra.mxu0 %v1064
    %1082 = vmatpush.bf16.msra.mxu0 %v1063
    %1083 = vmatpush.bf16.msra.mxu0 %v1062
    %1084 = vmatpush.bf16.msra.mxu0 %v1061
    %1085 = vmatmul.bf16.gmra.mxu0 %v1005
    %v1086 = vpop.f32.mrf.mxu0
    %v1087 = vadd.f32 0.0, %v1086
    %v1088 = vpop.f32.mrf.mxu0
    %v1089 = vadd.f32 0.0, %v1088
    %1090 = vmatmul.bf16.gmra.mxu0 %v1006
    %v1091 = vpop.f32.mrf.mxu0
    %v1092 = vadd.f32 0.0, %v1091
    %v1093 = vpop.f32.mrf.mxu0
    %v1094 = vadd.f32 0.0, %v1093
    %1095 = vmatmul.bf16.gmra.mxu0 %v1007
    %v1096 = vpop.f32.mrf.mxu0
    %v1097 = vadd.f32 0.0, %v1096
    %v1098 = vpop.f32.mrf.mxu0
    %v1099 = vadd.f32 0.0, %v1098
    %1100 = vmatmul.bf16.gmra.mxu0 %v1008
    %v1101 = vpop.f32.mrf.mxu0
    %v1102 = vadd.f32 0.0, %v1101
    %v1103 = vpop.f32.mrf.mxu0
    %v1104 = vadd.f32 0.0, %v1103
    %1105 = vmatmul.bf16.gmra.mxu0 %v1009
    %v1106 = vpop.f32.mrf.mxu0
    %v1107 = vadd.f32 0.0, %v1106
    %v1108 = vpop.f32.mrf.mxu0
    %v1109 = vadd.f32 0.0, %v1108
    %1110 = vmatmul.bf16.gmra.mxu0 %v1010
    %v1111 = vpop.f32.mrf.mxu0
    %v1112 = vadd.f32 0.0, %v1111
    %v1113 = vpop.f32.mrf.mxu0
    %v1114 = vadd.f32 0.0, %v1113
    %1115 = vmatmul.bf16.gmra.mxu0 %v1011
    %v1116 = vpop.f32.mrf.mxu0
    %v1117 = vadd.f32 0.0, %v1116
    %v1118 = vpop.f32.mrf.mxu0
    %v1119 = vadd.f32 0.0, %v1118
    %1120 = vmatmul.bf16.gmra.mxu0 %v1012
    %v1121 = vpop.f32.mrf.mxu0
    %v1122 = vadd.f32 0.0, %v1121
    %v1123 = vpop.f32.mrf.mxu0
    %v1124 = vadd.f32 0.0, %v1123
    %1125 = vdwg.mxu0
    %v1142 = vunpack.c.l.b16 %v973
    %v1143 = vunpack.c.l.b16 %v974
    %v1144 = vunpack.c.l.b16 %v975
    %v1145 = vunpack.c.l.b16 %v976
    %v1146 = vunpack.c.l.b16 %v977
    %v1147 = vunpack.c.l.b16 %v978
    %v1148 = vunpack.c.l.b16 %v979
    %v1149 = vunpack.c.l.b16 %v980
    %v1150 = vunpack.c.l.b16 %v981
    %v1151 = vunpack.c.l.b16 %v982
    %v1152 = vunpack.c.l.b16 %v983
    %v1153 = vunpack.c.l.b16 %v984
    %v1154 = vunpack.c.l.b16 %v985
    %v1155 = vunpack.c.l.b16 %v986
    %v1156 = vunpack.c.l.b16 %v987
    %v1157 = vunpack.c.l.b16 %v988
    %v1158 = vpack.c.b16 %v1143, %v1142
    %v1159 = vpack.c.b16 %v1145, %v1144
    %v1160 = vpack.c.b16 %v1147, %v1146
    %v1161 = vpack.c.b16 %v1149, %v1148
    %v1162 = vpack.c.b16 %v1151, %v1150
    %v1163 = vpack.c.b16 %v1153, %v1152
    %v1164 = vpack.c.b16 %v1155, %v1154
    %v1165 = vpack.c.b16 %v1157, %v1156
    %1174 = vmatpush.bf16.msra.mxu0 %v1165
    %1175 = vmatpush.bf16.msra.mxu0 %v1164
    %1176 = vmatpush.bf16.msra.mxu0 %v1163
    %1177 = vmatpush.bf16.msra.mxu0 %v1162
    %1178 = vmatpush.bf16.msra.mxu0 %v1161
    %1179 = vmatpush.bf16.msra.mxu0 %v1160
    %1180 = vmatpush.bf16.msra.mxu0 %v1159
    %1181 = vmatpush.bf16.msra.mxu0 %v1158
    %1182 = vmatmul.bf16.gmra.mxu0 %v965
    %v1183 = vpop.f32.mrf.mxu0
    %v1184 = vadd.f32 %v1087, %v1183
    %v1185 = vpop.f32.mrf.mxu0
    %v1186 = vadd.f32 %v1089, %v1185
    %1187 = vmatmul.bf16.gmra.mxu0 %v966
    %v1188 = vpop.f32.mrf.mxu0
    %v1189 = vadd.f32 %v1092, %v1188
    %v1190 = vpop.f32.mrf.mxu0
    %v1191 = vadd.f32 %v1094, %v1190
    %1192 = vmatmul.bf16.gmra.mxu0 %v967
    %v1193 = vpop.f32.mrf.mxu0
    %v1194 = vadd.f32 %v1097, %v1193
    %v1195 = vpop.f32.mrf.mxu0
    %v1196 = vadd.f32 %v1099, %v1195
    %1197 = vmatmul.bf16.gmra.mxu0 %v968
    %v1198 = vpop.f32.mrf.mxu0
    %v1199 = vadd.f32 %v1102, %v1198
    %v1200 = vpop.f32.mrf.mxu0
    %v1201 = vadd.f32 %v1104, %v1200
    %1202 = vmatmul.bf16.gmra.mxu0 %v969
    %v1203 = vpop.f32.mrf.mxu0
    %v1204 = vadd.f32 %v1107, %v1203
    %v1205 = vpop.f32.mrf.mxu0
    %v1206 = vadd.f32 %v1109, %v1205
    %1207 = vmatmul.bf16.gmra.mxu0 %v970
    %v1208 = vpop.f32.mrf.mxu0
    %v1209 = vadd.f32 %v1112, %v1208
    %v1210 = vpop.f32.mrf.mxu0
    %v1211 = vadd.f32 %v1114, %v1210
    %1212 = vmatmul.bf16.gmra.mxu0 %v971
    %v1213 = vpop.f32.mrf.mxu0
    %v1214 = vadd.f32 %v1117, %v1213
    %v1215 = vpop.f32.mrf.mxu0
    %v1216 = vadd.f32 %v1119, %v1215
    %1217 = vmatmul.bf16.gmra.mxu0 %v972
    %v1218 = vpop.f32.mrf.mxu0
    %v1219 = vadd.f32 %v1122, %v1218
    %v1220 = vpop.f32.mrf.mxu0
    %v1221 = vadd.f32 %v1124, %v1220
    %1222 = vdwg.mxu0
    %v1223 = vperm.slane %v116, 3
    %v1224 = vadd.f32 %v1184, %v1223
    %v1225 = vadd.f32 %v1186, %v1223
    %v1226 = vadd.f32 %v1189, %v1223
    %v1227 = vadd.f32 %v1191, %v1223
    %v1228 = vadd.f32 %v1194, %v1223
    %v1229 = vadd.f32 %v1196, %v1223
    %v1230 = vadd.f32 %v1199, %v1223
    %v1231 = vadd.f32 %v1201, %v1223
    %v1232 = vadd.f32 %v1204, %v1223
    %v1233 = vadd.f32 %v1206, %v1223
    %v1234 = vadd.f32 %v1209, %v1223
    %v1235 = vadd.f32 %v1211, %v1223
    %v1236 = vadd.f32 %v1214, %v1223
    %v1237 = vadd.f32 %v1216, %v1223
    %v1238 = vadd.f32 %v1219, %v1223
    %v1239 = vadd.f32 %v1221, %v1223
    %v1240 = vmax.f32 %v1224, 0.0
    %v1241 = vmax.f32 %v1225, 0.0
    %v1242 = vmax.f32 %v1226, 0.0
    %v1243 = vmax.f32 %v1227, 0.0
    %v1244 = vmax.f32 %v1228, 0.0
    %v1245 = vmax.f32 %v1229, 0.0
    %v1246 = vmax.f32 %v1230, 0.0
    %v1247 = vmax.f32 %v1231, 0.0
    %v1248 = vmax.f32 %v1232, 0.0
    %v1249 = vmax.f32 %v1233, 0.0
    %v1250 = vmax.f32 %v1234, 0.0
    %v1251 = vmax.f32 %v1235, 0.0
    %v1252 = vmax.f32 %v1236, 0.0
    %v1253 = vmax.f32 %v1237, 0.0
    %v1254 = vmax.f32 %v1238, 0.0
    %v1255 = vmax.f32 %v1239, 0.0
    %1256 = vst [vmem:[#allocation2 + $0x8] sm:$0xff] %v1240
    %1257 = vst [vmem:[#allocation2 + $0x10] sm:$0xff] %v1241
    %1258 = vst [vmem:[#allocation2 + $0x20] sm:$0xff] %v1242
    %1259 = vst [vmem:[#allocation2 + $0x28] sm:$0xff] %v1243
    %1260 = vst [vmem:[#allocation2 + $0x38] sm:$0xff] %v1244
    %1261 = vst [vmem:[#allocation2 + $0x40] sm:$0xff] %v1245
    %1262 = vst [vmem:[#allocation2 + $0x50] sm:$0xff] %v1246
    %1263 = vst [vmem:[#allocation2 + $0x58] sm:$0xff] %v1247
    %1264 = vst [vmem:[#allocation2 + $0x68] sm:$0xff] %v1248
    %1265 = vst [vmem:[#allocation2 + $0x70] sm:$0xff] %v1249
    %1266 = vst [vmem:[#allocation2 + $0x80] sm:$0xff] %v1250
    %1267 = vst [vmem:[#allocation2 + $0x88] sm:$0xff] %v1251
    %1268 = vst [vmem:[#allocation2 + $0x98] sm:$0xff] %v1252
    %1269 = vst [vmem:[#allocation2 + $0xa0] sm:$0xff] %v1253
    %1270 = vst [vmem:[#allocation2 + $0xb0] sm:$0xff] %v1254
    %1271 = vst [vmem:[#allocation2 + $0xb8] sm:$0xff] %v1255
    %v1272 = vld [vmem:[#allocation2 + $0x6] sm:$0xff]
    %v1273 = vld [vmem:[#allocation2 + $0xe] sm:$0xff]
    %v1274 = vld [vmem:[#allocation2 + $0x1e] sm:$0xff]
    %v1275 = vld [vmem:[#allocation2 + $0x26] sm:$0xff]
    %v1276 = vld [vmem:[#allocation2 + $0x36] sm:$0xff]
    %v1277 = vld [vmem:[#allocation2 + $0x3e] sm:$0xff]
    %v1278 = vld [vmem:[#allocation2 + $0x4e] sm:$0xff]
    %v1279 = vld [vmem:[#allocation2 + $0x56] sm:$0xff]
    %v1280 = vld [vmem:[#allocation2 + $0x66] sm:$0xff]
    %v1281 = vld [vmem:[#allocation2 + $0x6e] sm:$0xff]
    %v1282 = vld [vmem:[#allocation2 + $0x7e] sm:$0xff]
    %v1283 = vld [vmem:[#allocation2 + $0x86] sm:$0xff]
    %v1284 = vld [vmem:[#allocation2 + $0x96] sm:$0xff]
    %v1285 = vld [vmem:[#allocation2 + $0x9e] sm:$0xff]
    %v1286 = vld [vmem:[#allocation2 + $0xae] sm:$0xff]
    %v1287 = vld [vmem:[#allocation2 + $0xb6] sm:$0xff]
    %v1288 = vpack.c.bf16 %v1273, %v1272
    %v1289 = vpack.c.bf16 %v1275, %v1274
    %v1290 = vpack.c.bf16 %v1277, %v1276
    %v1291 = vpack.c.bf16 %v1279, %v1278
    %v1292 = vpack.c.bf16 %v1281, %v1280
    %v1293 = vpack.c.bf16 %v1283, %v1282
    %v1294 = vpack.c.bf16 %v1285, %v1284
    %v1295 = vpack.c.bf16 %v1287, %v1286
    %v1296 = vld [vmem:[#allocation7 + $0x1c0] sm:$0xf]
    %v1297 = vld [vmem:[#allocation7 + $0x1c4] sm:$0xf]
    %v1298 = vld [vmem:[#allocation7 + $0x1c8] sm:$0xf]
    %v1299 = vld [vmem:[#allocation7 + $0x1cc] sm:$0xf]
    %v1300 = vld [vmem:[#allocation7 + $0x1d0] sm:$0xf]
    %v1301 = vld [vmem:[#allocation7 + $0x1d4] sm:$0xf]
    %v1302 = vld [vmem:[#allocation7 + $0x1d8] sm:$0xf]
    %v1303 = vld [vmem:[#allocation7 + $0x1dc] sm:$0xf]
    %v1304 = vld [vmem:[#allocation7 + $0x1e0] sm:$0xf]
    %v1305 = vld [vmem:[#allocation7 + $0x1e4] sm:$0xf]
    %v1306 = vld [vmem:[#allocation7 + $0x1e8] sm:$0xf]
    %v1307 = vld [vmem:[#allocation7 + $0x1ec] sm:$0xf]
    %v1308 = vld [vmem:[#allocation7 + $0x1f0] sm:$0xf]
    %v1309 = vld [vmem:[#allocation7 + $0x1f4] sm:$0xf]
    %v1310 = vld [vmem:[#allocation7 + $0x1f8] sm:$0xf]
    %v1311 = vld [vmem:[#allocation7 + $0x1fc] sm:$0xf]
    %v1312 = vld [vmem:[#allocation2 + $0x8] sm:$0xff]
    %v1313 = vld [vmem:[#allocation2 + $0x10] sm:$0xff]
    %v1314 = vld [vmem:[#allocation2 + $0x20] sm:$0xff]
    %v1315 = vld [vmem:[#allocation2 + $0x28] sm:$0xff]
    %v1316 = vld [vmem:[#allocation2 + $0x38] sm:$0xff]
    %v1317 = vld [vmem:[#allocation2 + $0x40] sm:$0xff]
    %v1318 = vld [vmem:[#allocation2 + $0x50] sm:$0xff]
    %v1319 = vld [vmem:[#allocation2 + $0x58] sm:$0xff]
    %v1320 = vld [vmem:[#allocation2 + $0x68] sm:$0xff]
    %v1321 = vld [vmem:[#allocation2 + $0x70] sm:$0xff]
    %v1322 = vld [vmem:[#allocation2 + $0x80] sm:$0xff]
    %v1323 = vld [vmem:[#allocation2 + $0x88] sm:$0xff]
    %v1324 = vld [vmem:[#allocation2 + $0x98] sm:$0xff]
    %v1325 = vld [vmem:[#allocation2 + $0xa0] sm:$0xff]
    %v1326 = vld [vmem:[#allocation2 + $0xb0] sm:$0xff]
    %v1327 = vld [vmem:[#allocation2 + $0xb8] sm:$0xff]
    %v1328 = vpack.c.bf16 %v1313, %v1312
    %v1329 = vpack.c.bf16 %v1315, %v1314
    %v1330 = vpack.c.bf16 %v1317, %v1316
    %v1331 = vpack.c.bf16 %v1319, %v1318
    %v1332 = vpack.c.bf16 %v1321, %v1320
    %v1333 = vpack.c.bf16 %v1323, %v1322
    %v1334 = vpack.c.bf16 %v1325, %v1324
    %v1335 = vpack.c.bf16 %v1327, %v1326
    %v1336 = vld [vmem:[#allocation7 + $0x200] sm:$0xf]
    %v1337 = vld [vmem:[#allocation7 + $0x204] sm:$0xf]
    %v1338 = vld [vmem:[#allocation7 + $0x208] sm:$0xf]
    %v1339 = vld [vmem:[#allocation7 + $0x20c] sm:$0xf]
    %v1340 = vld [vmem:[#allocation7 + $0x210] sm:$0xf]
    %v1341 = vld [vmem:[#allocation7 + $0x214] sm:$0xf]
    %v1342 = vld [vmem:[#allocation7 + $0x218] sm:$0xf]
    %v1343 = vld [vmem:[#allocation7 + $0x21c] sm:$0xf]
    %v1344 = vld [vmem:[#allocation7 + $0x220] sm:$0xf]
    %v1345 = vld [vmem:[#allocation7 + $0x224] sm:$0xf]
    %v1346 = vld [vmem:[#allocation7 + $0x228] sm:$0xf]
    %v1347 = vld [vmem:[#allocation7 + $0x22c] sm:$0xf]
    %v1348 = vld [vmem:[#allocation7 + $0x230] sm:$0xf]
    %v1349 = vld [vmem:[#allocation7 + $0x234] sm:$0xf]
    %v1350 = vld [vmem:[#allocation7 + $0x238] sm:$0xf]
    %v1351 = vld [vmem:[#allocation7 + $0x23c] sm:$0xf]
    %v1368 = vunpack.c.l.b16 %v1336
    %v1369 = vunpack.c.l.b16 %v1337
    %v1370 = vunpack.c.l.b16 %v1338
    %v1371 = vunpack.c.l.b16 %v1339
    %v1372 = vunpack.c.l.b16 %v1340
    %v1373 = vunpack.c.l.b16 %v1341
    %v1374 = vunpack.c.l.b16 %v1342
    %v1375 = vunpack.c.l.b16 %v1343
    %v1376 = vunpack.c.l.b16 %v1344
    %v1377 = vunpack.c.l.b16 %v1345
    %v1378 = vunpack.c.l.b16 %v1346
    %v1379 = vunpack.c.l.b16 %v1347
    %v1380 = vunpack.c.l.b16 %v1348
    %v1381 = vunpack.c.l.b16 %v1349
    %v1382 = vunpack.c.l.b16 %v1350
    %v1383 = vunpack.c.l.b16 %v1351
    %v1384 = vpack.c.b16 %v1369, %v1368
    %v1385 = vpack.c.b16 %v1371, %v1370
    %v1386 = vpack.c.b16 %v1373, %v1372
    %v1387 = vpack.c.b16 %v1375, %v1374
    %v1388 = vpack.c.b16 %v1377, %v1376
    %v1389 = vpack.c.b16 %v1379, %v1378
    %v1390 = vpack.c.b16 %v1381, %v1380
    %v1391 = vpack.c.b16 %v1383, %v1382
    %1400 = vmatpush.bf16.msra.mxu0 %v1391
    %1401 = vmatpush.bf16.msra.mxu0 %v1390
    %1402 = vmatpush.bf16.msra.mxu0 %v1389
    %1403 = vmatpush.bf16.msra.mxu0 %v1388
    %1404 = vmatpush.bf16.msra.mxu0 %v1387
    %1405 = vmatpush.bf16.msra.mxu0 %v1386
    %1406 = vmatpush.bf16.msra.mxu0 %v1385
    %1407 = vmatpush.bf16.msra.mxu0 %v1384
    %1408 = vmatmul.bf16.gmra.mxu0 %v1328
    %v1409 = vpop.f32.mrf.mxu0
    %v1410 = vadd.f32 0.0, %v1409
    %v1411 = vpop.f32.mrf.mxu0
    %v1412 = vadd.f32 0.0, %v1411
    %1413 = vmatmul.bf16.gmra.mxu0 %v1329
    %v1414 = vpop.f32.mrf.mxu0
    %v1415 = vadd.f32 0.0, %v1414
    %v1416 = vpop.f32.mrf.mxu0
    %v1417 = vadd.f32 0.0, %v1416
    %1418 = vmatmul.bf16.gmra.mxu0 %v1330
    %v1419 = vpop.f32.mrf.mxu0
    %v1420 = vadd.f32 0.0, %v1419
    %v1421 = vpop.f32.mrf.mxu0
    %v1422 = vadd.f32 0.0, %v1421
    %1423 = vmatmul.bf16.gmra.mxu0 %v1331
    %v1424 = vpop.f32.mrf.mxu0
    %v1425 = vadd.f32 0.0, %v1424
    %v1426 = vpop.f32.mrf.mxu0
    %v1427 = vadd.f32 0.0, %v1426
    %1428 = vmatmul.bf16.gmra.mxu0 %v1332
    %v1429 = vpop.f32.mrf.mxu0
    %v1430 = vadd.f32 0.0, %v1429
    %v1431 = vpop.f32.mrf.mxu0
    %v1432 = vadd.f32 0.0, %v1431
    %1433 = vmatmul.bf16.gmra.mxu0 %v1333
    %v1434 = vpop.f32.mrf.mxu0
    %v1435 = vadd.f32 0.0, %v1434
    %v1436 = vpop.f32.mrf.mxu0
    %v1437 = vadd.f32 0.0, %v1436
    %1438 = vmatmul.bf16.gmra.mxu0 %v1334
    %v1439 = vpop.f32.mrf.mxu0
    %v1440 = vadd.f32 0.0, %v1439
    %v1441 = vpop.f32.mrf.mxu0
    %v1442 = vadd.f32 0.0, %v1441
    %1443 = vmatmul.bf16.gmra.mxu0 %v1335
    %v1444 = vpop.f32.mrf.mxu0
    %v1445 = vadd.f32 0.0, %v1444
    %v1446 = vpop.f32.mrf.mxu0
    %v1447 = vadd.f32 0.0, %v1446
    %1448 = vdwg.mxu0
    %v1465 = vunpack.c.l.b16 %v1296
    %v1466 = vunpack.c.l.b16 %v1297
    %v1467 = vunpack.c.l.b16 %v1298
    %v1468 = vunpack.c.l.b16 %v1299
    %v1469 = vunpack.c.l.b16 %v1300
    %v1470 = vunpack.c.l.b16 %v1301
    %v1471 = vunpack.c.l.b16 %v1302
    %v1472 = vunpack.c.l.b16 %v1303
    %v1473 = vunpack.c.l.b16 %v1304
    %v1474 = vunpack.c.l.b16 %v1305
    %v1475 = vunpack.c.l.b16 %v1306
    %v1476 = vunpack.c.l.b16 %v1307
    %v1477 = vunpack.c.l.b16 %v1308
    %v1478 = vunpack.c.l.b16 %v1309
    %v1479 = vunpack.c.l.b16 %v1310
    %v1480 = vunpack.c.l.b16 %v1311
    %v1481 = vpack.c.b16 %v1466, %v1465
    %v1482 = vpack.c.b16 %v1468, %v1467
    %v1483 = vpack.c.b16 %v1470, %v1469
    %v1484 = vpack.c.b16 %v1472, %v1471
    %v1485 = vpack.c.b16 %v1474, %v1473
    %v1486 = vpack.c.b16 %v1476, %v1475
    %v1487 = vpack.c.b16 %v1478, %v1477
    %v1488 = vpack.c.b16 %v1480, %v1479
    %1497 = vmatpush.bf16.msra.mxu0 %v1488
    %1498 = vmatpush.bf16.msra.mxu0 %v1487
    %1499 = vmatpush.bf16.msra.mxu0 %v1486
    %1500 = vmatpush.bf16.msra.mxu0 %v1485
    %1501 = vmatpush.bf16.msra.mxu0 %v1484
    %1502 = vmatpush.bf16.msra.mxu0 %v1483
    %1503 = vmatpush.bf16.msra.mxu0 %v1482
    %1504 = vmatpush.bf16.msra.mxu0 %v1481
    %1505 = vmatmul.bf16.gmra.mxu0 %v1288
    %v1506 = vpop.f32.mrf.mxu0
    %v1507 = vadd.f32 %v1410, %v1506
    %v1508 = vpop.f32.mrf.mxu0
    %v1509 = vadd.f32 %v1412, %v1508
    %1510 = vmatmul.bf16.gmra.mxu0 %v1289
    %v1511 = vpop.f32.mrf.mxu0
    %v1512 = vadd.f32 %v1415, %v1511
    %v1513 = vpop.f32.mrf.mxu0
    %v1514 = vadd.f32 %v1417, %v1513
    %1515 = vmatmul.bf16.gmra.mxu0 %v1290
    %v1516 = vpop.f32.mrf.mxu0
    %v1517 = vadd.f32 %v1420, %v1516
    %v1518 = vpop.f32.mrf.mxu0
    %v1519 = vadd.f32 %v1422, %v1518
    %1520 = vmatmul.bf16.gmra.mxu0 %v1291
    %v1521 = vpop.f32.mrf.mxu0
    %v1522 = vadd.f32 %v1425, %v1521
    %v1523 = vpop.f32.mrf.mxu0
    %v1524 = vadd.f32 %v1427, %v1523
    %1525 = vmatmul.bf16.gmra.mxu0 %v1292
    %v1526 = vpop.f32.mrf.mxu0
    %v1527 = vadd.f32 %v1430, %v1526
    %v1528 = vpop.f32.mrf.mxu0
    %v1529 = vadd.f32 %v1432, %v1528
    %1530 = vmatmul.bf16.gmra.mxu0 %v1293
    %v1531 = vpop.f32.mrf.mxu0
    %v1532 = vadd.f32 %v1435, %v1531
    %v1533 = vpop.f32.mrf.mxu0
    %v1534 = vadd.f32 %v1437, %v1533
    %1535 = vmatmul.bf16.gmra.mxu0 %v1294
    %v1536 = vpop.f32.mrf.mxu0
    %v1537 = vadd.f32 %v1440, %v1536
    %v1538 = vpop.f32.mrf.mxu0
    %v1539 = vadd.f32 %v1442, %v1538
    %1540 = vmatmul.bf16.gmra.mxu0 %v1295
    %v1541 = vpop.f32.mrf.mxu0
    %v1542 = vadd.f32 %v1445, %v1541
    %v1543 = vpop.f32.mrf.mxu0
    %v1544 = vadd.f32 %v1447, %v1543
    %1545 = vdwg.mxu0
    %v1546 = vperm.slane %v116, 4
    %v1547 = vadd.f32 %v1507, %v1546
    %v1548 = vadd.f32 %v1509, %v1546
    %v1549 = vadd.f32 %v1512, %v1546
    %v1550 = vadd.f32 %v1514, %v1546
    %v1551 = vadd.f32 %v1517, %v1546
    %v1552 = vadd.f32 %v1519, %v1546
    %v1553 = vadd.f32 %v1522, %v1546
    %v1554 = vadd.f32 %v1524, %v1546
    %v1555 = vadd.f32 %v1527, %v1546
    %v1556 = vadd.f32 %v1529, %v1546
    %v1557 = vadd.f32 %v1532, %v1546
    %v1558 = vadd.f32 %v1534, %v1546
    %v1559 = vadd.f32 %v1537, %v1546
    %v1560 = vadd.f32 %v1539, %v1546
    %v1561 = vadd.f32 %v1542, %v1546
    %v1562 = vadd.f32 %v1544, %v1546
    %v1563 = vmax.f32 %v1547, 0.0
    %v1564 = vmax.f32 %v1548, 0.0
    %v1565 = vmax.f32 %v1549, 0.0
    %v1566 = vmax.f32 %v1550, 0.0
    %v1567 = vmax.f32 %v1551, 0.0
    %v1568 = vmax.f32 %v1552, 0.0
    %v1569 = vmax.f32 %v1553, 0.0
    %v1570 = vmax.f32 %v1554, 0.0
    %v1571 = vmax.f32 %v1555, 0.0
    %v1572 = vmax.f32 %v1556, 0.0
    %v1573 = vmax.f32 %v1557, 0.0
    %v1574 = vmax.f32 %v1558, 0.0
    %v1575 = vmax.f32 %v1559, 0.0
    %v1576 = vmax.f32 %v1560, 0.0
    %v1577 = vmax.f32 %v1561, 0.0
    %v1578 = vmax.f32 %v1562, 0.0
    %v1579 = vld [vmem:[#allocation3] sm:$0xff]
    %v1580 = vld [vmem:[#allocation3 + $0x8] sm:$0xff]
    %v1581 = vld [vmem:[#allocation3 + $0x10] sm:$0xff]
    %v1582 = vld [vmem:[#allocation3 + $0x18] sm:$0xff]
    %v1583 = vld [vmem:[#allocation3 + $0x20] sm:$0xff]
    %v1584 = vld [vmem:[#allocation3 + $0x28] sm:$0xff]
    %v1585 = vld [vmem:[#allocation3 + $0x30] sm:$0xff]
    %v1586 = vld [vmem:[#allocation3 + $0x38] sm:$0xff]
    %v1587 = vld [vmem:[#allocation3 + $0x40] sm:$0xff]
    %v1588 = vld [vmem:[#allocation3 + $0x48] sm:$0xff]
    %v1589 = vld [vmem:[#allocation3 + $0x50] sm:$0xff]
    %v1590 = vld [vmem:[#allocation3 + $0x58] sm:$0xff]
    %v1591 = vld [vmem:[#allocation3 + $0x60] sm:$0xff]
    %v1592 = vld [vmem:[#allocation3 + $0x68] sm:$0xff]
    %v1593 = vld [vmem:[#allocation3 + $0x70] sm:$0xff]
    %v1594 = vld [vmem:[#allocation3 + $0x78] sm:$0xff]
    %v1595 = vadd.f32 %v1563, %v1579
    %v1596 = vadd.f32 %v1564, %v1580
    %v1597 = vadd.f32 %v1565, %v1581
    %v1598 = vadd.f32 %v1566, %v1582
    %v1599 = vadd.f32 %v1567, %v1583
    %v1600 = vadd.f32 %v1568, %v1584
    %v1601 = vadd.f32 %v1569, %v1585
    %v1602 = vadd.f32 %v1570, %v1586
    %v1603 = vadd.f32 %v1571, %v1587
    %v1604 = vadd.f32 %v1572, %v1588
    %v1605 = vadd.f32 %v1573, %v1589
    %v1606 = vadd.f32 %v1574, %v1590
    %v1607 = vadd.f32 %v1575, %v1591
    %v1608 = vadd.f32 %v1576, %v1592
    %v1609 = vadd.f32 %v1577, %v1593
    %v1610 = vadd.f32 %v1578, %v1594
    %v1611 = vmax.f32 %v1595, 0.0
    %v1612 = vmax.f32 %v1596, 0.0
    %v1613 = vmax.f32 %v1597, 0.0
    %v1614 = vmax.f32 %v1598, 0.0
    %v1615 = vmax.f32 %v1599, 0.0
    %v1616 = vmax.f32 %v1600, 0.0
    %v1617 = vmax.f32 %v1601, 0.0
    %v1618 = vmax.f32 %v1602, 0.0
    %v1619 = vmax.f32 %v1603, 0.0
    %v1620 = vmax.f32 %v1604, 0.0
    %v1621 = vmax.f32 %v1605, 0.0
    %v1622 = vmax.f32 %v1606, 0.0
    %v1623 = vmax.f32 %v1607, 0.0
    %v1624 = vmax.f32 %v1608, 0.0
    %v1625 = vmax.f32 %v1609, 0.0
    %v1626 = vmax.f32 %v1610, 0.0
    %1627 = vst [vmem:[#allocation2 + $0x8] sm:$0xff] %v1611
    %1628 = vst [vmem:[#allocation2 + $0x10] sm:$0xff] %v1612
    %1629 = vst [vmem:[#allocation2 + $0x20] sm:$0xff] %v1613
    %1630 = vst [vmem:[#allocation2 + $0x28] sm:$0xff] %v1614
    %1631 = vst [vmem:[#allocation2 + $0x38] sm:$0xff] %v1615
    %1632 = vst [vmem:[#allocation2 + $0x40] sm:$0xff] %v1616
    %1633 = vst [vmem:[#allocation2 + $0x50] sm:$0xff] %v1617
    %1634 = vst [vmem:[#allocation2 + $0x58] sm:$0xff] %v1618
    %1635 = vst [vmem:[#allocation2 + $0x68] sm:$0xff] %v1619
    %1636 = vst [vmem:[#allocation2 + $0x70] sm:$0xff] %v1620
    %1637 = vst [vmem:[#allocation2 + $0x80] sm:$0xff] %v1621
    %1638 = vst [vmem:[#allocation2 + $0x88] sm:$0xff] %v1622
    %1639 = vst [vmem:[#allocation2 + $0x98] sm:$0xff] %v1623
    %1640 = vst [vmem:[#allocation2 + $0xa0] sm:$0xff] %v1624
    %1641 = vst [vmem:[#allocation2 + $0xb0] sm:$0xff] %v1625
    %1642 = vst [vmem:[#allocation2 + $0xb8] sm:$0xff] %v1626
    %1643 = vst [vmem:[#allocation3] sm:$0xff] %v1611
    %1644 = vst [vmem:[#allocation3 + $0x8] sm:$0xff] %v1612
    %1645 = vst [vmem:[#allocation3 + $0x10] sm:$0xff] %v1613
    %1646 = vst [vmem:[#allocation3 + $0x18] sm:$0xff] %v1614
    %1647 = vst [vmem:[#allocation3 + $0x20] sm:$0xff] %v1615
    %1648 = vst [vmem:[#allocation3 + $0x28] sm:$0xff] %v1616
    %1649 = vst [vmem:[#allocation3 + $0x30] sm:$0xff] %v1617
    %1650 = vst [vmem:[#allocation3 + $0x38] sm:$0xff] %v1618
    %1651 = vst [vmem:[#allocation3 + $0x40] sm:$0xff] %v1619
    %1652 = vst [vmem:[#allocation3 + $0x48] sm:$0xff] %v1620
    %1653 = vst [vmem:[#allocation3 + $0x50] sm:$0xff] %v1621
    %1654 = vst [vmem:[#allocation3 + $0x58] sm:$0xff] %v1622
    %1655 = vst [vmem:[#allocation3 + $0x60] sm:$0xff] %v1623
    %1656 = vst [vmem:[#allocation3 + $0x68] sm:$0xff] %v1624
    %1657 = vst [vmem:[#allocation3 + $0x70] sm:$0xff] %v1625
    %1658 = vst [vmem:[#allocation3 + $0x78] sm:$0xff] %v1626
    %v1659 = vld [vmem:[#allocation2 + $0x4] sm:$0xff]
    %v1660 = vld [vmem:[#allocation2 + $0xc] sm:$0xff]
    %v1661 = vld [vmem:[#allocation2 + $0x1c] sm:$0xff]
    %v1662 = vld [vmem:[#allocation2 + $0x24] sm:$0xff]
    %v1663 = vld [vmem:[#allocation2 + $0x34] sm:$0xff]
    %v1664 = vld [vmem:[#allocation2 + $0x3c] sm:$0xff]
    %v1665 = vld [vmem:[#allocation2 + $0x4c] sm:$0xff]
    %v1666 = vld [vmem:[#allocation2 + $0x54] sm:$0xff]
    %v1667 = vld [vmem:[#allocation2 + $0x64] sm:$0xff]
    %v1668 = vld [vmem:[#allocation2 + $0x6c] sm:$0xff]
    %v1669 = vld [vmem:[#allocation2 + $0x7c] sm:$0xff]
    %v1670 = vld [vmem:[#allocation2 + $0x84] sm:$0xff]
    %v1671 = vld [vmem:[#allocation2 + $0x94] sm:$0xff]
    %v1672 = vld [vmem:[#allocation2 + $0x9c] sm:$0xff]
    %v1673 = vld [vmem:[#allocation2 + $0xac] sm:$0xff]
    %v1674 = vld [vmem:[#allocation2 + $0xb4] sm:$0xff]
    %v1675 = vpack.c.bf16 %v1660, %v1659
    %v1676 = vpack.c.bf16 %v1662, %v1661
    %v1677 = vpack.c.bf16 %v1664, %v1663
    %v1678 = vpack.c.bf16 %v1666, %v1665
    %v1679 = vpack.c.bf16 %v1668, %v1667
    %v1680 = vpack.c.bf16 %v1670, %v1669
    %v1681 = vpack.c.bf16 %v1672, %v1671
    %v1682 = vpack.c.bf16 %v1674, %v1673
    %v1683 = vld [vmem:[#allocation7 + $0x240] sm:$0xf]
    %v1684 = vld [vmem:[#allocation7 + $0x244] sm:$0xf]
    %v1685 = vld [vmem:[#allocation7 + $0x248] sm:$0xf]
    %v1686 = vld [vmem:[#allocation7 + $0x24c] sm:$0xf]
    %v1687 = vld [vmem:[#allocation7 + $0x250] sm:$0xf]
    %v1688 = vld [vmem:[#allocation7 + $0x254] sm:$0xf]
    %v1689 = vld [vmem:[#allocation7 + $0x258] sm:$0xf]
    %v1690 = vld [vmem:[#allocation7 + $0x25c] sm:$0xf]
    %v1691 = vld [vmem:[#allocation7 + $0x260] sm:$0xf]
    %v1692 = vld [vmem:[#allocation7 + $0x264] sm:$0xf]
    %v1693 = vld [vmem:[#allocation7 + $0x268] sm:$0xf]
    %v1694 = vld [vmem:[#allocation7 + $0x26c] sm:$0xf]
    %v1695 = vld [vmem:[#allocation7 + $0x270] sm:$0xf]
    %v1696 = vld [vmem:[#allocation7 + $0x274] sm:$0xf]
    %v1697 = vld [vmem:[#allocation7 + $0x278] sm:$0xf]
    %v1698 = vld [vmem:[#allocation7 + $0x27c] sm:$0xf]
    %v1699 = vld [vmem:[#allocation2 + $0x8] sm:$0xff]
    %v1700 = vld [vmem:[#allocation2 + $0x10] sm:$0xff]
    %v1701 = vld [vmem:[#allocation2 + $0x20] sm:$0xff]
    %v1702 = vld [vmem:[#allocation2 + $0x28] sm:$0xff]
    %v1703 = vld [vmem:[#allocation2 + $0x38] sm:$0xff]
    %v1704 = vld [vmem:[#allocation2 + $0x40] sm:$0xff]
    %v1705 = vld [vmem:[#allocation2 + $0x50] sm:$0xff]
    %v1706 = vld [vmem:[#allocation2 + $0x58] sm:$0xff]
    %v1707 = vld [vmem:[#allocation2 + $0x68] sm:$0xff]
    %v1708 = vld [vmem:[#allocation2 + $0x70] sm:$0xff]
    %v1709 = vld [vmem:[#allocation2 + $0x80] sm:$0xff]
    %v1710 = vld [vmem:[#allocation2 + $0x88] sm:$0xff]
    %v1711 = vld [vmem:[#allocation2 + $0x98] sm:$0xff]
    %v1712 = vld [vmem:[#allocation2 + $0xa0] sm:$0xff]
    %v1713 = vld [vmem:[#allocation2 + $0xb0] sm:$0xff]
    %v1714 = vld [vmem:[#allocation2 + $0xb8] sm:$0xff]
    %v1715 = vpack.c.bf16 %v1700, %v1699
    %v1716 = vpack.c.bf16 %v1702, %v1701
    %v1717 = vpack.c.bf16 %v1704, %v1703
    %v1718 = vpack.c.bf16 %v1706, %v1705
    %v1719 = vpack.c.bf16 %v1708, %v1707
    %v1720 = vpack.c.bf16 %v1710, %v1709
    %v1721 = vpack.c.bf16 %v1712, %v1711
    %v1722 = vpack.c.bf16 %v1714, %v1713
    %v1723 = vld [vmem:[#allocation7 + $0x280] sm:$0xf]
    %v1724 = vld [vmem:[#allocation7 + $0x284] sm:$0xf]
    %v1725 = vld [vmem:[#allocation7 + $0x288] sm:$0xf]
    %v1726 = vld [vmem:[#allocation7 + $0x28c] sm:$0xf]
    %v1727 = vld [vmem:[#allocation7 + $0x290] sm:$0xf]
    %v1728 = vld [vmem:[#allocation7 + $0x294] sm:$0xf]
    %v1729 = vld [vmem:[#allocation7 + $0x298] sm:$0xf]
    %v1730 = vld [vmem:[#allocation7 + $0x29c] sm:$0xf]
    %v1731 = vld [vmem:[#allocation7 + $0x2a0] sm:$0xf]
    %v1732 = vld [vmem:[#allocation7 + $0x2a4] sm:$0xf]
    %v1733 = vld [vmem:[#allocation7 + $0x2a8] sm:$0xf]
    %v1734 = vld [vmem:[#allocation7 + $0x2ac] sm:$0xf]
    %v1735 = vld [vmem:[#allocation7 + $0x2b0] sm:$0xf]
    %v1736 = vld [vmem:[#allocation7 + $0x2b4] sm:$0xf]
    %v1737 = vld [vmem:[#allocation7 + $0x2b8] sm:$0xf]
    %v1738 = vld [vmem:[#allocation7 + $0x2bc] sm:$0xf]
    %v1755 = vunpack.c.l.b16 %v1723
    %v1756 = vunpack.c.l.b16 %v1724
    %v1757 = vunpack.c.l.b16 %v1725
    %v1758 = vunpack.c.l.b16 %v1726
    %v1759 = vunpack.c.l.b16 %v1727
    %v1760 = vunpack.c.l.b16 %v1728
    %v1761 = vunpack.c.l.b16 %v1729
    %v1762 = vunpack.c.l.b16 %v1730
    %v1763 = vunpack.c.l.b16 %v1731
    %v1764 = vunpack.c.l.b16 %v1732
    %v1765 = vunpack.c.l.b16 %v1733
    %v1766 = vunpack.c.l.b16 %v1734
    %v1767 = vunpack.c.l.b16 %v1735
    %v1768 = vunpack.c.l.b16 %v1736
    %v1769 = vunpack.c.l.b16 %v1737
    %v1770 = vunpack.c.l.b16 %v1738
    %v1771 = vpack.c.b16 %v1756, %v1755
    %v1772 = vpack.c.b16 %v1758, %v1757
    %v1773 = vpack.c.b16 %v1760, %v1759
    %v1774 = vpack.c.b16 %v1762, %v1761
    %v1775 = vpack.c.b16 %v1764, %v1763
    %v1776 = vpack.c.b16 %v1766, %v1765
    %v1777 = vpack.c.b16 %v1768, %v1767
    %v1778 = vpack.c.b16 %v1770, %v1769
    %1787 = vmatpush.bf16.msra.mxu0 %v1778
    %1788 = vmatpush.bf16.msra.mxu0 %v1777
    %1789 = vmatpush.bf16.msra.mxu0 %v1776
    %1790 = vmatpush.bf16.msra.mxu0 %v1775
    %1791 = vmatpush.bf16.msra.mxu0 %v1774
    %1792 = vmatpush.bf16.msra.mxu0 %v1773
    %1793 = vmatpush.bf16.msra.mxu0 %v1772
    %1794 = vmatpush.bf16.msra.mxu0 %v1771
    %1795 = vmatmul.bf16.gmra.mxu0 %v1715
    %v1796 = vpop.f32.mrf.mxu0
    %v1797 = vadd.f32 0.0, %v1796
    %v1798 = vpop.f32.mrf.mxu0
    %v1799 = vadd.f32 0.0, %v1798
    %1800 = vmatmul.bf16.gmra.mxu0 %v1716
    %v1801 = vpop.f32.mrf.mxu0
    %v1802 = vadd.f32 0.0, %v1801
    %v1803 = vpop.f32.mrf.mxu0
    %v1804 = vadd.f32 0.0, %v1803
    %1805 = vmatmul.bf16.gmra.mxu0 %v1717
    %v1806 = vpop.f32.mrf.mxu0
    %v1807 = vadd.f32 0.0, %v1806
    %v1808 = vpop.f32.mrf.mxu0
    %v1809 = vadd.f32 0.0, %v1808
    %1810 = vmatmul.bf16.gmra.mxu0 %v1718
    %v1811 = vpop.f32.mrf.mxu0
    %v1812 = vadd.f32 0.0, %v1811
    %v1813 = vpop.f32.mrf.mxu0
    %v1814 = vadd.f32 0.0, %v1813
    %1815 = vmatmul.bf16.gmra.mxu0 %v1719
    %v1816 = vpop.f32.mrf.mxu0
    %v1817 = vadd.f32 0.0, %v1816
    %v1818 = vpop.f32.mrf.mxu0
    %v1819 = vadd.f32 0.0, %v1818
    %1820 = vmatmul.bf16.gmra.mxu0 %v1720
    %v1821 = vpop.f32.mrf.mxu0
    %v1822 = vadd.f32 0.0, %v1821
    %v1823 = vpop.f32.mrf.mxu0
    %v1824 = vadd.f32 0.0, %v1823
    %1825 = vmatmul.bf16.gmra.mxu0 %v1721
    %v1826 = vpop.f32.mrf.mxu0
    %v1827 = vadd.f32 0.0, %v1826
    %v1828 = vpop.f32.mrf.mxu0
    %v1829 = vadd.f32 0.0, %v1828
    %1830 = vmatmul.bf16.gmra.mxu0 %v1722
    %v1831 = vpop.f32.mrf.mxu0
    %v1832 = vadd.f32 0.0, %v1831
    %v1833 = vpop.f32.mrf.mxu0
    %v1834 = vadd.f32 0.0, %v1833
    %1835 = vdwg.mxu0
    %v1852 = vunpack.c.l.b16 %v1683
    %v1853 = vunpack.c.l.b16 %v1684
    %v1854 = vunpack.c.l.b16 %v1685
    %v1855 = vunpack.c.l.b16 %v1686
    %v1856 = vunpack.c.l.b16 %v1687
    %v1857 = vunpack.c.l.b16 %v1688
    %v1858 = vunpack.c.l.b16 %v1689
    %v1859 = vunpack.c.l.b16 %v1690
    %v1860 = vunpack.c.l.b16 %v1691
    %v1861 = vunpack.c.l.b16 %v1692
    %v1862 = vunpack.c.l.b16 %v1693
    %v1863 = vunpack.c.l.b16 %v1694
    %v1864 = vunpack.c.l.b16 %v1695
    %v1865 = vunpack.c.l.b16 %v1696
    %v1866 = vunpack.c.l.b16 %v1697
    %v1867 = vunpack.c.l.b16 %v1698
    %v1868 = vpack.c.b16 %v1853, %v1852
    %v1869 = vpack.c.b16 %v1855, %v1854
    %v1870 = vpack.c.b16 %v1857, %v1856
    %v1871 = vpack.c.b16 %v1859, %v1858
    %v1872 = vpack.c.b16 %v1861, %v1860
    %v1873 = vpack.c.b16 %v1863, %v1862
    %v1874 = vpack.c.b16 %v1865, %v1864
    %v1875 = vpack.c.b16 %v1867, %v1866
    %1884 = vmatpush.bf16.msra.mxu0 %v1875
    %1885 = vmatpush.bf16.msra.mxu0 %v1874
    %1886 = vmatpush.bf16.msra.mxu0 %v1873
    %1887 = vmatpush.bf16.msra.mxu0 %v1872
    %1888 = vmatpush.bf16.msra.mxu0 %v1871
    %1889 = vmatpush.bf16.msra.mxu0 %v1870
    %1890 = vmatpush.bf16.msra.mxu0 %v1869
    %1891 = vmatpush.bf16.msra.mxu0 %v1868
    %1892 = vmatmul.bf16.gmra.mxu0 %v1675
    %v1893 = vpop.f32.mrf.mxu0
    %v1894 = vadd.f32 %v1797, %v1893
    %v1895 = vpop.f32.mrf.mxu0
    %v1896 = vadd.f32 %v1799, %v1895
    %1897 = vmatmul.bf16.gmra.mxu0 %v1676
    %v1898 = vpop.f32.mrf.mxu0
    %v1899 = vadd.f32 %v1802, %v1898
    %v1900 = vpop.f32.mrf.mxu0
    %v1901 = vadd.f32 %v1804, %v1900
    %1902 = vmatmul.bf16.gmra.mxu0 %v1677
    %v1903 = vpop.f32.mrf.mxu0
    %v1904 = vadd.f32 %v1807, %v1903
    %v1905 = vpop.f32.mrf.mxu0
    %v1906 = vadd.f32 %v1809, %v1905
    %1907 = vmatmul.bf16.gmra.mxu0 %v1678
    %v1908 = vpop.f32.mrf.mxu0
    %v1909 = vadd.f32 %v1812, %v1908
    %v1910 = vpop.f32.mrf.mxu0
    %v1911 = vadd.f32 %v1814, %v1910
    %1912 = vmatmul.bf16.gmra.mxu0 %v1679
    %v1913 = vpop.f32.mrf.mxu0
    %v1914 = vadd.f32 %v1817, %v1913
    %v1915 = vpop.f32.mrf.mxu0
    %v1916 = vadd.f32 %v1819, %v1915
    %1917 = vmatmul.bf16.gmra.mxu0 %v1680
    %v1918 = vpop.f32.mrf.mxu0
    %v1919 = vadd.f32 %v1822, %v1918
    %v1920 = vpop.f32.mrf.mxu0
    %v1921 = vadd.f32 %v1824, %v1920
    %1922 = vmatmul.bf16.gmra.mxu0 %v1681
    %v1923 = vpop.f32.mrf.mxu0
    %v1924 = vadd.f32 %v1827, %v1923
    %v1925 = vpop.f32.mrf.mxu0
    %v1926 = vadd.f32 %v1829, %v1925
    %1927 = vmatmul.bf16.gmra.mxu0 %v1682
    %v1928 = vpop.f32.mrf.mxu0
    %v1929 = vadd.f32 %v1832, %v1928
    %v1930 = vpop.f32.mrf.mxu0
    %v1931 = vadd.f32 %v1834, %v1930
    %1932 = vdwg.mxu0
    %v1933 = vperm.slane %v116, 5
    %v1934 = vadd.f32 %v1894, %v1933
    %v1935 = vadd.f32 %v1896, %v1933
    %v1936 = vadd.f32 %v1899, %v1933
    %v1937 = vadd.f32 %v1901, %v1933
    %v1938 = vadd.f32 %v1904, %v1933
    %v1939 = vadd.f32 %v1906, %v1933
    %v1940 = vadd.f32 %v1909, %v1933
    %v1941 = vadd.f32 %v1911, %v1933
    %v1942 = vadd.f32 %v1914, %v1933
    %v1943 = vadd.f32 %v1916, %v1933
    %v1944 = vadd.f32 %v1919, %v1933
    %v1945 = vadd.f32 %v1921, %v1933
    %v1946 = vadd.f32 %v1924, %v1933
    %v1947 = vadd.f32 %v1926, %v1933
    %v1948 = vadd.f32 %v1929, %v1933
    %v1949 = vadd.f32 %v1931, %v1933
    %v1950 = vmax.f32 %v1934, 0.0
    %v1951 = vmax.f32 %v1935, 0.0
    %v1952 = vmax.f32 %v1936, 0.0
    %v1953 = vmax.f32 %v1937, 0.0
    %v1954 = vmax.f32 %v1938, 0.0
    %v1955 = vmax.f32 %v1939, 0.0
    %v1956 = vmax.f32 %v1940, 0.0
    %v1957 = vmax.f32 %v1941, 0.0
    %v1958 = vmax.f32 %v1942, 0.0
    %v1959 = vmax.f32 %v1943, 0.0
    %v1960 = vmax.f32 %v1944, 0.0
    %v1961 = vmax.f32 %v1945, 0.0
    %v1962 = vmax.f32 %v1946, 0.0
    %v1963 = vmax.f32 %v1947, 0.0
    %v1964 = vmax.f32 %v1948, 0.0
    %v1965 = vmax.f32 %v1949, 0.0
    %1966 = vst [vmem:[#allocation2 + $0x8] sm:$0xff] %v1950
    %1967 = vst [vmem:[#allocation2 + $0x10] sm:$0xff] %v1951
    %1968 = vst [vmem:[#allocation2 + $0x20] sm:$0xff] %v1952
    %1969 = vst [vmem:[#allocation2 + $0x28] sm:$0xff] %v1953
    %1970 = vst [vmem:[#allocation2 + $0x38] sm:$0xff] %v1954
    %1971 = vst [vmem:[#allocation2 + $0x40] sm:$0xff] %v1955
    %1972 = vst [vmem:[#allocation2 + $0x50] sm:$0xff] %v1956
    %1973 = vst [vmem:[#allocation2 + $0x58] sm:$0xff] %v1957
    %1974 = vst [vmem:[#allocation2 + $0x68] sm:$0xff] %v1958
    %1975 = vst [vmem:[#allocation2 + $0x70] sm:$0xff] %v1959
    %1976 = vst [vmem:[#allocation2 + $0x80] sm:$0xff] %v1960
    %1977 = vst [vmem:[#allocation2 + $0x88] sm:$0xff] %v1961
    %1978 = vst [vmem:[#allocation2 + $0x98] sm:$0xff] %v1962
    %1979 = vst [vmem:[#allocation2 + $0xa0] sm:$0xff] %v1963
    %1980 = vst [vmem:[#allocation2 + $0xb0] sm:$0xff] %v1964
    %1981 = vst [vmem:[#allocation2 + $0xb8] sm:$0xff] %v1965
    %v1982 = vld [vmem:[#allocation2 + $0x4] sm:$0xff]
    %v1983 = vld [vmem:[#allocation2 + $0xc] sm:$0xff]
    %v1984 = vld [vmem:[#allocation2 + $0x1c] sm:$0xff]
    %v1985 = vld [vmem:[#allocation2 + $0x24] sm:$0xff]
    %v1986 = vld [vmem:[#allocation2 + $0x34] sm:$0xff]
    %v1987 = vld [vmem:[#allocation2 + $0x3c] sm:$0xff]
    %v1988 = vld [vmem:[#allocation2 + $0x4c] sm:$0xff]
    %v1989 = vld [vmem:[#allocation2 + $0x54] sm:$0xff]
    %v1990 = vld [vmem:[#allocation2 + $0x64] sm:$0xff]
    %v1991 = vld [vmem:[#allocation2 + $0x6c] sm:$0xff]
    %v1992 = vld [vmem:[#allocation2 + $0x7c] sm:$0xff]
    %v1993 = vld [vmem:[#allocation2 + $0x84] sm:$0xff]
    %v1994 = vld [vmem:[#allocation2 + $0x94] sm:$0xff]
    %v1995 = vld [vmem:[#allocation2 + $0x9c] sm:$0xff]
    %v1996 = vld [vmem:[#allocation2 + $0xac] sm:$0xff]
    %v1997 = vld [vmem:[#allocation2 + $0xb4] sm:$0xff]
    %v1998 = vpack.c.bf16 %v1983, %v1982
    %v1999 = vpack.c.bf16 %v1985, %v1984
    %v2000 = vpack.c.bf16 %v1987, %v1986
    %v2001 = vpack.c.bf16 %v1989, %v1988
    %v2002 = vpack.c.bf16 %v1991, %v1990
    %v2003 = vpack.c.bf16 %v1993, %v1992
    %v2004 = vpack.c.bf16 %v1995, %v1994
    %v2005 = vpack.c.bf16 %v1997, %v1996
    %v2006 = vld [vmem:[#allocation7 + $0x2c0] sm:$0xf]
    %v2007 = vld [vmem:[#allocation7 + $0x2c4] sm:$0xf]
    %v2008 = vld [vmem:[#allocation7 + $0x2c8] sm:$0xf]
    %v2009 = vld [vmem:[#allocation7 + $0x2cc] sm:$0xf]
    %v2010 = vld [vmem:[#allocation7 + $0x2d0] sm:$0xf]
    %v2011 = vld [vmem:[#allocation7 + $0x2d4] sm:$0xf]
    %v2012 = vld [vmem:[#allocation7 + $0x2d8] sm:$0xf]
    %v2013 = vld [vmem:[#allocation7 + $0x2dc] sm:$0xf]
    %v2014 = vld [vmem:[#allocation7 + $0x2e0] sm:$0xf]
    %v2015 = vld [vmem:[#allocation7 + $0x2e4] sm:$0xf]
    %v2016 = vld [vmem:[#allocation7 + $0x2e8] sm:$0xf]
    %v2017 = vld [vmem:[#allocation7 + $0x2ec] sm:$0xf]
    %v2018 = vld [vmem:[#allocation7 + $0x2f0] sm:$0xf]
    %v2019 = vld [vmem:[#allocation7 + $0x2f4] sm:$0xf]
    %v2020 = vld [vmem:[#allocation7 + $0x2f8] sm:$0xf]
    %v2021 = vld [vmem:[#allocation7 + $0x2fc] sm:$0xf]
    %v2022 = vld [vmem:[#allocation2 + $0x8] sm:$0xff]
    %v2023 = vld [vmem:[#allocation2 + $0x10] sm:$0xff]
    %v2024 = vld [vmem:[#allocation2 + $0x20] sm:$0xff]
    %v2025 = vld [vmem:[#allocation2 + $0x28] sm:$0xff]
    %v2026 = vld [vmem:[#allocation2 + $0x38] sm:$0xff]
    %v2027 = vld [vmem:[#allocation2 + $0x40] sm:$0xff]
    %v2028 = vld [vmem:[#allocation2 + $0x50] sm:$0xff]
    %v2029 = vld [vmem:[#allocation2 + $0x58] sm:$0xff]
    %v2030 = vld [vmem:[#allocation2 + $0x68] sm:$0xff]
    %v2031 = vld [vmem:[#allocation2 + $0x70] sm:$0xff]
    %v2032 = vld [vmem:[#allocation2 + $0x80] sm:$0xff]
    %v2033 = vld [vmem:[#allocation2 + $0x88] sm:$0xff]
    %v2034 = vld [vmem:[#allocation2 + $0x98] sm:$0xff]
    %v2035 = vld [vmem:[#allocation2 + $0xa0] sm:$0xff]
    %v2036 = vld [vmem:[#allocation2 + $0xb0] sm:$0xff]
    %v2037 = vld [vmem:[#allocation2 + $0xb8] sm:$0xff]
    %v2038 = vpack.c.bf16 %v2023, %v2022
    %v2039 = vpack.c.bf16 %v2025, %v2024
    %v2040 = vpack.c.bf16 %v2027, %v2026
    %v2041 = vpack.c.bf16 %v2029, %v2028
    %v2042 = vpack.c.bf16 %v2031, %v2030
    %v2043 = vpack.c.bf16 %v2033, %v2032
    %v2044 = vpack.c.bf16 %v2035, %v2034
    %v2045 = vpack.c.bf16 %v2037, %v2036
    %v2046 = vld [vmem:[#allocation7 + $0x300] sm:$0xf]
    %v2047 = vld [vmem:[#allocation7 + $0x304] sm:$0xf]
    %v2048 = vld [vmem:[#allocation7 + $0x308] sm:$0xf]
    %v2049 = vld [vmem:[#allocation7 + $0x30c] sm:$0xf]
    %v2050 = vld [vmem:[#allocation7 + $0x310] sm:$0xf]
    %v2051 = vld [vmem:[#allocation7 + $0x314] sm:$0xf]
    %v2052 = vld [vmem:[#allocation7 + $0x318] sm:$0xf]
    %v2053 = vld [vmem:[#allocation7 + $0x31c] sm:$0xf]
    %v2054 = vld [vmem:[#allocation7 + $0x320] sm:$0xf]
    %v2055 = vld [vmem:[#allocation7 + $0x324] sm:$0xf]
    %v2056 = vld [vmem:[#allocation7 + $0x328] sm:$0xf]
    %v2057 = vld [vmem:[#allocation7 + $0x32c] sm:$0xf]
    %v2058 = vld [vmem:[#allocation7 + $0x330] sm:$0xf]
    %v2059 = vld [vmem:[#allocation7 + $0x334] sm:$0xf]
    %v2060 = vld [vmem:[#allocation7 + $0x338] sm:$0xf]
    %v2061 = vld [vmem:[#allocation7 + $0x33c] sm:$0xf]
    %v2078 = vunpack.c.l.b16 %v2046
    %v2079 = vunpack.c.l.b16 %v2047
    %v2080 = vunpack.c.l.b16 %v2048
    %v2081 = vunpack.c.l.b16 %v2049
    %v2082 = vunpack.c.l.b16 %v2050
    %v2083 = vunpack.c.l.b16 %v2051
    %v2084 = vunpack.c.l.b16 %v2052
    %v2085 = vunpack.c.l.b16 %v2053
    %v2086 = vunpack.c.l.b16 %v2054
    %v2087 = vunpack.c.l.b16 %v2055
    %v2088 = vunpack.c.l.b16 %v2056
    %v2089 = vunpack.c.l.b16 %v2057
    %v2090 = vunpack.c.l.b16 %v2058
    %v2091 = vunpack.c.l.b16 %v2059
    %v2092 = vunpack.c.l.b16 %v2060
    %v2093 = vunpack.c.l.b16 %v2061
    %v2094 = vpack.c.b16 %v2079, %v2078
    %v2095 = vpack.c.b16 %v2081, %v2080
    %v2096 = vpack.c.b16 %v2083, %v2082
    %v2097 = vpack.c.b16 %v2085, %v2084
    %v2098 = vpack.c.b16 %v2087, %v2086
    %v2099 = vpack.c.b16 %v2089, %v2088
    %v2100 = vpack.c.b16 %v2091, %v2090
    %v2101 = vpack.c.b16 %v2093, %v2092
    %2110 = vmatpush.bf16.msra.mxu0 %v2101
    %2111 = vmatpush.bf16.msra.mxu0 %v2100
    %2112 = vmatpush.bf16.msra.mxu0 %v2099
    %2113 = vmatpush.bf16.msra.mxu0 %v2098
    %2114 = vmatpush.bf16.msra.mxu0 %v2097
    %2115 = vmatpush.bf16.msra.mxu0 %v2096
    %2116 = vmatpush.bf16.msra.mxu0 %v2095
    %2117 = vmatpush.bf16.msra.mxu0 %v2094
    %2118 = vmatmul.bf16.gmra.mxu0 %v2038
    %v2119 = vpop.f32.mrf.mxu0
    %v2120 = vpop.f32.mrf.mxu0
    %v2121 = vadd.f32 0.0, %v2120
    %2122 = vmatmul.bf16.gmra.mxu0 %v2039
    %v2123 = vpop.f32.mrf.mxu0
    %v2124 = vpop.f32.mrf.mxu0
    %v2125 = vadd.f32 0.0, %v2124
    %2126 = vmatmul.bf16.gmra.mxu0 %v2040
    %v2127 = vpop.f32.mrf.mxu0
    %v2128 = vpop.f32.mrf.mxu0
    %v2129 = vadd.f32 0.0, %v2128
    %2130 = vmatmul.bf16.gmra.mxu0 %v2041
    %v2131 = vpop.f32.mrf.mxu0
    %v2132 = vpop.f32.mrf.mxu0
    %v2133 = vadd.f32 0.0, %v2132
    %2134 = vmatmul.bf16.gmra.mxu0 %v2042
    %v2135 = vpop.f32.mrf.mxu0
    %v2136 = vpop.f32.mrf.mxu0
    %v2137 = vadd.f32 0.0, %v2136
    %2138 = vmatmul.bf16.gmra.mxu0 %v2043
    %v2139 = vpop.f32.mrf.mxu0
    %v2140 = vpop.f32.mrf.mxu0
    %v2141 = vadd.f32 0.0, %v2140
    %2142 = vmatmul.bf16.gmra.mxu0 %v2044
    %v2143 = vpop.f32.mrf.mxu0
    %v2144 = vpop.f32.mrf.mxu0
    %v2145 = vadd.f32 0.0, %v2144
    %2146 = vmatmul.bf16.gmra.mxu0 %v2045
    %v2147 = vpop.f32.mrf.mxu0
    %v2148 = vpop.f32.mrf.mxu0
    %v2149 = vadd.f32 0.0, %v2148
    %2150 = vdwg.mxu0
    %v2167 = vunpack.c.l.b16 %v2006
    %v2168 = vunpack.c.l.b16 %v2007
    %v2169 = vunpack.c.l.b16 %v2008
    %v2170 = vunpack.c.l.b16 %v2009
    %v2171 = vunpack.c.l.b16 %v2010
    %v2172 = vunpack.c.l.b16 %v2011
    %v2173 = vunpack.c.l.b16 %v2012
    %v2174 = vunpack.c.l.b16 %v2013
    %v2175 = vunpack.c.l.b16 %v2014
    %v2176 = vunpack.c.l.b16 %v2015
    %v2177 = vunpack.c.l.b16 %v2016
    %v2178 = vunpack.c.l.b16 %v2017
    %v2179 = vunpack.c.l.b16 %v2018
    %v2180 = vunpack.c.l.b16 %v2019
    %v2181 = vunpack.c.l.b16 %v2020
    %v2182 = vunpack.c.l.b16 %v2021
    %v2183 = vpack.c.b16 %v2168, %v2167
    %v2184 = vpack.c.b16 %v2170, %v2169
    %v2185 = vpack.c.b16 %v2172, %v2171
    %v2186 = vpack.c.b16 %v2174, %v2173
    %v2187 = vpack.c.b16 %v2176, %v2175
    %v2188 = vpack.c.b16 %v2178, %v2177
    %v2189 = vpack.c.b16 %v2180, %v2179
    %v2190 = vpack.c.b16 %v2182, %v2181
    %2199 = vmatpush.bf16.msra.mxu0 %v2190
    %2200 = vmatpush.bf16.msra.mxu0 %v2189
    %2201 = vmatpush.bf16.msra.mxu0 %v2188
    %2202 = vmatpush.bf16.msra.mxu0 %v2187
    %2203 = vmatpush.bf16.msra.mxu0 %v2186
    %2204 = vmatpush.bf16.msra.mxu0 %v2185
    %2205 = vmatpush.bf16.msra.mxu0 %v2184
    %2206 = vmatpush.bf16.msra.mxu0 %v2183
    %2207 = vmatmul.bf16.gmra.mxu0 %v1998
    %v2208 = vpop.f32.mrf.mxu0
    %v2209 = vpop.f32.mrf.mxu0
    %v2210 = vadd.f32 %v2121, %v2209
    %2211 = vmatmul.bf16.gmra.mxu0 %v1999
    %v2212 = vpop.f32.mrf.mxu0
    %v2213 = vpop.f32.mrf.mxu0
    %v2214 = vadd.f32 %v2125, %v2213
    %2215 = vmatmul.bf16.gmra.mxu0 %v2000
    %v2216 = vpop.f32.mrf.mxu0
    %v2217 = vpop.f32.mrf.mxu0
    %v2218 = vadd.f32 %v2129, %v2217
    %2219 = vmatmul.bf16.gmra.mxu0 %v2001
    %v2220 = vpop.f32.mrf.mxu0
    %v2221 = vpop.f32.mrf.mxu0
    %v2222 = vadd.f32 %v2133, %v2221
    %2223 = vmatmul.bf16.gmra.mxu0 %v2002
    %v2224 = vpop.f32.mrf.mxu0
    %v2225 = vpop.f32.mrf.mxu0
    %v2226 = vadd.f32 %v2137, %v2225
    %2227 = vmatmul.bf16.gmra.mxu0 %v2003
    %v2228 = vpop.f32.mrf.mxu0
    %v2229 = vpop.f32.mrf.mxu0
    %v2230 = vadd.f32 %v2141, %v2229
    %2231 = vmatmul.bf16.gmra.mxu0 %v2004
    %v2232 = vpop.f32.mrf.mxu0
    %v2233 = vpop.f32.mrf.mxu0
    %v2234 = vadd.f32 %v2145, %v2233
    %2235 = vmatmul.bf16.gmra.mxu0 %v2005
    %v2236 = vpop.f32.mrf.mxu0
    %v2237 = vpop.f32.mrf.mxu0
    %v2238 = vadd.f32 %v2149, %v2237
    %2239 = vdwg.mxu0
    %v2240 = vperm.slane %v116, 6
    %v2241 = vadd.f32 %v2210, %v2240
    %v2242 = vadd.f32 %v2214, %v2240
    %v2243 = vadd.f32 %v2218, %v2240
    %v2244 = vadd.f32 %v2222, %v2240
    %v2245 = vadd.f32 %v2226, %v2240
    %v2246 = vadd.f32 %v2230, %v2240
    %v2247 = vadd.f32 %v2234, %v2240
    %v2248 = vadd.f32 %v2238, %v2240
    %v2249 = vmax.f32 %v2241, 0.0
    %v2250 = vmax.f32 %v2242, 0.0
    %v2251 = vmax.f32 %v2243, 0.0
    %v2252 = vmax.f32 %v2244, 0.0
    %v2253 = vmax.f32 %v2245, 0.0
    %v2254 = vmax.f32 %v2246, 0.0
    %v2255 = vmax.f32 %v2247, 0.0
    %v2256 = vmax.f32 %v2248, 0.0
    %v2257 = vld [vmem:[#allocation3 + $0x8] sm:$0xff]
    %v2258 = vld [vmem:[#allocation3 + $0x18] sm:$0xff]
    %v2259 = vld [vmem:[#allocation3 + $0x28] sm:$0xff]
    %v2260 = vld [vmem:[#allocation3 + $0x38] sm:$0xff]
    %v2261 = vld [vmem:[#allocation3 + $0x48] sm:$0xff]
    %v2262 = vld [vmem:[#allocation3 + $0x58] sm:$0xff]
    %v2263 = vld [vmem:[#allocation3 + $0x68] sm:$0xff]
    %v2264 = vld [vmem:[#allocation3 + $0x78] sm:$0xff]
    %v2265 = vadd.f32 %v2249, %v2257
    %v2266 = vadd.f32 %v2250, %v2258
    %v2267 = vadd.f32 %v2251, %v2259
    %v2268 = vadd.f32 %v2252, %v2260
    %v2269 = vadd.f32 %v2253, %v2261
    %v2270 = vadd.f32 %v2254, %v2262
    %v2271 = vadd.f32 %v2255, %v2263
    %v2272 = vadd.f32 %v2256, %v2264
    %v2273 = vmax.f32 %v2265, 0.0
    %v2274 = vmax.f32 %v2266, 0.0
    %v2275 = vmax.f32 %v2267, 0.0
    %v2276 = vmax.f32 %v2268, 0.0
    %v2277 = vmax.f32 %v2269, 0.0
    %v2278 = vmax.f32 %v2270, 0.0
    %v2279 = vmax.f32 %v2271, 0.0
    %v2280 = vmax.f32 %v2272, 0.0
    %v2281 = vld [vmem:[#allocation7 + $0x340] sm:$0xf]
    %v2282 = vld [vmem:[#allocation7 + $0x344] sm:$0xf]
    %v2283 = vld [vmem:[#allocation7 + $0x348] sm:$0xf]
    %v2284 = vld [vmem:[#allocation7 + $0x34c] sm:$0xf]
    %v2285 = vld [vmem:[#allocation7 + $0x350] sm:$0xf]
    %v2286 = vld [vmem:[#allocation7 + $0x354] sm:$0xf]
    %v2287 = vld [vmem:[#allocation7 + $0x358] sm:$0xf]
    %v2288 = vld [vmem:[#allocation7 + $0x35c] sm:$0xf]
    %v2289 = vld [vmem:[#allocation7 + $0x360] sm:$0xf]
    %v2290 = vld [vmem:[#allocation7 + $0x364] sm:$0xf]
    %v2291 = vld [vmem:[#allocation7 + $0x368] sm:$0xf]
    %v2292 = vld [vmem:[#allocation7 + $0x36c] sm:$0xf]
    %v2293 = vld [vmem:[#allocation7 + $0x370] sm:$0xf]
    %v2294 = vld [vmem:[#allocation7 + $0x374] sm:$0xf]
    %v2295 = vld [vmem:[#allocation7 + $0x378] sm:$0xf]
    %v2296 = vld [vmem:[#allocation7 + $0x37c] sm:$0xf]
    %v2297 = vpack.c.bf16 %v2273, %v2273
    %v2298 = vpack.c.bf16 %v2274, %v2274
    %v2299 = vpack.c.bf16 %v2275, %v2275
    %v2300 = vpack.c.bf16 %v2276, %v2276
    %v2301 = vpack.c.bf16 %v2277, %v2277
    %v2302 = vpack.c.bf16 %v2278, %v2278
    %v2303 = vpack.c.bf16 %v2279, %v2279
    %v2304 = vpack.c.bf16 %v2280, %v2280
    %v2305 = vperm.slane %v116, 7
    %v2314 = vunpack.c.l.b16 %v2297
    %v2315 = vunpack.c.l.b16 %v2298
    %v2316 = vunpack.c.l.b16 %v2299
    %v2317 = vunpack.c.l.b16 %v2300
    %v2318 = vunpack.c.l.b16 %v2301
    %v2319 = vunpack.c.l.b16 %v2302
    %v2320 = vunpack.c.l.b16 %v2303
    %v2321 = vunpack.c.l.b16 %v2304
    %v2322 = vrot.slane %v2314, 7
    %v2323 = vrot.slane %v2315, 6
    %vm2324 = vcmask 1041409
    %v2325 = vsel %vm2324, %v2323, %v2322
    %v2326 = vrot.slane %v2316, 5
    %vm2327 = vcmask 1042434
    %v2328 = vsel %vm2327, %v2326, %v2325
    %v2329 = vrot.slane %v2317, 4
    %vm2330 = vcmask 1043459
    %v2331 = vsel %vm2330, %v2329, %v2328
    %v2332 = vrot.slane %v2318, 3
    %vm2333 = vcmask 1044484
    %v2334 = vsel %vm2333, %v2332, %v2331
    %v2335 = vrot.slane %v2319, 2
    %vm2336 = vcmask 1045509
    %v2337 = vsel %vm2336, %v2335, %v2334
    %v2338 = vrot.slane %v2320, 1
    %vm2339 = vcmask 1046534
    %v2340 = vsel %vm2339, %v2338, %v2337
    %vm2341 = vcmask 1047559
    %v2342 = vsel %vm2341, %v2321, %v2340
    %v2343 = vpack.c.b16 %v2342, %v2342
    %v2361 = vunpack.c.l.b16 %v2281
    %v2362 = vunpack.c.l.b16 %v2282
    %v2363 = vunpack.c.l.b16 %v2283
    %v2364 = vunpack.c.l.b16 %v2284
    %v2365 = vunpack.c.l.b16 %v2285
    %v2366 = vunpack.c.l.b16 %v2286
    %v2367 = vunpack.c.l.b16 %v2287
    %v2368 = vunpack.c.l.b16 %v2288
    %v2369 = vunpack.c.l.b16 %v2289
    %v2370 = vunpack.c.l.b16 %v2290
    %v2371 = vunpack.c.l.b16 %v2291
    %v2372 = vunpack.c.l.b16 %v2292
    %v2373 = vunpack.c.l.b16 %v2293
    %v2374 = vunpack.c.l.b16 %v2294
    %v2375 = vunpack.c.l.b16 %v2295
    %v2376 = vunpack.c.l.b16 %v2296
    %v2377 = vpack.c.b16 %v2362, %v2361
    %v2378 = vpack.c.b16 %v2364, %v2363
    %v2379 = vpack.c.b16 %v2366, %v2365
    %v2380 = vpack.c.b16 %v2368, %v2367
    %v2381 = vpack.c.b16 %v2370, %v2369
    %v2382 = vpack.c.b16 %v2372, %v2371
    %v2383 = vpack.c.b16 %v2374, %v2373
    %v2384 = vpack.c.b16 %v2376, %v2375
    %2393 = vmatpush.bf16.msra.mxu0 %v2384
    %2394 = vmatpush.bf16.msra.mxu0 %v2383
    %2395 = vmatpush.bf16.msra.mxu0 %v2382
    %2396 = vmatpush.bf16.msra.mxu0 %v2381
    %2397 = vmatpush.bf16.msra.mxu0 %v2380
    %2398 = vmatpush.bf16.msra.mxu0 %v2379
    %2399 = vmatpush.bf16.msra.mxu0 %v2378
    %2400 = vmatpush.bf16.msra.mxu0 %v2377
    %2401 = vmatmul.bf16.gmra.mxu0 %v2343
    %v2402 = vpop.f32.mrf.mxu0
    %v2403 = vadd.f32 %v2305, %v2402
    %v2404 = vpop.f32.mrf.mxu0
    %2405 = vdwg.mxu0
    %2406 = vst [vmem:[#allocation10] sm:$0xff] %v2403
    // Predicated region
    $region26: #{tpu_custom_call.1} parent=1 // pred_check
      _
    $region27: #{tpu_custom_call.1} parent=1 // pred_check_branch
      %2408 = sbr.rel (0) target = $region29
    $region28: #{tpu_custom_call.1} parent=1 // pred_region
      %2410 = vsyncadd [#allocation6], 0
      %s2412 = sshll.u32 [#allocation10], 4
      %s2413 = int_to_ptr.vmem [resolvable:$true] %s2412
      %s2414 = sshll.u32 %s3, 4
      %s2415 = int_to_ptr.hbm [resolvable:$true] %s2414
      %2417 = dma.vmem_to_hbm [thread:$0]  %s2413, 128, %s2415, [#allocation6]
    $region29: #{tpu_custom_call.1} parent=1 // pred_fallthru
      _
    // Predicated region
    $region30: #{tpu_custom_call.1} parent=1 // pred_check
      _
    $region31: #{tpu_custom_call.1} parent=1 // pred_check_branch
      %2419 = sbr.rel (0) target = $region33
    $region32: #{tpu_custom_call.1} parent=1 // pred_region
      %2421 = dma.done [#allocation6], 128
    $region33: #{tpu_custom_call.1} parent=1 // pred_fallthru
      _
    %2422 = vsyncpa [#allocation5], 1
    %2423 = vsyncpa [#allocation8], 1
    %2424 = vsyncpa [#allocation6], 1

// kernel: tpu_custom_call.1
$region0: #{tpu_custom_call.1}
  #allocation0 [shape = 'u32[]', space=smem, size = 0x4, offset = 0x4, fixed_abs, tag = 'smem constant byte address 0x4 - core index']
  #allocation1 [shape = 'u32[72,128]{1,0:T(1,128)}', space=vmem, size = 0x9000, scoped, tag = 'internal scratch']
  #allocation2 [shape = 'f32[8,24,128]{2,1,0:T(8,128)}', space=vmem, size = 0x18000, scoped, tag = 'scratch operand']
  #allocation3 [shape = 'f32[128,128]{1,0:T(8,128)}', space=vmem, size = 0x10000, scoped, tag = 'scratch operand']
  %s0 = inlined_call_operand.hbm [shape: f32[8,16,128], index: 0, kind: input, shape index: {}]
  %s1 = inlined_call_operand.hbm [shape: bf16[1792,128], index: 1, kind: input, shape index: {}]
  %s2 = inlined_call_operand.hbm [shape: f32[8,128], index: 2, kind: input, shape index: {}]
  %s3 = inlined_call_operand.hbm [shape: f32[8,128], index: 3, kind: output, shape index: {}]
  %s4 = sld [smem:[#allocation0]]
  $region34: #{tpu_custom_call.1} parent=0
    _
  %s6 = ssub.s32 1, %s4
  %s7 = scalar_select 0, %s6, %s4
  $region1: #{tpu_custom_call.1} parent=0
    #allocation4 [shape = 'u8[65536]{0}', space=vmem, size = 0x10000, scoped, tag = 'input window, operand 0, single buffered']
    #allocation5 [shape = 's32[1]{0}', space=sflag, size = 0x4, scoped, tag = 'scoped memory for tpu_custom_call.1']
    #allocation6 [shape = 's32[1]{0}', space=sflag, size = 0x4, scoped, tag = 'scoped memory for tpu_custom_call.1']
    #allocation7 [shape = 'u8[458752]{0}', space=vmem, size = 0x70000, scoped, tag = 'input window, operand 1, single buffered']
    #allocation8 [shape = 's32[1]{0}', space=sflag, size = 0x4, scoped, tag = 'scoped memory for tpu_custom_call.1']
    #allocation9 [shape = 'u8[4096]{0}', space=vmem, size = 0x1000, scoped, tag = 'input window, operand 2, single buffered']
    #allocation10 [shape = 'u8[4096]{0}', space=vmem, size = 0x1000, scoped, tag = 'output window, operand 0, single buffered']
    %8 = vsyncpa [#allocation5], 0
    %9 = vsyncpa [#allocation8], 0
    %10 = vsyncpa [#allocation6], 0
    // Predicated region
    $region2: #{tpu_custom_call.1} parent=1 // pred_check
      _
    $region3: #{tpu_custom_call.1} parent=1 // pred_check_branch
      %12 = sbr.rel (0) target = $region5
    $region4: #{tpu_custom_call.1} parent=1 // pred_region
      %14 = vsyncadd [#allocation5], 0
      %s15 = sshll.u32 %s0, 4
      %s16 = int_to_ptr.hbm [resolvable:$true] %s15
      %s17 = sshll.u32 [#allocation4], 4
      %s18 = int_to_ptr.vmem [resolvable:$true] %s17
      %23 = dma.hbm_to_vmem [thread:$0]  %s16, 2048, %s18, [#allocation5], 128, 128, 8
    $region5: #{tpu_custom_call.1} parent=1 // pred_fallthru
      _
    // Predicated region
    $region6: #{tpu_custom_call.1} parent=1 // pred_check
      _
    $region7: #{tpu_custom_call.1} parent=1 // pred_check_branch
      %25 = sbr.rel (0) target = $region9
    $region8: #{tpu_custom_call.1} parent=1 // pred_region
      %27 = vsyncadd [#allocation8], 0
      %s28 = sshll.u32 %s1, 4
      %s29 = int_to_ptr.hbm [resolvable:$true] %s28
      %s30 = sshll.u32 [#allocation7], 4
      %s31 = int_to_ptr.vmem [resolvable:$true] %s30
      %36 = dma.hbm_to_vmem [thread:$0]  %s29, 14336, %s31, [#allocation8], 64, 64, 4
    $region9: #{tpu_custom_call.1} parent=1 // pred_fallthru
      _
    // Predicated region
    $region10: #{tpu_custom_call.1} parent=1 // pred_check
      _
    $region11: #{tpu_custom_call.1} parent=1 // pred_check_branch
      %38 = sbr.rel (0) target = $region13
    $region12: #{tpu_custom_call.1} parent=1 // pred_region
      %40 = vsyncadd [#allocation8], 0
      %s42 = sshll.u32 %s2, 4
      %s43 = int_to_ptr.hbm [resolvable:$true] %s42
      %s44 = sshll.u32 [#allocation9], 4
      %s45 = int_to_ptr.vmem [resolvable:$true] %s44
      %47 = dma.hbm_to_vmem [thread:$0]  %s43, 128, %s45, [#allocation8]
    $region13: #{tpu_custom_call.1} parent=1 // pred_fallthru
      _
    // Predicated region
    $region14: #{tpu_custom_call.1} parent=1 // pred_check
      _
    $region15: #{tpu_custom_call.1} parent=1 // pred_check_branch
      %49 = sbr.rel (0) target = $region17
    $region16: #{tpu_custom_call.1} parent=1 // pred_region
      %51 = dma.done [#allocation5], 2048
    $region17: #{tpu_custom_call.1} parent=1 // pred_fallthru
      _
    // Predicated region
    $region18: #{tpu_custom_call.1} parent=1 // pred_check
      _
    $region19: #{tpu_custom_call.1} parent=1 // pred_check_branch
      %53 = sbr.rel (0) target = $region21
    $region20: #{tpu_custom_call.1} parent=1 // pred_region
      %55 = dma.done [#allocation8], 14336
    $region21: #{tpu_custom_call.1} parent=1 // pred_fallthru
      _
    // Predicated region
    $region22: #{tpu_custom_call.1} parent=1 // pred_check
      _
    $region23: #{tpu_custom_call.1} parent=1 // pred_check_branch
      %57 = sbr.rel (0) target = $region25
    $region24: #{tpu_custom_call.1} parent=1 // pred_region
      %59 = dma.done [#allocation8], 128
    $region25: #{tpu_custom_call.1} parent=1 // pred_fallthru
      _
    %60 = vst [vmem:[#allocation2] sm:$0xff] 0.0
    %61 = vst [vmem:[#allocation2 + $0x18] sm:$0xff] 0.0
    %62 = vst [vmem:[#allocation2 + $0x30] sm:$0xff] 0.0
    %63 = vst [vmem:[#allocation2 + $0x48] sm:$0xff] 0.0
    %64 = vst [vmem:[#allocation2 + $0x60] sm:$0xff] 0.0
    %65 = vst [vmem:[#allocation2 + $0x78] sm:$0xff] 0.0
    %66 = vst [vmem:[#allocation2 + $0x90] sm:$0xff] 0.0
    %67 = vst [vmem:[#allocation2 + $0xa8] sm:$0xff] 0.0
    %v68 = vld [vmem:[#allocation4] sm:$0xff]
    %v69 = vld [vmem:[#allocation4 + $0x8] sm:$0xff]
    %v70 = vld [vmem:[#allocation4 + $0x10] sm:$0xff]
    %v71 = vld [vmem:[#allocation4 + $0x18] sm:$0xff]
    %v72 = vld [vmem:[#allocation4 + $0x20] sm:$0xff]
    %v73 = vld [vmem:[#allocation4 + $0x28] sm:$0xff]
    %v74 = vld [vmem:[#allocation4 + $0x30] sm:$0xff]
    %v75 = vld [vmem:[#allocation4 + $0x38] sm:$0xff]
    %v76 = vld [vmem:[#allocation4 + $0x40] sm:$0xff]
    %v77 = vld [vmem:[#allocation4 + $0x48] sm:$0xff]
    %v78 = vld [vmem:[#allocation4 + $0x50] sm:$0xff]
    %v79 = vld [vmem:[#allocation4 + $0x58] sm:$0xff]
    %v80 = vld [vmem:[#allocation4 + $0x60] sm:$0xff]
    %v81 = vld [vmem:[#allocation4 + $0x68] sm:$0xff]
    %v82 = vld [vmem:[#allocation4 + $0x70] sm:$0xff]
    %v83 = vld [vmem:[#allocation4 + $0x78] sm:$0xff]
    %84 = vst [vmem:[#allocation2 + $0x8] sm:$0xff] %v68
    %85 = vst [vmem:[#allocation2 + $0x10] sm:$0xff] %v69
    %86 = vst [vmem:[#allocation2 + $0x20] sm:$0xff] %v70
    %87 = vst [vmem:[#allocation2 + $0x28] sm:$0xff] %v71
    %88 = vst [vmem:[#allocation2 + $0x38] sm:$0xff] %v72
    %89 = vst [vmem:[#allocation2 + $0x40] sm:$0xff] %v73
    %90 = vst [vmem:[#allocation2 + $0x50] sm:$0xff] %v74
    %91 = vst [vmem:[#allocation2 + $0x58] sm:$0xff] %v75
    %92 = vst [vmem:[#allocation2 + $0x68] sm:$0xff] %v76
    %93 = vst [vmem:[#allocation2 + $0x70] sm:$0xff] %v77
    %94 = vst [vmem:[#allocation2 + $0x80] sm:$0xff] %v78
    %95 = vst [vmem:[#allocation2 + $0x88] sm:$0xff] %v79
    %96 = vst [vmem:[#allocation2 + $0x98] sm:$0xff] %v80
    %97 = vst [vmem:[#allocation2 + $0xa0] sm:$0xff] %v81
    %98 = vst [vmem:[#allocation2 + $0xb0] sm:$0xff] %v82
    %99 = vst [vmem:[#allocation2 + $0xb8] sm:$0xff] %v83
    %100 = vst [vmem:[#allocation3] sm:$0xff] %v68
    %101 = vst [vmem:[#allocation3 + $0x8] sm:$0xff] %v69
    %102 = vst [vmem:[#allocation3 + $0x10] sm:$0xff] %v70
    %103 = vst [vmem:[#allocation3 + $0x18] sm:$0xff] %v71
    %104 = vst [vmem:[#allocation3 + $0x20] sm:$0xff] %v72
    %105 = vst [vmem:[#allocation3 + $0x28] sm:$0xff] %v73
    %106 = vst [vmem:[#allocation3 + $0x30] sm:$0xff] %v74
    %107 = vst [vmem:[#allocation3 + $0x38] sm:$0xff] %v75
    %108 = vst [vmem:[#allocation3 + $0x40] sm:$0xff] %v76
    %109 = vst [vmem:[#allocation3 + $0x48] sm:$0xff] %v77
    %110 = vst [vmem:[#allocation3 + $0x50] sm:$0xff] %v78
    %111 = vst [vmem:[#allocation3 + $0x58] sm:$0xff] %v79
    %112 = vst [vmem:[#allocation3 + $0x60] sm:$0xff] %v80
    %113 = vst [vmem:[#allocation3 + $0x68] sm:$0xff] %v81
    %114 = vst [vmem:[#allocation3 + $0x70] sm:$0xff] %v82
    %115 = vst [vmem:[#allocation3 + $0x78] sm:$0xff] %v83
    %v116 = vld [vmem:[#allocation9] sm:$0xff]
    %v117 = vld [vmem:[#allocation2 + $0x7] sm:$0xff]
    %v118 = vld [vmem:[#allocation2 + $0xf] sm:$0xff]
    %v119 = vld [vmem:[#allocation2 + $0x1f] sm:$0xff]
    %v120 = vld [vmem:[#allocation2 + $0x27] sm:$0xff]
    %v121 = vld [vmem:[#allocation2 + $0x37] sm:$0xff]
    %v122 = vld [vmem:[#allocation2 + $0x3f] sm:$0xff]
    %v123 = vld [vmem:[#allocation2 + $0x4f] sm:$0xff]
    %v124 = vld [vmem:[#allocation2 + $0x57] sm:$0xff]
    %v125 = vld [vmem:[#allocation2 + $0x67] sm:$0xff]
    %v126 = vld [vmem:[#allocation2 + $0x6f] sm:$0xff]
    %v127 = vld [vmem:[#allocation2 + $0x7f] sm:$0xff]
    %v128 = vld [vmem:[#allocation2 + $0x87] sm:$0xff]
    %v129 = vld [vmem:[#allocation2 + $0x97] sm:$0xff]
    %v130 = vld [vmem:[#allocation2 + $0x9f] sm:$0xff]
    %v131 = vld [vmem:[#allocation2 + $0xaf] sm:$0xff]
    %v132 = vld [vmem:[#allocation2 + $0xb7] sm:$0xff]
    %v133 = vpack.c.bf16 %v118, %v117
    %v134 = vpack.c.bf16 %v120, %v119
    %v135 = vpack.c.bf16 %v122, %v121
    %v136 = vpack.c.bf16 %v124, %v123
    %v137 = vpack.c.bf16 %v126, %v125
    %v138 = vpack.c.bf16 %v128, %v127
    %v139 = vpack.c.bf16 %v130, %v129
    %v140 = vpack.c.bf16 %v132, %v131
    %v141 = vld [vmem:[#allocation7] sm:$0xf]
    %v142 = vld [vmem:[#allocation7 + $0x4] sm:$0xf]
    %v143 = vld [vmem:[#allocation7 + $0x8] sm:$0xf]
    %v144 = vld [vmem:[#allocation7 + $0xc] sm:$0xf]
    %v145 = vld [vmem:[#allocation7 + $0x10] sm:$0xf]
    %v146 = vld [vmem:[#allocation7 + $0x14] sm:$0xf]
    %v147 = vld [vmem:[#allocation7 + $0x18] sm:$0xf]
    %v148 = vld [vmem:[#allocation7 + $0x1c] sm:$0xf]
    %v149 = vld [vmem:[#allocation7 + $0x20] sm:$0xf]
    %v150 = vld [vmem:[#allocation7 + $0x24] sm:$0xf]
    %v151 = vld [vmem:[#allocation7 + $0x28] sm:$0xf]
    %v152 = vld [vmem:[#allocation7 + $0x2c] sm:$0xf]
    %v153 = vld [vmem:[#allocation7 + $0x30] sm:$0xf]
    %v154 = vld [vmem:[#allocation7 + $0x34] sm:$0xf]
    %v155 = vld [vmem:[#allocation7 + $0x38] sm:$0xf]
    %v156 = vld [vmem:[#allocation7 + $0x3c] sm:$0xf]
    %v157 = vld [vmem:[#allocation2 + $0x8] sm:$0xff]
    %v158 = vld [vmem:[#allocation2 + $0x10] sm:$0xff]
    %v159 = vld [vmem:[#allocation2 + $0x20] sm:$0xff]
    %v160 = vld [vmem:[#allocation2 + $0x28] sm:$0xff]
    %v161 = vld [vmem:[#allocation2 + $0x38] sm:$0xff]
    %v162 = vld [vmem:[#allocation2 + $0x40] sm:$0xff]
    %v163 = vld [vmem:[#allocation2 + $0x50] sm:$0xff]
    %v164 = vld [vmem:[#allocation2 + $0x58] sm:$0xff]
    %v165 = vld [vmem:[#allocation2 + $0x68] sm:$0xff]
    %v166 = vld [vmem:[#allocation2 + $0x70] sm:$0xff]
    %v167 = vld [vmem:[#allocation2 + $0x80] sm:$0xff]
    %v168 = vld [vmem:[#allocation2 + $0x88] sm:$0xff]
    %v169 = vld [vmem:[#allocation2 + $0x98] sm:$0xff]
    %v170 = vld [vmem:[#allocation2 + $0xa0] sm:$0xff]
    %v171 = vld [vmem:[#allocation2 + $0xb0] sm:$0xff]
    %v172 = vld [vmem:[#allocation2 + $0xb8] sm:$0xff]
    %v173 = vpack.c.bf16 %v158, %v157
    %v174 = vpack.c.bf16 %v160, %v159
    %v175 = vpack.c.bf16 %v162, %v161
    %v176 = vpack.c.bf16 %v164, %v163
    %v177 = vpack.c.bf16 %v166, %v165
    %v178 = vpack.c.bf16 %v168, %v167
    %v179 = vpack.c.bf16 %v170, %v169
    %v180 = vpack.c.bf16 %v172, %v171
    %v181 = vld [vmem:[#allocation7 + $0x40] sm:$0xf]
    %v182 = vld [vmem:[#allocation7 + $0x44] sm:$0xf]
    %v183 = vld [vmem:[#allocation7 + $0x48] sm:$0xf]
    %v184 = vld [vmem:[#allocation7 + $0x4c] sm:$0xf]
    %v185 = vld [vmem:[#allocation7 + $0x50] sm:$0xf]
    %v186 = vld [vmem:[#allocation7 + $0x54] sm:$0xf]
    %v187 = vld [vmem:[#allocation7 + $0x58] sm:$0xf]
    %v188 = vld [vmem:[#allocation7 + $0x5c] sm:$0xf]
    %v189 = vld [vmem:[#allocation7 + $0x60] sm:$0xf]
    %v190 = vld [vmem:[#allocation7 + $0x64] sm:$0xf]
    %v191 = vld [vmem:[#allocation7 + $0x68] sm:$0xf]
    %v192 = vld [vmem:[#allocation7 + $0x6c] sm:$0xf]
    %v193 = vld [vmem:[#allocation7 + $0x70] sm:$0xf]
    %v194 = vld [vmem:[#allocation7 + $0x74] sm:$0xf]
    %v195 = vld [vmem:[#allocation7 + $0x78] sm:$0xf]
    %v196 = vld [vmem:[#allocation7 + $0x7c] sm:$0xf]
    %v213 = vunpack.c.l.b16 %v181
    %v214 = vunpack.c.l.b16 %v182
    %v215 = vunpack.c.l.b16 %v183
    %v216 = vunpack.c.l.b16 %v184
    %v217 = vunpack.c.l.b16 %v185
    %v218 = vunpack.c.l.b16 %v186
    %v219 = vunpack.c.l.b16 %v187
    %v220 = vunpack.c.l.b16 %v188
    %v221 = vunpack.c.l.b16 %v189
    %v222 = vunpack.c.l.b16 %v190
    %v223 = vunpack.c.l.b16 %v191
    %v224 = vunpack.c.l.b16 %v192
    %v225 = vunpack.c.l.b16 %v193
    %v226 = vunpack.c.l.b16 %v194
    %v227 = vunpack.c.l.b16 %v195
    %v228 = vunpack.c.l.b16 %v196
    %v229 = vpack.c.b16 %v214, %v213
    %v230 = vpack.c.b16 %v216, %v215
    %v231 = vpack.c.b16 %v218, %v217
    %v232 = vpack.c.b16 %v220, %v219
    %v233 = vpack.c.b16 %v222, %v221
    %v234 = vpack.c.b16 %v224, %v223
    %v235 = vpack.c.b16 %v226, %v225
    %v236 = vpack.c.b16 %v228, %v227
    %245 = vmatpush.bf16.msra.mxu0 %v236
    %246 = vmatpush.bf16.msra.mxu0 %v235
    %247 = vmatpush.bf16.msra.mxu0 %v234
    %248 = vmatpush.bf16.msra.mxu0 %v233
    %249 = vmatpush.bf16.msra.mxu0 %v232
    %250 = vmatpush.bf16.msra.mxu0 %v231
    %251 = vmatpush.bf16.msra.mxu0 %v230
    %252 = vmatpush.bf16.msra.mxu0 %v229
    %253 = vmatmul.bf16.gmra.mxu0 %v173
    %v254 = vpop.f32.mrf.mxu0
    %v255 = vadd.f32 0.0, %v254
    %v256 = vpop.f32.mrf.mxu0
    %v257 = vadd.f32 0.0, %v256
    %258 = vmatmul.bf16.gmra.mxu0 %v174
    %v259 = vpop.f32.mrf.mxu0
    %v260 = vadd.f32 0.0, %v259
    %v261 = vpop.f32.mrf.mxu0
    %v262 = vadd.f32 0.0, %v261
    %263 = vmatmul.bf16.gmra.mxu0 %v175
    %v264 = vpop.f32.mrf.mxu0
    %v265 = vadd.f32 0.0, %v264
    %v266 = vpop.f32.mrf.mxu0
    %v267 = vadd.f32 0.0, %v266
    %268 = vmatmul.bf16.gmra.mxu0 %v176
    %v269 = vpop.f32.mrf.mxu0
    %v270 = vadd.f32 0.0, %v269
    %v271 = vpop.f32.mrf.mxu0
    %v272 = vadd.f32 0.0, %v271
    %273 = vmatmul.bf16.gmra.mxu0 %v177
    %v274 = vpop.f32.mrf.mxu0
    %v275 = vadd.f32 0.0, %v274
    %v276 = vpop.f32.mrf.mxu0
    %v277 = vadd.f32 0.0, %v276
    %278 = vmatmul.bf16.gmra.mxu0 %v178
    %v279 = vpop.f32.mrf.mxu0
    %v280 = vadd.f32 0.0, %v279
    %v281 = vpop.f32.mrf.mxu0
    %v282 = vadd.f32 0.0, %v281
    %283 = vmatmul.bf16.gmra.mxu0 %v179
    %v284 = vpop.f32.mrf.mxu0
    %v285 = vadd.f32 0.0, %v284
    %v286 = vpop.f32.mrf.mxu0
    %v287 = vadd.f32 0.0, %v286
    %288 = vmatmul.bf16.gmra.mxu0 %v180
    %v289 = vpop.f32.mrf.mxu0
    %v290 = vadd.f32 0.0, %v289
    %v291 = vpop.f32.mrf.mxu0
    %v292 = vadd.f32 0.0, %v291
    %293 = vdwg.mxu0
    %v310 = vunpack.c.l.b16 %v141
    %v311 = vunpack.c.l.b16 %v142
    %v312 = vunpack.c.l.b16 %v143
    %v313 = vunpack.c.l.b16 %v144
    %v314 = vunpack.c.l.b16 %v145
    %v315 = vunpack.c.l.b16 %v146
    %v316 = vunpack.c.l.b16 %v147
    %v317 = vunpack.c.l.b16 %v148
    %v318 = vunpack.c.l.b16 %v149
    %v319 = vunpack.c.l.b16 %v150
    %v320 = vunpack.c.l.b16 %v151
    %v321 = vunpack.c.l.b16 %v152
    %v322 = vunpack.c.l.b16 %v153
    %v323 = vunpack.c.l.b16 %v154
    %v324 = vunpack.c.l.b16 %v155
    %v325 = vunpack.c.l.b16 %v156
    %v326 = vpack.c.b16 %v311, %v310
    %v327 = vpack.c.b16 %v313, %v312
    %v328 = vpack.c.b16 %v315, %v314
    %v329 = vpack.c.b16 %v317, %v316
    %v330 = vpack.c.b16 %v319, %v318
    %v331 = vpack.c.b16 %v321, %v320
    %v332 = vpack.c.b16 %v323, %v322
    %v333 = vpack.c.b16 %v325, %v324
    %342 = vmatpush.bf16.msra.mxu0 %v333
    %343 = vmatpush.bf16.msra.mxu0 %v332
    %344 = vmatpush.bf16.msra.mxu0 %v331
    %345 = vmatpush.bf16.msra.mxu0 %v330
    %346 = vmatpush.bf16.msra.mxu0 %v329
    %347 = vmatpush.bf16.msra.mxu0 %v328
    %348 = vmatpush.bf16.msra.mxu0 %v327
    %349 = vmatpush.bf16.msra.mxu0 %v326
    %350 = vmatmul.bf16.gmra.mxu0 %v133
    %v351 = vpop.f32.mrf.mxu0
    %v352 = vadd.f32 %v255, %v351
    %v353 = vpop.f32.mrf.mxu0
    %v354 = vadd.f32 %v257, %v353
    %355 = vmatmul.bf16.gmra.mxu0 %v134
    %v356 = vpop.f32.mrf.mxu0
    %v357 = vadd.f32 %v260, %v356
    %v358 = vpop.f32.mrf.mxu0
    %v359 = vadd.f32 %v262, %v358
    %360 = vmatmul.bf16.gmra.mxu0 %v135
    %v361 = vpop.f32.mrf.mxu0
    %v362 = vadd.f32 %v265, %v361
    %v363 = vpop.f32.mrf.mxu0
    %v364 = vadd.f32 %v267, %v363
    %365 = vmatmul.bf16.gmra.mxu0 %v136
    %v366 = vpop.f32.mrf.mxu0
    %v367 = vadd.f32 %v270, %v366
    %v368 = vpop.f32.mrf.mxu0
    %v369 = vadd.f32 %v272, %v368
    %370 = vmatmul.bf16.gmra.mxu0 %v137
    %v371 = vpop.f32.mrf.mxu0
    %v372 = vadd.f32 %v275, %v371
    %v373 = vpop.f32.mrf.mxu0
    %v374 = vadd.f32 %v277, %v373
    %375 = vmatmul.bf16.gmra.mxu0 %v138
    %v376 = vpop.f32.mrf.mxu0
    %v377 = vadd.f32 %v280, %v376
    %v378 = vpop.f32.mrf.mxu0
    %v379 = vadd.f32 %v282, %v378
    %380 = vmatmul.bf16.gmra.mxu0 %v139
    %v381 = vpop.f32.mrf.mxu0
    %v382 = vadd.f32 %v285, %v381
    %v383 = vpop.f32.mrf.mxu0
    %v384 = vadd.f32 %v287, %v383
    %385 = vmatmul.bf16.gmra.mxu0 %v140
    %v386 = vpop.f32.mrf.mxu0
    %v387 = vadd.f32 %v290, %v386
    %v388 = vpop.f32.mrf.mxu0
    %v389 = vadd.f32 %v292, %v388
    %390 = vdwg.mxu0
    %v391 = vperm.slane %v116, 0
    %v392 = vadd.f32 %v352, %v391
    %v393 = vadd.f32 %v354, %v391
    %v394 = vadd.f32 %v357, %v391
    %v395 = vadd.f32 %v359, %v391
    %v396 = vadd.f32 %v362, %v391
    %v397 = vadd.f32 %v364, %v391
    %v398 = vadd.f32 %v367, %v391
    %v399 = vadd.f32 %v369, %v391
    %v400 = vadd.f32 %v372, %v391
    %v401 = vadd.f32 %v374, %v391
    %v402 = vadd.f32 %v377, %v391
    %v403 = vadd.f32 %v379, %v391
    %v404 = vadd.f32 %v382, %v391
    %v405 = vadd.f32 %v384, %v391
    %v406 = vadd.f32 %v387, %v391
    %v407 = vadd.f32 %v389, %v391
    %v408 = vmax.f32 %v392, 0.0
    %v409 = vmax.f32 %v393, 0.0
    %v410 = vmax.f32 %v394, 0.0
    %v411 = vmax.f32 %v395, 0.0
    %v412 = vmax.f32 %v396, 0.0
    %v413 = vmax.f32 %v397, 0.0
    %v414 = vmax.f32 %v398, 0.0
    %v415 = vmax.f32 %v399, 0.0
    %v416 = vmax.f32 %v400, 0.0
    %v417 = vmax.f32 %v401, 0.0
    %v418 = vmax.f32 %v402, 0.0
    %v419 = vmax.f32 %v403, 0.0
    %v420 = vmax.f32 %v404, 0.0
    %v421 = vmax.f32 %v405, 0.0
    %v422 = vmax.f32 %v406, 0.0
    %v423 = vmax.f32 %v407, 0.0
    %424 = vst [vmem:[#allocation2 + $0x8] sm:$0xff] %v408
    %425 = vst [vmem:[#allocation2 + $0x10] sm:$0xff] %v409
    %426 = vst [vmem:[#allocation2 + $0x20] sm:$0xff] %v410
    %427 = vst [vmem:[#allocation2 + $0x28] sm:$0xff] %v411
    %428 = vst [vmem:[#allocation2 + $0x38] sm:$0xff] %v412
    %429 = vst [vmem:[#allocation2 + $0x40] sm:$0xff] %v413
    %430 = vst [vmem:[#allocation2 + $0x50] sm:$0xff] %v414
    %431 = vst [vmem:[#allocation2 + $0x58] sm:$0xff] %v415
    %432 = vst [vmem:[#allocation2 + $0x68] sm:$0xff] %v416
    %433 = vst [vmem:[#allocation2 + $0x70] sm:$0xff] %v417
    %434 = vst [vmem:[#allocation2 + $0x80] sm:$0xff] %v418
    %435 = vst [vmem:[#allocation2 + $0x88] sm:$0xff] %v419
    %436 = vst [vmem:[#allocation2 + $0x98] sm:$0xff] %v420
    %437 = vst [vmem:[#allocation2 + $0xa0] sm:$0xff] %v421
    %438 = vst [vmem:[#allocation2 + $0xb0] sm:$0xff] %v422
    %439 = vst [vmem:[#allocation2 + $0xb8] sm:$0xff] %v423
    %v440 = vld [vmem:[#allocation2 + $0x7] sm:$0xff]
    %v441 = vld [vmem:[#allocation2 + $0xf] sm:$0xff]
    %v442 = vld [vmem:[#allocation2 + $0x1f] sm:$0xff]
    %v443 = vld [vmem:[#allocation2 + $0x27] sm:$0xff]
    %v444 = vld [vmem:[#allocation2 + $0x37] sm:$0xff]
    %v445 = vld [vmem:[#allocation2 + $0x3f] sm:$0xff]
    %v446 = vld [vmem:[#allocation2 + $0x4f] sm:$0xff]
    %v447 = vld [vmem:[#allocation2 + $0x57] sm:$0xff]
    %v448 = vld [vmem:[#allocation2 + $0x67] sm:$0xff]
    %v449 = vld [vmem:[#allocation2 + $0x6f] sm:$0xff]
    %v450 = vld [vmem:[#allocation2 + $0x7f] sm:$0xff]
    %v451 = vld [vmem:[#allocation2 + $0x87] sm:$0xff]
    %v452 = vld [vmem:[#allocation2 + $0x97] sm:$0xff]
    %v453 = vld [vmem:[#allocation2 + $0x9f] sm:$0xff]
    %v454 = vld [vmem:[#allocation2 + $0xaf] sm:$0xff]
    %v455 = vld [vmem:[#allocation2 + $0xb7] sm:$0xff]
    %v456 = vpack.c.bf16 %v441, %v440
    %v457 = vpack.c.bf16 %v443, %v442
    %v458 = vpack.c.bf16 %v445, %v444
    %v459 = vpack.c.bf16 %v447, %v446
    %v460 = vpack.c.bf16 %v449, %v448
    %v461 = vpack.c.bf16 %v451, %v450
    %v462 = vpack.c.bf16 %v453, %v452
    %v463 = vpack.c.bf16 %v455, %v454
    %v464 = vld [vmem:[#allocation7 + $0x80] sm:$0xf]
    %v465 = vld [vmem:[#allocation7 + $0x84] sm:$0xf]
    %v466 = vld [vmem:[#allocation7 + $0x88] sm:$0xf]
    %v467 = vld [vmem:[#allocation7 + $0x8c] sm:$0xf]
    %v468 = vld [vmem:[#allocation7 + $0x90] sm:$0xf]
    %v469 = vld [vmem:[#allocation7 + $0x94] sm:$0xf]
    %v470 = vld [vmem:[#allocation7 + $0x98] sm:$0xf]
    %v471 = vld [vmem:[#allocation7 + $0x9c] sm:$0xf]
    %v472 = vld [vmem:[#allocation7 + $0xa0] sm:$0xf]
    %v473 = vld [vmem:[#allocation7 + $0xa4] sm:$0xf]
    %v474 = vld [vmem:[#allocation7 + $0xa8] sm:$0xf]
    %v475 = vld [vmem:[#allocation7 + $0xac] sm:$0xf]
    %v476 = vld [vmem:[#allocation7 + $0xb0] sm:$0xf]
    %v477 = vld [vmem:[#allocation7 + $0xb4] sm:$0xf]
    %v478 = vld [vmem:[#allocation7 + $0xb8] sm:$0xf]
    %v479 = vld [vmem:[#allocation7 + $0xbc] sm:$0xf]
    %v480 = vld [vmem:[#allocation2 + $0x8] sm:$0xff]
    %v481 = vld [vmem:[#allocation2 + $0x10] sm:$0xff]
    %v482 = vld [vmem:[#allocation2 + $0x20] sm:$0xff]
    %v483 = vld [vmem:[#allocation2 + $0x28] sm:$0xff]
    %v484 = vld [vmem:[#allocation2 + $0x38] sm:$0xff]
    %v485 = vld [vmem:[#allocation2 + $0x40] sm:$0xff]
    %v486 = vld [vmem:[#allocation2 + $0x50] sm:$0xff]
    %v487 = vld [vmem:[#allocation2 + $0x58] sm:$0xff]
    %v488 = vld [vmem:[#allocation2 + $0x68] sm:$0xff]
    %v489 = vld [vmem:[#allocation2 + $0x70] sm:$0xff]
    %v490 = vld [vmem:[#allocation2 + $0x80] sm:$0xff]
    %v491 = vld [vmem:[#allocation2 + $0x88] sm:$0xff]
    %v492 = vld [vmem:[#allocation2 + $0x98] sm:$0xff]
    %v493 = vld [vmem:[#allocation2 + $0xa0] sm:$0xff]
    %v494 = vld [vmem:[#allocation2 + $0xb0] sm:$0xff]
    %v495 = vld [vmem:[#allocation2 + $0xb8] sm:$0xff]
    %v496 = vpack.c.bf16 %v481, %v480
    %v497 = vpack.c.bf16 %v483, %v482
    %v498 = vpack.c.bf16 %v485, %v484
    %v499 = vpack.c.bf16 %v487, %v486
    %v500 = vpack.c.bf16 %v489, %v488
    %v501 = vpack.c.bf16 %v491, %v490
    %v502 = vpack.c.bf16 %v493, %v492
    %v503 = vpack.c.bf16 %v495, %v494
    %v504 = vld [vmem:[#allocation7 + $0xc0] sm:$0xf]
    %v505 = vld [vmem:[#allocation7 + $0xc4] sm:$0xf]
    %v506 = vld [vmem:[#allocation7 + $0xc8] sm:$0xf]
    %v507 = vld [vmem:[#allocation7 + $0xcc] sm:$0xf]
    %v508 = vld [vmem:[#allocation7 + $0xd0] sm:$0xf]
    %v509 = vld [vmem:[#allocation7 + $0xd4] sm:$0xf]
    %v510 = vld [vmem:[#allocation7 + $0xd8] sm:$0xf]
    %v511 = vld [vmem:[#allocation7 + $0xdc] sm:$0xf]
    %v512 = vld [vmem:[#allocation7 + $0xe0] sm:$0xf]
    %v513 = vld [vmem:[#allocation7 + $0xe4] sm:$0xf]
    %v514 = vld [vmem:[#allocation7 + $0xe8] sm:$0xf]
    %v515 = vld [vmem:[#allocation7 + $0xec] sm:$0xf]
    %v516 = vld [vmem:[#allocation7 + $0xf0] sm:$0xf]
    %v517 = vld [vmem:[#allocation7 + $0xf4] sm:$0xf]
    %v518 = vld [vmem:[#allocation7 + $0xf8] sm:$0xf]
    %v519 = vld [vmem:[#allocation7 + $0xfc] sm:$0xf]
    %v536 = vunpack.c.l.b16 %v504
    %v537 = vunpack.c.l.b16 %v505
    %v538 = vunpack.c.l.b16 %v506
    %v539 = vunpack.c.l.b16 %v507
    %v540 = vunpack.c.l.b16 %v508
    %v541 = vunpack.c.l.b16 %v509
    %v542 = vunpack.c.l.b16 %v510
    %v543 = vunpack.c.l.b16 %v511
    %v544 = vunpack.c.l.b16 %v512
    %v545 = vunpack.c.l.b16 %v513
    %v546 = vunpack.c.l.b16 %v514
    %v547 = vunpack.c.l.b16 %v515
    %v548 = vunpack.c.l.b16 %v516
    %v549 = vunpack.c.l.b16 %v517
    %v550 = vunpack.c.l.b16 %v518
    %v551 = vunpack.c.l.b16 %v519
    %v552 = vpack.c.b16 %v537, %v536
    %v553 = vpack.c.b16 %v539, %v538
    %v554 = vpack.c.b16 %v541, %v540
    %v555 = vpack.c.b16 %v543, %v542
    %v556 = vpack.c.b16 %v545, %v544
    %v557 = vpack.c.b16 %v547, %v546
    %v558 = vpack.c.b16 %v549, %v548
    %v559 = vpack.c.b16 %v551, %v550
    %568 = vmatpush.bf16.msra.mxu0 %v559
    %569 = vmatpush.bf16.msra.mxu0 %v558
    %570 = vmatpush.bf16.msra.mxu0 %v557
    %571 = vmatpush.bf16.msra.mxu0 %v556
    %572 = vmatpush.bf16.msra.mxu0 %v555
    %573 = vmatpush.bf16.msra.mxu0 %v554
    %574 = vmatpush.bf16.msra.mxu0 %v553
    %575 = vmatpush.bf16.msra.mxu0 %v552
    %576 = vmatmul.bf16.gmra.mxu0 %v496
    %v577 = vpop.f32.mrf.mxu0
    %v578 = vadd.f32 0.0, %v577
    %v579 = vpop.f32.mrf.mxu0
    %v580 = vadd.f32 0.0, %v579
    %581 = vmatmul.bf16.gmra.mxu0 %v497
    %v582 = vpop.f32.mrf.mxu0
    %v583 = vadd.f32 0.0, %v582
    %v584 = vpop.f32.mrf.mxu0
    %v585 = vadd.f32 0.0, %v584
    %586 = vmatmul.bf16.gmra.mxu0 %v498
    %v587 = vpop.f32.mrf.mxu0
    %v588 = vadd.f32 0.0, %v587
    %v589 = vpop.f32.mrf.mxu0
    %v590 = vadd.f32 0.0, %v589
    %591 = vmatmul.bf16.gmra.mxu0 %v499
    %v592 = vpop.f32.mrf.mxu0
    %v593 = vadd.f32 0.0, %v592
    %v594 = vpop.f32.mrf.mxu0
    %v595 = vadd.f32 0.0, %v594
    %596 = vmatmul.bf16.gmra.mxu0 %v500
    %v597 = vpop.f32.mrf.mxu0
    %v598 = vadd.f32 0.0, %v597
    %v599 = vpop.f32.mrf.mxu0
    %v600 = vadd.f32 0.0, %v599
    %601 = vmatmul.bf16.gmra.mxu0 %v501
    %v602 = vpop.f32.mrf.mxu0
    %v603 = vadd.f32 0.0, %v602
    %v604 = vpop.f32.mrf.mxu0
    %v605 = vadd.f32 0.0, %v604
    %606 = vmatmul.bf16.gmra.mxu0 %v502
    %v607 = vpop.f32.mrf.mxu0
    %v608 = vadd.f32 0.0, %v607
    %v609 = vpop.f32.mrf.mxu0
    %v610 = vadd.f32 0.0, %v609
    %611 = vmatmul.bf16.gmra.mxu0 %v503
    %v612 = vpop.f32.mrf.mxu0
    %v613 = vadd.f32 0.0, %v612
    %v614 = vpop.f32.mrf.mxu0
    %v615 = vadd.f32 0.0, %v614
    %616 = vdwg.mxu0
    %v633 = vunpack.c.l.b16 %v464
    %v634 = vunpack.c.l.b16 %v465
    %v635 = vunpack.c.l.b16 %v466
    %v636 = vunpack.c.l.b16 %v467
    %v637 = vunpack.c.l.b16 %v468
    %v638 = vunpack.c.l.b16 %v469
    %v639 = vunpack.c.l.b16 %v470
    %v640 = vunpack.c.l.b16 %v471
    %v641 = vunpack.c.l.b16 %v472
    %v642 = vunpack.c.l.b16 %v473
    %v643 = vunpack.c.l.b16 %v474
    %v644 = vunpack.c.l.b16 %v475
    %v645 = vunpack.c.l.b16 %v476
    %v646 = vunpack.c.l.b16 %v477
    %v647 = vunpack.c.l.b16 %v478
    %v648 = vunpack.c.l.b16 %v479
    %v649 = vpack.c.b16 %v634, %v633
    %v650 = vpack.c.b16 %v636, %v635
    %v651 = vpack.c.b16 %v638, %v637
    %v652 = vpack.c.b16 %v640, %v639
    %v653 = vpack.c.b16 %v642, %v641
    %v654 = vpack.c.b16 %v644, %v643
    %v655 = vpack.c.b16 %v646, %v645
    %v656 = vpack.c.b16 %v648, %v647
    %665 = vmatpush.bf16.msra.mxu0 %v656
    %666 = vmatpush.bf16.msra.mxu0 %v655
    %667 = vmatpush.bf16.msra.mxu0 %v654
    %668 = vmatpush.bf16.msra.mxu0 %v653
    %669 = vmatpush.bf16.msra.mxu0 %v652
    %670 = vmatpush.bf16.msra.mxu0 %v651
    %671 = vmatpush.bf16.msra.mxu0 %v650
    %672 = vmatpush.bf16.msra.mxu0 %v649
    %673 = vmatmul.bf16.gmra.mxu0 %v456
    %v674 = vpop.f32.mrf.mxu0
    %v675 = vadd.f32 %v578, %v674
    %v676 = vpop.f32.mrf.mxu0
    %v677 = vadd.f32 %v580, %v676
    %678 = vmatmul.bf16.gmra.mxu0 %v457
    %v679 = vpop.f32.mrf.mxu0
    %v680 = vadd.f32 %v583, %v679
    %v681 = vpop.f32.mrf.mxu0
    %v682 = vadd.f32 %v585, %v681
    %683 = vmatmul.bf16.gmra.mxu0 %v458
    %v684 = vpop.f32.mrf.mxu0
    %v685 = vadd.f32 %v588, %v684
    %v686 = vpop.f32.mrf.mxu0
    %v687 = vadd.f32 %v590, %v686
    %688 = vmatmul.bf16.gmra.mxu0 %v459
    %v689 = vpop.f32.mrf.mxu0
    %v690 = vadd.f32 %v593, %v689
    %v691 = vpop.f32.mrf.mxu0
    %v692 = vadd.f32 %v595, %v691
    %693 = vmatmul.bf16.gmra.mxu0 %v460
    %v694 = vpop.f32.mrf.mxu0
    %v695 = vadd.f32 %v598, %v694
    %v696 = vpop.f32.mrf.mxu0
    %v697 = vadd.f32 %v600, %v696
    %698 = vmatmul.bf16.gmra.mxu0 %v461
    %v699 = vpop.f32.mrf.mxu0
    %v700 = vadd.f32 %v603, %v699
    %v701 = vpop.f32.mrf.mxu0
    %v702 = vadd.f32 %v605, %v701
    %703 = vmatmul.bf16.gmra.mxu0 %v462
    %v704 = vpop.f32.mrf.mxu0
    %v705 = vadd.f32 %v608, %v704
    %v706 = vpop.f32.mrf.mxu0
    %v707 = vadd.f32 %v610, %v706
    %708 = vmatmul.bf16.gmra.mxu0 %v463
    %v709 = vpop.f32.mrf.mxu0
    %v710 = vadd.f32 %v613, %v709
    %v711 = vpop.f32.mrf.mxu0
    %v712 = vadd.f32 %v615, %v711
    %713 = vdwg.mxu0
    %v714 = vperm.slane %v116, 1
    %v715 = vadd.f32 %v675, %v714
    %v716 = vadd.f32 %v677, %v714
    %v717 = vadd.f32 %v680, %v714
    %v718 = vadd.f32 %v682, %v714
    %v719 = vadd.f32 %v685, %v714
    %v720 = vadd.f32 %v687, %v714
    %v721 = vadd.f32 %v690, %v714
    %v722 = vadd.f32 %v692, %v714
    %v723 = vadd.f32 %v695, %v714
    %v724 = vadd.f32 %v697, %v714
    %v725 = vadd.f32 %v700, %v714
    %v726 = vadd.f32 %v702, %v714
    %v727 = vadd.f32 %v705, %v714
    %v728 = vadd.f32 %v707, %v714
    %v729 = vadd.f32 %v710, %v714
    %v730 = vadd.f32 %v712, %v714
    %v731 = vmax.f32 %v715, 0.0
    %v732 = vmax.f32 %v716, 0.0
    %v733 = vmax.f32 %v717, 0.0
    %v734 = vmax.f32 %v718, 0.0
    %v735 = vmax.f32 %v719, 0.0
    %v736 = vmax.f32 %v720, 0.0
    %v737 = vmax.f32 %v721, 0.0
    %v738 = vmax.f32 %v722, 0.0
    %v739 = vmax.f32 %v723, 0.0
    %v740 = vmax.f32 %v724, 0.0
    %v741 = vmax.f32 %v725, 0.0
    %v742 = vmax.f32 %v726, 0.0
    %v743 = vmax.f32 %v727, 0.0
    %v744 = vmax.f32 %v728, 0.0
    %v745 = vmax.f32 %v729, 0.0
    %v746 = vmax.f32 %v730, 0.0
    %v747 = vld [vmem:[#allocation3] sm:$0xff]
    %v748 = vld [vmem:[#allocation3 + $0x8] sm:$0xff]
    %v749 = vld [vmem:[#allocation3 + $0x10] sm:$0xff]
    %v750 = vld [vmem:[#allocation3 + $0x18] sm:$0xff]
    %v751 = vld [vmem:[#allocation3 + $0x20] sm:$0xff]
    %v752 = vld [vmem:[#allocation3 + $0x28] sm:$0xff]
    %v753 = vld [vmem:[#allocation3 + $0x30] sm:$0xff]
    %v754 = vld [vmem:[#allocation3 + $0x38] sm:$0xff]
    %v755 = vld [vmem:[#allocation3 + $0x40] sm:$0xff]
    %v756 = vld [vmem:[#allocation3 + $0x48] sm:$0xff]
    %v757 = vld [vmem:[#allocation3 + $0x50] sm:$0xff]
    %v758 = vld [vmem:[#allocation3 + $0x58] sm:$0xff]
    %v759 = vld [vmem:[#allocation3 + $0x60] sm:$0xff]
    %v760 = vld [vmem:[#allocation3 + $0x68] sm:$0xff]
    %v761 = vld [vmem:[#allocation3 + $0x70] sm:$0xff]
    %v762 = vld [vmem:[#allocation3 + $0x78] sm:$0xff]
    %v763 = vld [vmem:[#allocation7 + $0x100] sm:$0xf]
    %v764 = vld [vmem:[#allocation7 + $0x104] sm:$0xf]
    %v765 = vld [vmem:[#allocation7 + $0x108] sm:$0xf]
    %v766 = vld [vmem:[#allocation7 + $0x10c] sm:$0xf]
    %v767 = vld [vmem:[#allocation7 + $0x110] sm:$0xf]
    %v768 = vld [vmem:[#allocation7 + $0x114] sm:$0xf]
    %v769 = vld [vmem:[#allocation7 + $0x118] sm:$0xf]
    %v770 = vld [vmem:[#allocation7 + $0x11c] sm:$0xf]
    %v771 = vld [vmem:[#allocation7 + $0x120] sm:$0xf]
    %v772 = vld [vmem:[#allocation7 + $0x124] sm:$0xf]
    %v773 = vld [vmem:[#allocation7 + $0x128] sm:$0xf]
    %v774 = vld [vmem:[#allocation7 + $0x12c] sm:$0xf]
    %v775 = vld [vmem:[#allocation7 + $0x130] sm:$0xf]
    %v776 = vld [vmem:[#allocation7 + $0x134] sm:$0xf]
    %v777 = vld [vmem:[#allocation7 + $0x138] sm:$0xf]
    %v778 = vld [vmem:[#allocation7 + $0x13c] sm:$0xf]
    %v779 = vpack.c.bf16 %v748, %v747
    %v780 = vpack.c.bf16 %v750, %v749
    %v781 = vpack.c.bf16 %v752, %v751
    %v782 = vpack.c.bf16 %v754, %v753
    %v783 = vpack.c.bf16 %v756, %v755
    %v784 = vpack.c.bf16 %v758, %v757
    %v785 = vpack.c.bf16 %v760, %v759
    %v786 = vpack.c.bf16 %v762, %v761
    %v787 = vperm.slane %v116, 2
    %v804 = vunpack.c.l.b16 %v763
    %v805 = vunpack.c.l.b16 %v764
    %v806 = vunpack.c.l.b16 %v765
    %v807 = vunpack.c.l.b16 %v766
    %v808 = vunpack.c.l.b16 %v767
    %v809 = vunpack.c.l.b16 %v768
    %v810 = vunpack.c.l.b16 %v769
    %v811 = vunpack.c.l.b16 %v770
    %v812 = vunpack.c.l.b16 %v771
    %v813 = vunpack.c.l.b16 %v772
    %v814 = vunpack.c.l.b16 %v773
    %v815 = vunpack.c.l.b16 %v774
    %v816 = vunpack.c.l.b16 %v775
    %v817 = vunpack.c.l.b16 %v776
    %v818 = vunpack.c.l.b16 %v777
    %v819 = vunpack.c.l.b16 %v778
    %v820 = vpack.c.b16 %v805, %v804
    %v821 = vpack.c.b16 %v807, %v806
    %v822 = vpack.c.b16 %v809, %v808
    %v823 = vpack.c.b16 %v811, %v810
    %v824 = vpack.c.b16 %v813, %v812
    %v825 = vpack.c.b16 %v815, %v814
    %v826 = vpack.c.b16 %v817, %v816
    %v827 = vpack.c.b16 %v819, %v818
    %836 = vmatpush.bf16.msra.mxu0 %v827
    %837 = vmatpush.bf16.msra.mxu0 %v826
    %838 = vmatpush.bf16.msra.mxu0 %v825
    %839 = vmatpush.bf16.msra.mxu0 %v824
    %840 = vmatpush.bf16.msra.mxu0 %v823
    %841 = vmatpush.bf16.msra.mxu0 %v822
    %842 = vmatpush.bf16.msra.mxu0 %v821
    %843 = vmatpush.bf16.msra.mxu0 %v820
    %844 = vmatmul.bf16.gmra.mxu0 %v779
    %v845 = vpop.f32.mrf.mxu0
    %v846 = vadd.f32 %v787, %v845
    %v847 = vpop.f32.mrf.mxu0
    %v848 = vadd.f32 %v787, %v847
    %849 = vmatmul.bf16.gmra.mxu0 %v780
    %v850 = vpop.f32.mrf.mxu0
    %v851 = vadd.f32 %v787, %v850
    %v852 = vpop.f32.mrf.mxu0
    %v853 = vadd.f32 %v787, %v852
    %854 = vmatmul.bf16.gmra.mxu0 %v781
    %v855 = vpop.f32.mrf.mxu0
    %v856 = vadd.f32 %v787, %v855
    %v857 = vpop.f32.mrf.mxu0
    %v858 = vadd.f32 %v787, %v857
    %859 = vmatmul.bf16.gmra.mxu0 %v782
    %v860 = vpop.f32.mrf.mxu0
    %v861 = vadd.f32 %v787, %v860
    %v862 = vpop.f32.mrf.mxu0
    %v863 = vadd.f32 %v787, %v862
    %864 = vmatmul.bf16.gmra.mxu0 %v783
    %v865 = vpop.f32.mrf.mxu0
    %v866 = vadd.f32 %v787, %v865
    %v867 = vpop.f32.mrf.mxu0
    %v868 = vadd.f32 %v787, %v867
    %869 = vmatmul.bf16.gmra.mxu0 %v784
    %v870 = vpop.f32.mrf.mxu0
    %v871 = vadd.f32 %v787, %v870
    %v872 = vpop.f32.mrf.mxu0
    %v873 = vadd.f32 %v787, %v872
    %874 = vmatmul.bf16.gmra.mxu0 %v785
    %v875 = vpop.f32.mrf.mxu0
    %v876 = vadd.f32 %v787, %v875
    %v877 = vpop.f32.mrf.mxu0
    %v878 = vadd.f32 %v787, %v877
    %879 = vmatmul.bf16.gmra.mxu0 %v786
    %v880 = vpop.f32.mrf.mxu0
    %v881 = vadd.f32 %v787, %v880
    %v882 = vpop.f32.mrf.mxu0
    %v883 = vadd.f32 %v787, %v882
    %884 = vdwg.mxu0
    %v885 = vadd.f32 %v731, %v846
    %v886 = vadd.f32 %v732, %v848
    %v887 = vadd.f32 %v733, %v851
    %v888 = vadd.f32 %v734, %v853
    %v889 = vadd.f32 %v735, %v856
    %v890 = vadd.f32 %v736, %v858
    %v891 = vadd.f32 %v737, %v861
    %v892 = vadd.f32 %v738, %v863
    %v893 = vadd.f32 %v739, %v866
    %v894 = vadd.f32 %v740, %v868
    %v895 = vadd.f32 %v741, %v871
    %v896 = vadd.f32 %v742, %v873
    %v897 = vadd.f32 %v743, %v876
    %v898 = vadd.f32 %v744, %v878
    %v899 = vadd.f32 %v745, %v881
    %v900 = vadd.f32 %v746, %v883
    %v901 = vmax.f32 %v885, 0.0
    %v902 = vmax.f32 %v886, 0.0
    %v903 = vmax.f32 %v887, 0.0
    %v904 = vmax.f32 %v888, 0.0
    %v905 = vmax.f32 %v889, 0.0
    %v906 = vmax.f32 %v890, 0.0
    %v907 = vmax.f32 %v891, 0.0
    %v908 = vmax.f32 %v892, 0.0
    %v909 = vmax.f32 %v893, 0.0
    %v910 = vmax.f32 %v894, 0.0
    %v911 = vmax.f32 %v895, 0.0
    %v912 = vmax.f32 %v896, 0.0
    %v913 = vmax.f32 %v897, 0.0
    %v914 = vmax.f32 %v898, 0.0
    %v915 = vmax.f32 %v899, 0.0
    %v916 = vmax.f32 %v900, 0.0
    %917 = vst [vmem:[#allocation2 + $0x8] sm:$0xff] %v901
    %918 = vst [vmem:[#allocation2 + $0x10] sm:$0xff] %v902
    %919 = vst [vmem:[#allocation2 + $0x20] sm:$0xff] %v903
    %920 = vst [vmem:[#allocation2 + $0x28] sm:$0xff] %v904
    %921 = vst [vmem:[#allocation2 + $0x38] sm:$0xff] %v905
    %922 = vst [vmem:[#allocation2 + $0x40] sm:$0xff] %v906
    %923 = vst [vmem:[#allocation2 + $0x50] sm:$0xff] %v907
    %924 = vst [vmem:[#allocation2 + $0x58] sm:$0xff] %v908
    %925 = vst [vmem:[#allocation2 + $0x68] sm:$0xff] %v909
    %926 = vst [vmem:[#allocation2 + $0x70] sm:$0xff] %v910
    %927 = vst [vmem:[#allocation2 + $0x80] sm:$0xff] %v911
    %928 = vst [vmem:[#allocation2 + $0x88] sm:$0xff] %v912
    %929 = vst [vmem:[#allocation2 + $0x98] sm:$0xff] %v913
    %930 = vst [vmem:[#allocation2 + $0xa0] sm:$0xff] %v914
    %931 = vst [vmem:[#allocation2 + $0xb0] sm:$0xff] %v915
    %932 = vst [vmem:[#allocation2 + $0xb8] sm:$0xff] %v916
    %933 = vst [vmem:[#allocation3] sm:$0xff] %v901
    %934 = vst [vmem:[#allocation3 + $0x8] sm:$0xff] %v902
    %935 = vst [vmem:[#allocation3 + $0x10] sm:$0xff] %v903
    %936 = vst [vmem:[#allocation3 + $0x18] sm:$0xff] %v904
    %937 = vst [vmem:[#allocation3 + $0x20] sm:$0xff] %v905
    %938 = vst [vmem:[#allocation3 + $0x28] sm:$0xff] %v906
    %939 = vst [vmem:[#allocation3 + $0x30] sm:$0xff] %v907
    %940 = vst [vmem:[#allocation3 + $0x38] sm:$0xff] %v908
    %941 = vst [vmem:[#allocation3 + $0x40] sm:$0xff] %v909
    %942 = vst [vmem:[#allocation3 + $0x48] sm:$0xff] %v910
    %943 = vst [vmem:[#allocation3 + $0x50] sm:$0xff] %v911
    %944 = vst [vmem:[#allocation3 + $0x58] sm:$0xff] %v912
    %945 = vst [vmem:[#allocation3 + $0x60] sm:$0xff] %v913
    %946 = vst [vmem:[#allocation3 + $0x68] sm:$0xff] %v914
    %947 = vst [vmem:[#allocation3 + $0x70] sm:$0xff] %v915
    %948 = vst [vmem:[#allocation3 + $0x78] sm:$0xff] %v916
    %v949 = vld [vmem:[#allocation2 + $0x6] sm:$0xff]
    %v950 = vld [vmem:[#allocation2 + $0xe] sm:$0xff]
    %v951 = vld [vmem:[#allocation2 + $0x1e] sm:$0xff]
    %v952 = vld [vmem:[#allocation2 + $0x26] sm:$0xff]
    %v953 = vld [vmem:[#allocation2 + $0x36] sm:$0xff]
    %v954 = vld [vmem:[#allocation2 + $0x3e] sm:$0xff]
    %v955 = vld [vmem:[#allocation2 + $0x4e] sm:$0xff]
    %v956 = vld [vmem:[#allocation2 + $0x56] sm:$0xff]
    %v957 = vld [vmem:[#allocation2 + $0x66] sm:$0xff]
    %v958 = vld [vmem:[#allocation2 + $0x6e] sm:$0xff]
    %v959 = vld [vmem:[#allocation2 + $0x7e] sm:$0xff]
    %v960 = vld [vmem:[#allocation2 + $0x86] sm:$0xff]
    %v961 = vld [vmem:[#allocation2 + $0x96] sm:$0xff]
    %v962 = vld [vmem:[#allocation2 + $0x9e] sm:$0xff]
    %v963 = vld [vmem:[#allocation2 + $0xae] sm:$0xff]
    %v964 = vld [vmem:[#allocation2 + $0xb6] sm:$0xff]
    %v965 = vpack.c.bf16 %v950, %v949
    %v966 = vpack.c.bf16 %v952, %v951
    %v967 = vpack.c.bf16 %v954, %v953
    %v968 = vpack.c.bf16 %v956, %v955
    %v969 = vpack.c.bf16 %v958, %v957
    %v970 = vpack.c.bf16 %v960, %v959
    %v971 = vpack.c.bf16 %v962, %v961
    %v972 = vpack.c.bf16 %v964, %v963
    %v973 = vld [vmem:[#allocation7 + $0x140] sm:$0xf]
    %v974 = vld [vmem:[#allocation7 + $0x144] sm:$0xf]
    %v975 = vld [vmem:[#allocation7 + $0x148] sm:$0xf]
    %v976 = vld [vmem:[#allocation7 + $0x14c] sm:$0xf]
    %v977 = vld [vmem:[#allocation7 + $0x150] sm:$0xf]
    %v978 = vld [vmem:[#allocation7 + $0x154] sm:$0xf]
    %v979 = vld [vmem:[#allocation7 + $0x158] sm:$0xf]
    %v980 = vld [vmem:[#allocation7 + $0x15c] sm:$0xf]
    %v981 = vld [vmem:[#allocation7 + $0x160] sm:$0xf]
    %v982 = vld [vmem:[#allocation7 + $0x164] sm:$0xf]
    %v983 = vld [vmem:[#allocation7 + $0x168] sm:$0xf]
    %v984 = vld [vmem:[#allocation7 + $0x16c] sm:$0xf]
    %v985 = vld [vmem:[#allocation7 + $0x170] sm:$0xf]
    %v986 = vld [vmem:[#allocation7 + $0x174] sm:$0xf]
    %v987 = vld [vmem:[#allocation7 + $0x178] sm:$0xf]
    %v988 = vld [vmem:[#allocation7 + $0x17c] sm:$0xf]
    %v989 = vld [vmem:[#allocation2 + $0x8] sm:$0xff]
    %v990 = vld [vmem:[#allocation2 + $0x10] sm:$0xff]
    %v991 = vld [vmem:[#allocation2 + $0x20] sm:$0xff]
    %v992 = vld [vmem:[#allocation2 + $0x28] sm:$0xff]
    %v993 = vld [vmem:[#allocation2 + $0x38] sm:$0xff]
    %v994 = vld [vmem:[#allocation2 + $0x40] sm:$0xff]
    %v995 = vld [vmem:[#allocation2 + $0x50] sm:$0xff]
    %v996 = vld [vmem:[#allocation2 + $0x58] sm:$0xff]
    %v997 = vld [vmem:[#allocation2 + $0x68] sm:$0xff]
    %v998 = vld [vmem:[#allocation2 + $0x70] sm:$0xff]
    %v999 = vld [vmem:[#allocation2 + $0x80] sm:$0xff]
    %v1000 = vld [vmem:[#allocation2 + $0x88] sm:$0xff]
    %v1001 = vld [vmem:[#allocation2 + $0x98] sm:$0xff]
    %v1002 = vld [vmem:[#allocation2 + $0xa0] sm:$0xff]
    %v1003 = vld [vmem:[#allocation2 + $0xb0] sm:$0xff]
    %v1004 = vld [vmem:[#allocation2 + $0xb8] sm:$0xff]
    %v1005 = vpack.c.bf16 %v990, %v989
    %v1006 = vpack.c.bf16 %v992, %v991
    %v1007 = vpack.c.bf16 %v994, %v993
    %v1008 = vpack.c.bf16 %v996, %v995
    %v1009 = vpack.c.bf16 %v998, %v997
    %v1010 = vpack.c.bf16 %v1000, %v999
    %v1011 = vpack.c.bf16 %v1002, %v1001
    %v1012 = vpack.c.bf16 %v1004, %v1003
    %v1013 = vld [vmem:[#allocation7 + $0x180] sm:$0xf]
    %v1014 = vld [vmem:[#allocation7 + $0x184] sm:$0xf]
    %v1015 = vld [vmem:[#allocation7 + $0x188] sm:$0xf]
    %v1016 = vld [vmem:[#allocation7 + $0x18c] sm:$0xf]
    %v1017 = vld [vmem:[#allocation7 + $0x190] sm:$0xf]
    %v1018 = vld [vmem:[#allocation7 + $0x194] sm:$0xf]
    %v1019 = vld [vmem:[#allocation7 + $0x198] sm:$0xf]
    %v1020 = vld [vmem:[#allocation7 + $0x19c] sm:$0xf]
    %v1021 = vld [vmem:[#allocation7 + $0x1a0] sm:$0xf]
    %v1022 = vld [vmem:[#allocation7 + $0x1a4] sm:$0xf]
    %v1023 = vld [vmem:[#allocation7 + $0x1a8] sm:$0xf]
    %v1024 = vld [vmem:[#allocation7 + $0x1ac] sm:$0xf]
    %v1025 = vld [vmem:[#allocation7 + $0x1b0] sm:$0xf]
    %v1026 = vld [vmem:[#allocation7 + $0x1b4] sm:$0xf]
    %v1027 = vld [vmem:[#allocation7 + $0x1b8] sm:$0xf]
    %v1028 = vld [vmem:[#allocation7 + $0x1bc] sm:$0xf]
    %v1045 = vunpack.c.l.b16 %v1013
    %v1046 = vunpack.c.l.b16 %v1014
    %v1047 = vunpack.c.l.b16 %v1015
    %v1048 = vunpack.c.l.b16 %v1016
    %v1049 = vunpack.c.l.b16 %v1017
    %v1050 = vunpack.c.l.b16 %v1018
    %v1051 = vunpack.c.l.b16 %v1019
    %v1052 = vunpack.c.l.b16 %v1020
    %v1053 = vunpack.c.l.b16 %v1021
    %v1054 = vunpack.c.l.b16 %v1022
    %v1055 = vunpack.c.l.b16 %v1023
    %v1056 = vunpack.c.l.b16 %v1024
    %v1057 = vunpack.c.l.b16 %v1025
    %v1058 = vunpack.c.l.b16 %v1026
    %v1059 = vunpack.c.l.b16 %v1027
    %v1060 = vunpack.c.l.b16 %v1028
    %v1061 = vpack.c.b16 %v1046, %v1045
    %v1062 = vpack.c.b16 %v1048, %v1047
    %v1063 = vpack.c.b16 %v1050, %v1049
    %v1064 = vpack.c.b16 %v1052, %v1051
    %v1065 = vpack.c.b16 %v1054, %v1053
    %v1066 = vpack.c.b16 %v1056, %v1055
    %v1067 = vpack.c.b16 %v1058, %v1057
    %v1068 = vpack.c.b16 %v1060, %v1059
    %1077 = vmatpush.bf16.msra.mxu0 %v1068
    %1078 = vmatpush.bf16.msra.mxu0 %v1067
    %1079 = vmatpush.bf16.msra.mxu0 %v1066
    %1080 = vmatpush.bf16.msra.mxu0 %v1065
    %1081 = vmatpush.bf16.msra.mxu0 %v1064
    %1082 = vmatpush.bf16.msra.mxu0 %v1063
    %1083 = vmatpush.bf16.msra.mxu0 %v1062
    %1084 = vmatpush.bf16.msra.mxu0 %v1061
    %1085 = vmatmul.bf16.gmra.mxu0 %v1005
    %v1086 = vpop.f32.mrf.mxu0
    %v1087 = vadd.f32 0.0, %v1086
    %v1088 = vpop.f32.mrf.mxu0
    %v1089 = vadd.f32 0.0, %v1088
    %1090 = vmatmul.bf16.gmra.mxu0 %v1006
    %v1091 = vpop.f32.mrf.mxu0
    %v1092 = vadd.f32 0.0, %v1091
    %v1093 = vpop.f32.mrf.mxu0
    %v1094 = vadd.f32 0.0, %v1093
    %1095 = vmatmul.bf16.gmra.mxu0 %v1007
    %v1096 = vpop.f32.mrf.mxu0
    %v1097 = vadd.f32 0.0, %v1096
    %v1098 = vpop.f32.mrf.mxu0
    %v1099 = vadd.f32 0.0, %v1098
    %1100 = vmatmul.bf16.gmra.mxu0 %v1008
    %v1101 = vpop.f32.mrf.mxu0
    %v1102 = vadd.f32 0.0, %v1101
    %v1103 = vpop.f32.mrf.mxu0
    %v1104 = vadd.f32 0.0, %v1103
    %1105 = vmatmul.bf16.gmra.mxu0 %v1009
    %v1106 = vpop.f32.mrf.mxu0
    %v1107 = vadd.f32 0.0, %v1106
    %v1108 = vpop.f32.mrf.mxu0
    %v1109 = vadd.f32 0.0, %v1108
    %1110 = vmatmul.bf16.gmra.mxu0 %v1010
    %v1111 = vpop.f32.mrf.mxu0
    %v1112 = vadd.f32 0.0, %v1111
    %v1113 = vpop.f32.mrf.mxu0
    %v1114 = vadd.f32 0.0, %v1113
    %1115 = vmatmul.bf16.gmra.mxu0 %v1011
    %v1116 = vpop.f32.mrf.mxu0
    %v1117 = vadd.f32 0.0, %v1116
    %v1118 = vpop.f32.mrf.mxu0
    %v1119 = vadd.f32 0.0, %v1118
    %1120 = vmatmul.bf16.gmra.mxu0 %v1012
    %v1121 = vpop.f32.mrf.mxu0
    %v1122 = vadd.f32 0.0, %v1121
    %v1123 = vpop.f32.mrf.mxu0
    %v1124 = vadd.f32 0.0, %v1123
    %1125 = vdwg.mxu0
    %v1142 = vunpack.c.l.b16 %v973
    %v1143 = vunpack.c.l.b16 %v974
    %v1144 = vunpack.c.l.b16 %v975
    %v1145 = vunpack.c.l.b16 %v976
    %v1146 = vunpack.c.l.b16 %v977
    %v1147 = vunpack.c.l.b16 %v978
    %v1148 = vunpack.c.l.b16 %v979
    %v1149 = vunpack.c.l.b16 %v980
    %v1150 = vunpack.c.l.b16 %v981
    %v1151 = vunpack.c.l.b16 %v982
    %v1152 = vunpack.c.l.b16 %v983
    %v1153 = vunpack.c.l.b16 %v984
    %v1154 = vunpack.c.l.b16 %v985
    %v1155 = vunpack.c.l.b16 %v986
    %v1156 = vunpack.c.l.b16 %v987
    %v1157 = vunpack.c.l.b16 %v988
    %v1158 = vpack.c.b16 %v1143, %v1142
    %v1159 = vpack.c.b16 %v1145, %v1144
    %v1160 = vpack.c.b16 %v1147, %v1146
    %v1161 = vpack.c.b16 %v1149, %v1148
    %v1162 = vpack.c.b16 %v1151, %v1150
    %v1163 = vpack.c.b16 %v1153, %v1152
    %v1164 = vpack.c.b16 %v1155, %v1154
    %v1165 = vpack.c.b16 %v1157, %v1156
    %1174 = vmatpush.bf16.msra.mxu0 %v1165
    %1175 = vmatpush.bf16.msra.mxu0 %v1164
    %1176 = vmatpush.bf16.msra.mxu0 %v1163
    %1177 = vmatpush.bf16.msra.mxu0 %v1162
    %1178 = vmatpush.bf16.msra.mxu0 %v1161
    %1179 = vmatpush.bf16.msra.mxu0 %v1160
    %1180 = vmatpush.bf16.msra.mxu0 %v1159
    %1181 = vmatpush.bf16.msra.mxu0 %v1158
    %1182 = vmatmul.bf16.gmra.mxu0 %v965
    %v1183 = vpop.f32.mrf.mxu0
    %v1184 = vadd.f32 %v1087, %v1183
    %v1185 = vpop.f32.mrf.mxu0
    %v1186 = vadd.f32 %v1089, %v1185
    %1187 = vmatmul.bf16.gmra.mxu0 %v966
    %v1188 = vpop.f32.mrf.mxu0
    %v1189 = vadd.f32 %v1092, %v1188
    %v1190 = vpop.f32.mrf.mxu0
    %v1191 = vadd.f32 %v1094, %v1190
    %1192 = vmatmul.bf16.gmra.mxu0 %v967
    %v1193 = vpop.f32.mrf.mxu0
    %v1194 = vadd.f32 %v1097, %v1193
    %v1195 = vpop.f32.mrf.mxu0
    %v1196 = vadd.f32 %v1099, %v1195
    %1197 = vmatmul.bf16.gmra.mxu0 %v968
    %v1198 = vpop.f32.mrf.mxu0
    %v1199 = vadd.f32 %v1102, %v1198
    %v1200 = vpop.f32.mrf.mxu0
    %v1201 = vadd.f32 %v1104, %v1200
    %1202 = vmatmul.bf16.gmra.mxu0 %v969
    %v1203 = vpop.f32.mrf.mxu0
    %v1204 = vadd.f32 %v1107, %v1203
    %v1205 = vpop.f32.mrf.mxu0
    %v1206 = vadd.f32 %v1109, %v1205
    %1207 = vmatmul.bf16.gmra.mxu0 %v970
    %v1208 = vpop.f32.mrf.mxu0
    %v1209 = vadd.f32 %v1112, %v1208
    %v1210 = vpop.f32.mrf.mxu0
    %v1211 = vadd.f32 %v1114, %v1210
    %1212 = vmatmul.bf16.gmra.mxu0 %v971
    %v1213 = vpop.f32.mrf.mxu0
    %v1214 = vadd.f32 %v1117, %v1213
    %v1215 = vpop.f32.mrf.mxu0
    %v1216 = vadd.f32 %v1119, %v1215
    %1217 = vmatmul.bf16.gmra.mxu0 %v972
    %v1218 = vpop.f32.mrf.mxu0
    %v1219 = vadd.f32 %v1122, %v1218
    %v1220 = vpop.f32.mrf.mxu0
    %v1221 = vadd.f32 %v1124, %v1220
    %1222 = vdwg.mxu0
    %v1223 = vperm.slane %v116, 3
    %v1224 = vadd.f32 %v1184, %v1223
    %v1225 = vadd.f32 %v1186, %v1223
    %v1226 = vadd.f32 %v1189, %v1223
    %v1227 = vadd.f32 %v1191, %v1223
    %v1228 = vadd.f32 %v1194, %v1223
    %v1229 = vadd.f32 %v1196, %v1223
    %v1230 = vadd.f32 %v1199, %v1223
    %v1231 = vadd.f32 %v1201, %v1223
    %v1232 = vadd.f32 %v1204, %v1223
    %v1233 = vadd.f32 %v1206, %v1223
    %v1234 = vadd.f32 %v1209, %v1223
    %v1235 = vadd.f32 %v1211, %v1223
    %v1236 = vadd.f32 %v1214, %v1223
    %v1237 = vadd.f32 %v1216, %v1223
    %v1238 = vadd.f32 %v1219, %v1223
    %v1239 = vadd.f32 %v1221, %v1223
    %v1240 = vmax.f32 %v1224, 0.0
    %v1241 = vmax.f32 %v1225, 0.0
    %v1242 = vmax.f32 %v1226, 0.0
    %v1243 = vmax.f32 %v1227, 0.0
    %v1244 = vmax.f32 %v1228, 0.0
    %v1245 = vmax.f32 %v1229, 0.0
    %v1246 = vmax.f32 %v1230, 0.0
    %v1247 = vmax.f32 %v1231, 0.0
    %v1248 = vmax.f32 %v1232, 0.0
    %v1249 = vmax.f32 %v1233, 0.0
    %v1250 = vmax.f32 %v1234, 0.0
    %v1251 = vmax.f32 %v1235, 0.0
    %v1252 = vmax.f32 %v1236, 0.0
    %v1253 = vmax.f32 %v1237, 0.0
    %v1254 = vmax.f32 %v1238, 0.0
    %v1255 = vmax.f32 %v1239, 0.0
    %1256 = vst [vmem:[#allocation2 + $0x8] sm:$0xff] %v1240
    %1257 = vst [vmem:[#allocation2 + $0x10] sm:$0xff] %v1241
    %1258 = vst [vmem:[#allocation2 + $0x20] sm:$0xff] %v1242
    %1259 = vst [vmem:[#allocation2 + $0x28] sm:$0xff] %v1243
    %1260 = vst [vmem:[#allocation2 + $0x38] sm:$0xff] %v1244
    %1261 = vst [vmem:[#allocation2 + $0x40] sm:$0xff] %v1245
    %1262 = vst [vmem:[#allocation2 + $0x50] sm:$0xff] %v1246
    %1263 = vst [vmem:[#allocation2 + $0x58] sm:$0xff] %v1247
    %1264 = vst [vmem:[#allocation2 + $0x68] sm:$0xff] %v1248
    %1265 = vst [vmem:[#allocation2 + $0x70] sm:$0xff] %v1249
    %1266 = vst [vmem:[#allocation2 + $0x80] sm:$0xff] %v1250
    %1267 = vst [vmem:[#allocation2 + $0x88] sm:$0xff] %v1251
    %1268 = vst [vmem:[#allocation2 + $0x98] sm:$0xff] %v1252
    %1269 = vst [vmem:[#allocation2 + $0xa0] sm:$0xff] %v1253
    %1270 = vst [vmem:[#allocation2 + $0xb0] sm:$0xff] %v1254
    %1271 = vst [vmem:[#allocation2 + $0xb8] sm:$0xff] %v1255
    %v1272 = vld [vmem:[#allocation2 + $0x6] sm:$0xff]
    %v1273 = vld [vmem:[#allocation2 + $0xe] sm:$0xff]
    %v1274 = vld [vmem:[#allocation2 + $0x1e] sm:$0xff]
    %v1275 = vld [vmem:[#allocation2 + $0x26] sm:$0xff]
    %v1276 = vld [vmem:[#allocation2 + $0x36] sm:$0xff]
    %v1277 = vld [vmem:[#allocation2 + $0x3e] sm:$0xff]
    %v1278 = vld [vmem:[#allocation2 + $0x4e] sm:$0xff]
    %v1279 = vld [vmem:[#allocation2 + $0x56] sm:$0xff]
    %v1280 = vld [vmem:[#allocation2 + $0x66] sm:$0xff]
    %v1281 = vld [vmem:[#allocation2 + $0x6e] sm:$0xff]
    %v1282 = vld [vmem:[#allocation2 + $0x7e] sm:$0xff]
    %v1283 = vld [vmem:[#allocation2 + $0x86] sm:$0xff]
    %v1284 = vld [vmem:[#allocation2 + $0x96] sm:$0xff]
    %v1285 = vld [vmem:[#allocation2 + $0x9e] sm:$0xff]
    %v1286 = vld [vmem:[#allocation2 + $0xae] sm:$0xff]
    %v1287 = vld [vmem:[#allocation2 + $0xb6] sm:$0xff]
    %v1288 = vpack.c.bf16 %v1273, %v1272
    %v1289 = vpack.c.bf16 %v1275, %v1274
    %v1290 = vpack.c.bf16 %v1277, %v1276
    %v1291 = vpack.c.bf16 %v1279, %v1278
    %v1292 = vpack.c.bf16 %v1281, %v1280
    %v1293 = vpack.c.bf16 %v1283, %v1282
    %v1294 = vpack.c.bf16 %v1285, %v1284
    %v1295 = vpack.c.bf16 %v1287, %v1286
    %v1296 = vld [vmem:[#allocation7 + $0x1c0] sm:$0xf]
    %v1297 = vld [vmem:[#allocation7 + $0x1c4] sm:$0xf]
    %v1298 = vld [vmem:[#allocation7 + $0x1c8] sm:$0xf]
    %v1299 = vld [vmem:[#allocation7 + $0x1cc] sm:$0xf]
    %v1300 = vld [vmem:[#allocation7 + $0x1d0] sm:$0xf]
    %v1301 = vld [vmem:[#allocation7 + $0x1d4] sm:$0xf]
    %v1302 = vld [vmem:[#allocation7 + $0x1d8] sm:$0xf]
    %v1303 = vld [vmem:[#allocation7 + $0x1dc] sm:$0xf]
    %v1304 = vld [vmem:[#allocation7 + $0x1e0] sm:$0xf]
    %v1305 = vld [vmem:[#allocation7 + $0x1e4] sm:$0xf]
    %v1306 = vld [vmem:[#allocation7 + $0x1e8] sm:$0xf]
    %v1307 = vld [vmem:[#allocation7 + $0x1ec] sm:$0xf]
    %v1308 = vld [vmem:[#allocation7 + $0x1f0] sm:$0xf]
    %v1309 = vld [vmem:[#allocation7 + $0x1f4] sm:$0xf]
    %v1310 = vld [vmem:[#allocation7 + $0x1f8] sm:$0xf]
    %v1311 = vld [vmem:[#allocation7 + $0x1fc] sm:$0xf]
    %v1312 = vld [vmem:[#allocation2 + $0x8] sm:$0xff]
    %v1313 = vld [vmem:[#allocation2 + $0x10] sm:$0xff]
    %v1314 = vld [vmem:[#allocation2 + $0x20] sm:$0xff]
    %v1315 = vld [vmem:[#allocation2 + $0x28] sm:$0xff]
    %v1316 = vld [vmem:[#allocation2 + $0x38] sm:$0xff]
    %v1317 = vld [vmem:[#allocation2 + $0x40] sm:$0xff]
    %v1318 = vld [vmem:[#allocation2 + $0x50] sm:$0xff]
    %v1319 = vld [vmem:[#allocation2 + $0x58] sm:$0xff]
    %v1320 = vld [vmem:[#allocation2 + $0x68] sm:$0xff]
    %v1321 = vld [vmem:[#allocation2 + $0x70] sm:$0xff]
    %v1322 = vld [vmem:[#allocation2 + $0x80] sm:$0xff]
    %v1323 = vld [vmem:[#allocation2 + $0x88] sm:$0xff]
    %v1324 = vld [vmem:[#allocation2 + $0x98] sm:$0xff]
    %v1325 = vld [vmem:[#allocation2 + $0xa0] sm:$0xff]
    %v1326 = vld [vmem:[#allocation2 + $0xb0] sm:$0xff]
    %v1327 = vld [vmem:[#allocation2 + $0xb8] sm:$0xff]
    %v1328 = vpack.c.bf16 %v1313, %v1312
    %v1329 = vpack.c.bf16 %v1315, %v1314
    %v1330 = vpack.c.bf16 %v1317, %v1316
    %v1331 = vpack.c.bf16 %v1319, %v1318
    %v1332 = vpack.c.bf16 %v1321, %v1320
    %v1333 = vpack.c.bf16 %v1323, %v1322
    %v1334 = vpack.c.bf16 %v1325, %v1324
    %v1335 = vpack.c.bf16 %v1327, %v1326
    %v1336 = vld [vmem:[#allocation7 + $0x200] sm:$0xf]
    %v1337 = vld [vmem:[#allocation7 + $0x204] sm:$0xf]
    %v1338 = vld [vmem:[#allocation7 + $0x208] sm:$0xf]
    %v1339 = vld [vmem:[#allocation7 + $0x20c] sm:$0xf]
    %v1340 = vld [vmem:[#allocation7 + $0x210] sm:$0xf]
    %v1341 = vld [vmem:[#allocation7 + $0x214] sm:$0xf]
    %v1342 = vld [vmem:[#allocation7 + $0x218] sm:$0xf]
    %v1343 = vld [vmem:[#allocation7 + $0x21c] sm:$0xf]
    %v1344 = vld [vmem:[#allocation7 + $0x220] sm:$0xf]
    %v1345 = vld [vmem:[#allocation7 + $0x224] sm:$0xf]
    %v1346 = vld [vmem:[#allocation7 + $0x228] sm:$0xf]
    %v1347 = vld [vmem:[#allocation7 + $0x22c] sm:$0xf]
    %v1348 = vld [vmem:[#allocation7 + $0x230] sm:$0xf]
    %v1349 = vld [vmem:[#allocation7 + $0x234] sm:$0xf]
    %v1350 = vld [vmem:[#allocation7 + $0x238] sm:$0xf]
    %v1351 = vld [vmem:[#allocation7 + $0x23c] sm:$0xf]
    %v1368 = vunpack.c.l.b16 %v1336
    %v1369 = vunpack.c.l.b16 %v1337
    %v1370 = vunpack.c.l.b16 %v1338
    %v1371 = vunpack.c.l.b16 %v1339
    %v1372 = vunpack.c.l.b16 %v1340
    %v1373 = vunpack.c.l.b16 %v1341
    %v1374 = vunpack.c.l.b16 %v1342
    %v1375 = vunpack.c.l.b16 %v1343
    %v1376 = vunpack.c.l.b16 %v1344
    %v1377 = vunpack.c.l.b16 %v1345
    %v1378 = vunpack.c.l.b16 %v1346
    %v1379 = vunpack.c.l.b16 %v1347
    %v1380 = vunpack.c.l.b16 %v1348
    %v1381 = vunpack.c.l.b16 %v1349
    %v1382 = vunpack.c.l.b16 %v1350
    %v1383 = vunpack.c.l.b16 %v1351
    %v1384 = vpack.c.b16 %v1369, %v1368
    %v1385 = vpack.c.b16 %v1371, %v1370
    %v1386 = vpack.c.b16 %v1373, %v1372
    %v1387 = vpack.c.b16 %v1375, %v1374
    %v1388 = vpack.c.b16 %v1377, %v1376
    %v1389 = vpack.c.b16 %v1379, %v1378
    %v1390 = vpack.c.b16 %v1381, %v1380
    %v1391 = vpack.c.b16 %v1383, %v1382
    %1400 = vmatpush.bf16.msra.mxu0 %v1391
    %1401 = vmatpush.bf16.msra.mxu0 %v1390
    %1402 = vmatpush.bf16.msra.mxu0 %v1389
    %1403 = vmatpush.bf16.msra.mxu0 %v1388
    %1404 = vmatpush.bf16.msra.mxu0 %v1387
    %1405 = vmatpush.bf16.msra.mxu0 %v1386
    %1406 = vmatpush.bf16.msra.mxu0 %v1385
    %1407 = vmatpush.bf16.msra.mxu0 %v1384
    %1408 = vmatmul.bf16.gmra.mxu0 %v1328
    %v1409 = vpop.f32.mrf.mxu0
    %v1410 = vadd.f32 0.0, %v1409
    %v1411 = vpop.f32.mrf.mxu0
    %v1412 = vadd.f32 0.0, %v1411
    %1413 = vmatmul.bf16.gmra.mxu0 %v1329
    %v1414 = vpop.f32.mrf.mxu0
    %v1415 = vadd.f32 0.0, %v1414
    %v1416 = vpop.f32.mrf.mxu0
    %v1417 = vadd.f32 0.0, %v1416
    %1418 = vmatmul.bf16.gmra.mxu0 %v1330
    %v1419 = vpop.f32.mrf.mxu0
    %v1420 = vadd.f32 0.0, %v1419
    %v1421 = vpop.f32.mrf.mxu0
    %v1422 = vadd.f32 0.0, %v1421
    %1423 = vmatmul.bf16.gmra.mxu0 %v1331
    %v1424 = vpop.f32.mrf.mxu0
    %v1425 = vadd.f32 0.0, %v1424
    %v1426 = vpop.f32.mrf.mxu0
    %v1427 = vadd.f32 0.0, %v1426
    %1428 = vmatmul.bf16.gmra.mxu0 %v1332
    %v1429 = vpop.f32.mrf.mxu0
    %v1430 = vadd.f32 0.0, %v1429
    %v1431 = vpop.f32.mrf.mxu0
    %v1432 = vadd.f32 0.0, %v1431
    %1433 = vmatmul.bf16.gmra.mxu0 %v1333
    %v1434 = vpop.f32.mrf.mxu0
    %v1435 = vadd.f32 0.0, %v1434
    %v1436 = vpop.f32.mrf.mxu0
    %v1437 = vadd.f32 0.0, %v1436
    %1438 = vmatmul.bf16.gmra.mxu0 %v1334
    %v1439 = vpop.f32.mrf.mxu0
    %v1440 = vadd.f32 0.0, %v1439
    %v1441 = vpop.f32.mrf.mxu0
    %v1442 = vadd.f32 0.0, %v1441
    %1443 = vmatmul.bf16.gmra.mxu0 %v1335
    %v1444 = vpop.f32.mrf.mxu0
    %v1445 = vadd.f32 0.0, %v1444
    %v1446 = vpop.f32.mrf.mxu0
    %v1447 = vadd.f32 0.0, %v1446
    %1448 = vdwg.mxu0
    %v1465 = vunpack.c.l.b16 %v1296
    %v1466 = vunpack.c.l.b16 %v1297
    %v1467 = vunpack.c.l.b16 %v1298
    %v1468 = vunpack.c.l.b16 %v1299
    %v1469 = vunpack.c.l.b16 %v1300
    %v1470 = vunpack.c.l.b16 %v1301
    %v1471 = vunpack.c.l.b16 %v1302
    %v1472 = vunpack.c.l.b16 %v1303
    %v1473 = vunpack.c.l.b16 %v1304
    %v1474 = vunpack.c.l.b16 %v1305
    %v1475 = vunpack.c.l.b16 %v1306
    %v1476 = vunpack.c.l.b16 %v1307
    %v1477 = vunpack.c.l.b16 %v1308
    %v1478 = vunpack.c.l.b16 %v1309
    %v1479 = vunpack.c.l.b16 %v1310
    %v1480 = vunpack.c.l.b16 %v1311
    %v1481 = vpack.c.b16 %v1466, %v1465
    %v1482 = vpack.c.b16 %v1468, %v1467
    %v1483 = vpack.c.b16 %v1470, %v1469
    %v1484 = vpack.c.b16 %v1472, %v1471
    %v1485 = vpack.c.b16 %v1474, %v1473
    %v1486 = vpack.c.b16 %v1476, %v1475
    %v1487 = vpack.c.b16 %v1478, %v1477
    %v1488 = vpack.c.b16 %v1480, %v1479
    %1497 = vmatpush.bf16.msra.mxu0 %v1488
    %1498 = vmatpush.bf16.msra.mxu0 %v1487
    %1499 = vmatpush.bf16.msra.mxu0 %v1486
    %1500 = vmatpush.bf16.msra.mxu0 %v1485
    %1501 = vmatpush.bf16.msra.mxu0 %v1484
    %1502 = vmatpush.bf16.msra.mxu0 %v1483
    %1503 = vmatpush.bf16.msra.mxu0 %v1482
    %1504 = vmatpush.bf16.msra.mxu0 %v1481
    %1505 = vmatmul.bf16.gmra.mxu0 %v1288
    %v1506 = vpop.f32.mrf.mxu0
    %v1507 = vadd.f32 %v1410, %v1506
    %v1508 = vpop.f32.mrf.mxu0
    %v1509 = vadd.f32 %v1412, %v1508
    %1510 = vmatmul.bf16.gmra.mxu0 %v1289
    %v1511 = vpop.f32.mrf.mxu0
    %v1512 = vadd.f32 %v1415, %v1511
    %v1513 = vpop.f32.mrf.mxu0
    %v1514 = vadd.f32 %v1417, %v1513
    %1515 = vmatmul.bf16.gmra.mxu0 %v1290
    %v1516 = vpop.f32.mrf.mxu0
    %v1517 = vadd.f32 %v1420, %v1516
    %v1518 = vpop.f32.mrf.mxu0
    %v1519 = vadd.f32 %v1422, %v1518
    %1520 = vmatmul.bf16.gmra.mxu0 %v1291
    %v1521 = vpop.f32.mrf.mxu0
    %v1522 = vadd.f32 %v1425, %v1521
    %v1523 = vpop.f32.mrf.mxu0
    %v1524 = vadd.f32 %v1427, %v1523
    %1525 = vmatmul.bf16.gmra.mxu0 %v1292
    %v1526 = vpop.f32.mrf.mxu0
    %v1527 = vadd.f32 %v1430, %v1526
    %v1528 = vpop.f32.mrf.mxu0
    %v1529 = vadd.f32 %v1432, %v1528
    %1530 = vmatmul.bf16.gmra.mxu0 %v1293
    %v1531 = vpop.f32.mrf.mxu0
    %v1532 = vadd.f32 %v1435, %v1531
    %v1533 = vpop.f32.mrf.mxu0
    %v1534 = vadd.f32 %v1437, %v1533
    %1535 = vmatmul.bf16.gmra.mxu0 %v1294
    %v1536 = vpop.f32.mrf.mxu0
    %v1537 = vadd.f32 %v1440, %v1536
    %v1538 = vpop.f32.mrf.mxu0
    %v1539 = vadd.f32 %v1442, %v1538
    %1540 = vmatmul.bf16.gmra.mxu0 %v1295
    %v1541 = vpop.f32.mrf.mxu0
    %v1542 = vadd.f32 %v1445, %v1541
    %v1543 = vpop.f32.mrf.mxu0
    %v1544 = vadd.f32 %v1447, %v1543
    %1545 = vdwg.mxu0
    %v1546 = vperm.slane %v116, 4
    %v1547 = vadd.f32 %v1507, %v1546
    %v1548 = vadd.f32 %v1509, %v1546
    %v1549 = vadd.f32 %v1512, %v1546
    %v1550 = vadd.f32 %v1514, %v1546
    %v1551 = vadd.f32 %v1517, %v1546
    %v1552 = vadd.f32 %v1519, %v1546
    %v1553 = vadd.f32 %v1522, %v1546
    %v1554 = vadd.f32 %v1524, %v1546
    %v1555 = vadd.f32 %v1527, %v1546
    %v1556 = vadd.f32 %v1529, %v1546
    %v1557 = vadd.f32 %v1532, %v1546
    %v1558 = vadd.f32 %v1534, %v1546
    %v1559 = vadd.f32 %v1537, %v1546
    %v1560 = vadd.f32 %v1539, %v1546
    %v1561 = vadd.f32 %v1542, %v1546
    %v1562 = vadd.f32 %v1544, %v1546
    %v1563 = vmax.f32 %v1547, 0.0
    %v1564 = vmax.f32 %v1548, 0.0
    %v1565 = vmax.f32 %v1549, 0.0
    %v1566 = vmax.f32 %v1550, 0.0
    %v1567 = vmax.f32 %v1551, 0.0
    %v1568 = vmax.f32 %v1552, 0.0
    %v1569 = vmax.f32 %v1553, 0.0
    %v1570 = vmax.f32 %v1554, 0.0
    %v1571 = vmax.f32 %v1555, 0.0
    %v1572 = vmax.f32 %v1556, 0.0
    %v1573 = vmax.f32 %v1557, 0.0
    %v1574 = vmax.f32 %v1558, 0.0
    %v1575 = vmax.f32 %v1559, 0.0
    %v1576 = vmax.f32 %v1560, 0.0
    %v1577 = vmax.f32 %v1561, 0.0
    %v1578 = vmax.f32 %v1562, 0.0
    %v1579 = vld [vmem:[#allocation3] sm:$0xff]
    %v1580 = vld [vmem:[#allocation3 + $0x8] sm:$0xff]
    %v1581 = vld [vmem:[#allocation3 + $0x10] sm:$0xff]
    %v1582 = vld [vmem:[#allocation3 + $0x18] sm:$0xff]
    %v1583 = vld [vmem:[#allocation3 + $0x20] sm:$0xff]
    %v1584 = vld [vmem:[#allocation3 + $0x28] sm:$0xff]
    %v1585 = vld [vmem:[#allocation3 + $0x30] sm:$0xff]
    %v1586 = vld [vmem:[#allocation3 + $0x38] sm:$0xff]
    %v1587 = vld [vmem:[#allocation3 + $0x40] sm:$0xff]
    %v1588 = vld [vmem:[#allocation3 + $0x48] sm:$0xff]
    %v1589 = vld [vmem:[#allocation3 + $0x50] sm:$0xff]
    %v1590 = vld [vmem:[#allocation3 + $0x58] sm:$0xff]
    %v1591 = vld [vmem:[#allocation3 + $0x60] sm:$0xff]
    %v1592 = vld [vmem:[#allocation3 + $0x68] sm:$0xff]
    %v1593 = vld [vmem:[#allocation3 + $0x70] sm:$0xff]
    %v1594 = vld [vmem:[#allocation3 + $0x78] sm:$0xff]
    %v1595 = vadd.f32 %v1563, %v1579
    %v1596 = vadd.f32 %v1564, %v1580
    %v1597 = vadd.f32 %v1565, %v1581
    %v1598 = vadd.f32 %v1566, %v1582
    %v1599 = vadd.f32 %v1567, %v1583
    %v1600 = vadd.f32 %v1568, %v1584
    %v1601 = vadd.f32 %v1569, %v1585
    %v1602 = vadd.f32 %v1570, %v1586
    %v1603 = vadd.f32 %v1571, %v1587
    %v1604 = vadd.f32 %v1572, %v1588
    %v1605 = vadd.f32 %v1573, %v1589
    %v1606 = vadd.f32 %v1574, %v1590
    %v1607 = vadd.f32 %v1575, %v1591
    %v1608 = vadd.f32 %v1576, %v1592
    %v1609 = vadd.f32 %v1577, %v1593
    %v1610 = vadd.f32 %v1578, %v1594
    %v1611 = vmax.f32 %v1595, 0.0
    %v1612 = vmax.f32 %v1596, 0.0
    %v1613 = vmax.f32 %v1597, 0.0
    %v1614 = vmax.f32 %v1598, 0.0
    %v1615 = vmax.f32 %v1599, 0.0
    %v1616 = vmax.f32 %v1600, 0.0
    %v1617 = vmax.f32 %v1601, 0.0
    %v1618 = vmax.f32 %v1602, 0.0
    %v1619 = vmax.f32 %v1603, 0.0
    %v1620 = vmax.f32 %v1604, 0.0
    %v1621 = vmax.f32 %v1605, 0.0
    %v1622 = vmax.f32 %v1606, 0.0
    %v1623 = vmax.f32 %v1607, 0.0
    %v1624 = vmax.f32 %v1608, 0.0
    %v1625 = vmax.f32 %v1609, 0.0
    %v1626 = vmax.f32 %v1610, 0.0
    %1627 = vst [vmem:[#allocation2 + $0x8] sm:$0xff] %v1611
    %1628 = vst [vmem:[#allocation2 + $0x10] sm:$0xff] %v1612
    %1629 = vst [vmem:[#allocation2 + $0x20] sm:$0xff] %v1613
    %1630 = vst [vmem:[#allocation2 + $0x28] sm:$0xff] %v1614
    %1631 = vst [vmem:[#allocation2 + $0x38] sm:$0xff] %v1615
    %1632 = vst [vmem:[#allocation2 + $0x40] sm:$0xff] %v1616
    %1633 = vst [vmem:[#allocation2 + $0x50] sm:$0xff] %v1617
    %1634 = vst [vmem:[#allocation2 + $0x58] sm:$0xff] %v1618
    %1635 = vst [vmem:[#allocation2 + $0x68] sm:$0xff] %v1619
    %1636 = vst [vmem:[#allocation2 + $0x70] sm:$0xff] %v1620
    %1637 = vst [vmem:[#allocation2 + $0x80] sm:$0xff] %v1621
    %1638 = vst [vmem:[#allocation2 + $0x88] sm:$0xff] %v1622
    %1639 = vst [vmem:[#allocation2 + $0x98] sm:$0xff] %v1623
    %1640 = vst [vmem:[#allocation2 + $0xa0] sm:$0xff] %v1624
    %1641 = vst [vmem:[#allocation2 + $0xb0] sm:$0xff] %v1625
    %1642 = vst [vmem:[#allocation2 + $0xb8] sm:$0xff] %v1626
    %1643 = vst [vmem:[#allocation3] sm:$0xff] %v1611
    %1644 = vst [vmem:[#allocation3 + $0x8] sm:$0xff] %v1612
    %1645 = vst [vmem:[#allocation3 + $0x10] sm:$0xff] %v1613
    %1646 = vst [vmem:[#allocation3 + $0x18] sm:$0xff] %v1614
    %1647 = vst [vmem:[#allocation3 + $0x20] sm:$0xff] %v1615
    %1648 = vst [vmem:[#allocation3 + $0x28] sm:$0xff] %v1616
    %1649 = vst [vmem:[#allocation3 + $0x30] sm:$0xff] %v1617
    %1650 = vst [vmem:[#allocation3 + $0x38] sm:$0xff] %v1618
    %1651 = vst [vmem:[#allocation3 + $0x40] sm:$0xff] %v1619
    %1652 = vst [vmem:[#allocation3 + $0x48] sm:$0xff] %v1620
    %1653 = vst [vmem:[#allocation3 + $0x50] sm:$0xff] %v1621
    %1654 = vst [vmem:[#allocation3 + $0x58] sm:$0xff] %v1622
    %1655 = vst [vmem:[#allocation3 + $0x60] sm:$0xff] %v1623
    %1656 = vst [vmem:[#allocation3 + $0x68] sm:$0xff] %v1624
    %1657 = vst [vmem:[#allocation3 + $0x70] sm:$0xff] %v1625
    %1658 = vst [vmem:[#allocation3 + $0x78] sm:$0xff] %v1626
    %v1659 = vld [vmem:[#allocation2 + $0x4] sm:$0xff]
    %v1660 = vld [vmem:[#allocation2 + $0xc] sm:$0xff]
    %v1661 = vld [vmem:[#allocation2 + $0x1c] sm:$0xff]
    %v1662 = vld [vmem:[#allocation2 + $0x24] sm:$0xff]
    %v1663 = vld [vmem:[#allocation2 + $0x34] sm:$0xff]
    %v1664 = vld [vmem:[#allocation2 + $0x3c] sm:$0xff]
    %v1665 = vld [vmem:[#allocation2 + $0x4c] sm:$0xff]
    %v1666 = vld [vmem:[#allocation2 + $0x54] sm:$0xff]
    %v1667 = vld [vmem:[#allocation2 + $0x64] sm:$0xff]
    %v1668 = vld [vmem:[#allocation2 + $0x6c] sm:$0xff]
    %v1669 = vld [vmem:[#allocation2 + $0x7c] sm:$0xff]
    %v1670 = vld [vmem:[#allocation2 + $0x84] sm:$0xff]
    %v1671 = vld [vmem:[#allocation2 + $0x94] sm:$0xff]
    %v1672 = vld [vmem:[#allocation2 + $0x9c] sm:$0xff]
    %v1673 = vld [vmem:[#allocation2 + $0xac] sm:$0xff]
    %v1674 = vld [vmem:[#allocation2 + $0xb4] sm:$0xff]
    %v1675 = vpack.c.bf16 %v1660, %v1659
    %v1676 = vpack.c.bf16 %v1662, %v1661
    %v1677 = vpack.c.bf16 %v1664, %v1663
    %v1678 = vpack.c.bf16 %v1666, %v1665
    %v1679 = vpack.c.bf16 %v1668, %v1667
    %v1680 = vpack.c.bf16 %v1670, %v1669
    %v1681 = vpack.c.bf16 %v1672, %v1671
    %v1682 = vpack.c.bf16 %v1674, %v1673
    %v1683 = vld [vmem:[#allocation7 + $0x240] sm:$0xf]
    %v1684 = vld [vmem:[#allocation7 + $0x244] sm:$0xf]
    %v1685 = vld [vmem:[#allocation7 + $0x248] sm:$0xf]
    %v1686 = vld [vmem:[#allocation7 + $0x24c] sm:$0xf]
    %v1687 = vld [vmem:[#allocation7 + $0x250] sm:$0xf]
    %v1688 = vld [vmem:[#allocation7 + $0x254] sm:$0xf]
    %v1689 = vld [vmem:[#allocation7 + $0x258] sm:$0xf]
    %v1690 = vld [vmem:[#allocation7 + $0x25c] sm:$0xf]
    %v1691 = vld [vmem:[#allocation7 + $0x260] sm:$0xf]
    %v1692 = vld [vmem:[#allocation7 + $0x264] sm:$0xf]
    %v1693 = vld [vmem:[#allocation7 + $0x268] sm:$0xf]
    %v1694 = vld [vmem:[#allocation7 + $0x26c] sm:$0xf]
    %v1695 = vld [vmem:[#allocation7 + $0x270] sm:$0xf]
    %v1696 = vld [vmem:[#allocation7 + $0x274] sm:$0xf]
    %v1697 = vld [vmem:[#allocation7 + $0x278] sm:$0xf]
    %v1698 = vld [vmem:[#allocation7 + $0x27c] sm:$0xf]
    %v1699 = vld [vmem:[#allocation2 + $0x8] sm:$0xff]
    %v1700 = vld [vmem:[#allocation2 + $0x10] sm:$0xff]
    %v1701 = vld [vmem:[#allocation2 + $0x20] sm:$0xff]
    %v1702 = vld [vmem:[#allocation2 + $0x28] sm:$0xff]
    %v1703 = vld [vmem:[#allocation2 + $0x38] sm:$0xff]
    %v1704 = vld [vmem:[#allocation2 + $0x40] sm:$0xff]
    %v1705 = vld [vmem:[#allocation2 + $0x50] sm:$0xff]
    %v1706 = vld [vmem:[#allocation2 + $0x58] sm:$0xff]
    %v1707 = vld [vmem:[#allocation2 + $0x68] sm:$0xff]
    %v1708 = vld [vmem:[#allocation2 + $0x70] sm:$0xff]
    %v1709 = vld [vmem:[#allocation2 + $0x80] sm:$0xff]
    %v1710 = vld [vmem:[#allocation2 + $0x88] sm:$0xff]
    %v1711 = vld [vmem:[#allocation2 + $0x98] sm:$0xff]
    %v1712 = vld [vmem:[#allocation2 + $0xa0] sm:$0xff]
    %v1713 = vld [vmem:[#allocation2 + $0xb0] sm:$0xff]
    %v1714 = vld [vmem:[#allocation2 + $0xb8] sm:$0xff]
    %v1715 = vpack.c.bf16 %v1700, %v1699
    %v1716 = vpack.c.bf16 %v1702, %v1701
    %v1717 = vpack.c.bf16 %v1704, %v1703
    %v1718 = vpack.c.bf16 %v1706, %v1705
    %v1719 = vpack.c.bf16 %v1708, %v1707
    %v1720 = vpack.c.bf16 %v1710, %v1709
    %v1721 = vpack.c.bf16 %v1712, %v1711
    %v1722 = vpack.c.bf16 %v1714, %v1713
    %v1723 = vld [vmem:[#allocation7 + $0x280] sm:$0xf]
    %v1724 = vld [vmem:[#allocation7 + $0x284] sm:$0xf]
    %v1725 = vld [vmem:[#allocation7 + $0x288] sm:$0xf]
    %v1726 = vld [vmem:[#allocation7 + $0x28c] sm:$0xf]
    %v1727 = vld [vmem:[#allocation7 + $0x290] sm:$0xf]
    %v1728 = vld [vmem:[#allocation7 + $0x294] sm:$0xf]
    %v1729 = vld [vmem:[#allocation7 + $0x298] sm:$0xf]
    %v1730 = vld [vmem:[#allocation7 + $0x29c] sm:$0xf]
    %v1731 = vld [vmem:[#allocation7 + $0x2a0] sm:$0xf]
    %v1732 = vld [vmem:[#allocation7 + $0x2a4] sm:$0xf]
    %v1733 = vld [vmem:[#allocation7 + $0x2a8] sm:$0xf]
    %v1734 = vld [vmem:[#allocation7 + $0x2ac] sm:$0xf]
    %v1735 = vld [vmem:[#allocation7 + $0x2b0] sm:$0xf]
    %v1736 = vld [vmem:[#allocation7 + $0x2b4] sm:$0xf]
    %v1737 = vld [vmem:[#allocation7 + $0x2b8] sm:$0xf]
    %v1738 = vld [vmem:[#allocation7 + $0x2bc] sm:$0xf]
    %v1755 = vunpack.c.l.b16 %v1723
    %v1756 = vunpack.c.l.b16 %v1724
    %v1757 = vunpack.c.l.b16 %v1725
    %v1758 = vunpack.c.l.b16 %v1726
    %v1759 = vunpack.c.l.b16 %v1727
    %v1760 = vunpack.c.l.b16 %v1728
    %v1761 = vunpack.c.l.b16 %v1729
    %v1762 = vunpack.c.l.b16 %v1730
    %v1763 = vunpack.c.l.b16 %v1731
    %v1764 = vunpack.c.l.b16 %v1732
    %v1765 = vunpack.c.l.b16 %v1733
    %v1766 = vunpack.c.l.b16 %v1734
    %v1767 = vunpack.c.l.b16 %v1735
    %v1768 = vunpack.c.l.b16 %v1736
    %v1769 = vunpack.c.l.b16 %v1737
    %v1770 = vunpack.c.l.b16 %v1738
    %v1771 = vpack.c.b16 %v1756, %v1755
    %v1772 = vpack.c.b16 %v1758, %v1757
    %v1773 = vpack.c.b16 %v1760, %v1759
    %v1774 = vpack.c.b16 %v1762, %v1761
    %v1775 = vpack.c.b16 %v1764, %v1763
    %v1776 = vpack.c.b16 %v1766, %v1765
    %v1777 = vpack.c.b16 %v1768, %v1767
    %v1778 = vpack.c.b16 %v1770, %v1769
    %1787 = vmatpush.bf16.msra.mxu0 %v1778
    %1788 = vmatpush.bf16.msra.mxu0 %v1777
    %1789 = vmatpush.bf16.msra.mxu0 %v1776
    %1790 = vmatpush.bf16.msra.mxu0 %v1775
    %1791 = vmatpush.bf16.msra.mxu0 %v1774
    %1792 = vmatpush.bf16.msra.mxu0 %v1773
    %1793 = vmatpush.bf16.msra.mxu0 %v1772
    %1794 = vmatpush.bf16.msra.mxu0 %v1771
    %1795 = vmatmul.bf16.gmra.mxu0 %v1715
    %v1796 = vpop.f32.mrf.mxu0
    %v1797 = vadd.f32 0.0, %v1796
    %v1798 = vpop.f32.mrf.mxu0
    %v1799 = vadd.f32 0.0, %v1798
    %1800 = vmatmul.bf16.gmra.mxu0 %v1716
    %v1801 = vpop.f32.mrf.mxu0
    %v1802 = vadd.f32 0.0, %v1801
    %v1803 = vpop.f32.mrf.mxu0
    %v1804 = vadd.f32 0.0, %v1803
    %1805 = vmatmul.bf16.gmra.mxu0 %v1717
    %v1806 = vpop.f32.mrf.mxu0
    %v1807 = vadd.f32 0.0, %v1806
    %v1808 = vpop.f32.mrf.mxu0
    %v1809 = vadd.f32 0.0, %v1808
    %1810 = vmatmul.bf16.gmra.mxu0 %v1718
    %v1811 = vpop.f32.mrf.mxu0
    %v1812 = vadd.f32 0.0, %v1811
    %v1813 = vpop.f32.mrf.mxu0
    %v1814 = vadd.f32 0.0, %v1813
    %1815 = vmatmul.bf16.gmra.mxu0 %v1719
    %v1816 = vpop.f32.mrf.mxu0
    %v1817 = vadd.f32 0.0, %v1816
    %v1818 = vpop.f32.mrf.mxu0
    %v1819 = vadd.f32 0.0, %v1818
    %1820 = vmatmul.bf16.gmra.mxu0 %v1720
    %v1821 = vpop.f32.mrf.mxu0
    %v1822 = vadd.f32 0.0, %v1821
    %v1823 = vpop.f32.mrf.mxu0
    %v1824 = vadd.f32 0.0, %v1823
    %1825 = vmatmul.bf16.gmra.mxu0 %v1721
    %v1826 = vpop.f32.mrf.mxu0
    %v1827 = vadd.f32 0.0, %v1826
    %v1828 = vpop.f32.mrf.mxu0
    %v1829 = vadd.f32 0.0, %v1828
    %1830 = vmatmul.bf16.gmra.mxu0 %v1722
    %v1831 = vpop.f32.mrf.mxu0
    %v1832 = vadd.f32 0.0, %v1831
    %v1833 = vpop.f32.mrf.mxu0
    %v1834 = vadd.f32 0.0, %v1833
    %1835 = vdwg.mxu0
    %v1852 = vunpack.c.l.b16 %v1683
    %v1853 = vunpack.c.l.b16 %v1684
    %v1854 = vunpack.c.l.b16 %v1685
    %v1855 = vunpack.c.l.b16 %v1686
    %v1856 = vunpack.c.l.b16 %v1687
    %v1857 = vunpack.c.l.b16 %v1688
    %v1858 = vunpack.c.l.b16 %v1689
    %v1859 = vunpack.c.l.b16 %v1690
    %v1860 = vunpack.c.l.b16 %v1691
    %v1861 = vunpack.c.l.b16 %v1692
    %v1862 = vunpack.c.l.b16 %v1693
    %v1863 = vunpack.c.l.b16 %v1694
    %v1864 = vunpack.c.l.b16 %v1695
    %v1865 = vunpack.c.l.b16 %v1696
    %v1866 = vunpack.c.l.b16 %v1697
    %v1867 = vunpack.c.l.b16 %v1698
    %v1868 = vpack.c.b16 %v1853, %v1852
    %v1869 = vpack.c.b16 %v1855, %v1854
    %v1870 = vpack.c.b16 %v1857, %v1856
    %v1871 = vpack.c.b16 %v1859, %v1858
    %v1872 = vpack.c.b16 %v1861, %v1860
    %v1873 = vpack.c.b16 %v1863, %v1862
    %v1874 = vpack.c.b16 %v1865, %v1864
    %v1875 = vpack.c.b16 %v1867, %v1866
    %1884 = vmatpush.bf16.msra.mxu0 %v1875
    %1885 = vmatpush.bf16.msra.mxu0 %v1874
    %1886 = vmatpush.bf16.msra.mxu0 %v1873
    %1887 = vmatpush.bf16.msra.mxu0 %v1872
    %1888 = vmatpush.bf16.msra.mxu0 %v1871
    %1889 = vmatpush.bf16.msra.mxu0 %v1870
    %1890 = vmatpush.bf16.msra.mxu0 %v1869
    %1891 = vmatpush.bf16.msra.mxu0 %v1868
    %1892 = vmatmul.bf16.gmra.mxu0 %v1675
    %v1893 = vpop.f32.mrf.mxu0
    %v1894 = vadd.f32 %v1797, %v1893
    %v1895 = vpop.f32.mrf.mxu0
    %v1896 = vadd.f32 %v1799, %v1895
    %1897 = vmatmul.bf16.gmra.mxu0 %v1676
    %v1898 = vpop.f32.mrf.mxu0
    %v1899 = vadd.f32 %v1802, %v1898
    %v1900 = vpop.f32.mrf.mxu0
    %v1901 = vadd.f32 %v1804, %v1900
    %1902 = vmatmul.bf16.gmra.mxu0 %v1677
    %v1903 = vpop.f32.mrf.mxu0
    %v1904 = vadd.f32 %v1807, %v1903
    %v1905 = vpop.f32.mrf.mxu0
    %v1906 = vadd.f32 %v1809, %v1905
    %1907 = vmatmul.bf16.gmra.mxu0 %v1678
    %v1908 = vpop.f32.mrf.mxu0
    %v1909 = vadd.f32 %v1812, %v1908
    %v1910 = vpop.f32.mrf.mxu0
    %v1911 = vadd.f32 %v1814, %v1910
    %1912 = vmatmul.bf16.gmra.mxu0 %v1679
    %v1913 = vpop.f32.mrf.mxu0
    %v1914 = vadd.f32 %v1817, %v1913
    %v1915 = vpop.f32.mrf.mxu0
    %v1916 = vadd.f32 %v1819, %v1915
    %1917 = vmatmul.bf16.gmra.mxu0 %v1680
    %v1918 = vpop.f32.mrf.mxu0
    %v1919 = vadd.f32 %v1822, %v1918
    %v1920 = vpop.f32.mrf.mxu0
    %v1921 = vadd.f32 %v1824, %v1920
    %1922 = vmatmul.bf16.gmra.mxu0 %v1681
    %v1923 = vpop.f32.mrf.mxu0
    %v1924 = vadd.f32 %v1827, %v1923
    %v1925 = vpop.f32.mrf.mxu0
    %v1926 = vadd.f32 %v1829, %v1925
    %1927 = vmatmul.bf16.gmra.mxu0 %v1682
    %v1928 = vpop.f32.mrf.mxu0
    %v1929 = vadd.f32 %v1832, %v1928
    %v1930 = vpop.f32.mrf.mxu0
    %v1931 = vadd.f32 %v1834, %v1930
    %1932 = vdwg.mxu0
    %v1933 = vperm.slane %v116, 5
    %v1934 = vadd.f32 %v1894, %v1933
    %v1935 = vadd.f32 %v1896, %v1933
    %v1936 = vadd.f32 %v1899, %v1933
    %v1937 = vadd.f32 %v1901, %v1933
    %v1938 = vadd.f32 %v1904, %v1933
    %v1939 = vadd.f32 %v1906, %v1933
    %v1940 = vadd.f32 %v1909, %v1933
    %v1941 = vadd.f32 %v1911, %v1933
    %v1942 = vadd.f32 %v1914, %v1933
    %v1943 = vadd.f32 %v1916, %v1933
    %v1944 = vadd.f32 %v1919, %v1933
    %v1945 = vadd.f32 %v1921, %v1933
    %v1946 = vadd.f32 %v1924, %v1933
    %v1947 = vadd.f32 %v1926, %v1933
    %v1948 = vadd.f32 %v1929, %v1933
    %v1949 = vadd.f32 %v1931, %v1933
    %v1950 = vmax.f32 %v1934, 0.0
    %v1951 = vmax.f32 %v1935, 0.0
    %v1952 = vmax.f32 %v1936, 0.0
    %v1953 = vmax.f32 %v1937, 0.0
    %v1954 = vmax.f32 %v1938, 0.0
    %v1955 = vmax.f32 %v1939, 0.0
    %v1956 = vmax.f32 %v1940, 0.0
    %v1957 = vmax.f32 %v1941, 0.0
    %v1958 = vmax.f32 %v1942, 0.0
    %v1959 = vmax.f32 %v1943, 0.0
    %v1960 = vmax.f32 %v1944, 0.0
    %v1961 = vmax.f32 %v1945, 0.0
    %v1962 = vmax.f32 %v1946, 0.0
    %v1963 = vmax.f32 %v1947, 0.0
    %v1964 = vmax.f32 %v1948, 0.0
    %v1965 = vmax.f32 %v1949, 0.0
    %1966 = vst [vmem:[#allocation2 + $0x8] sm:$0xff] %v1950
    %1967 = vst [vmem:[#allocation2 + $0x10] sm:$0xff] %v1951
    %1968 = vst [vmem:[#allocation2 + $0x20] sm:$0xff] %v1952
    %1969 = vst [vmem:[#allocation2 + $0x28] sm:$0xff] %v1953
    %1970 = vst [vmem:[#allocation2 + $0x38] sm:$0xff] %v1954
    %1971 = vst [vmem:[#allocation2 + $0x40] sm:$0xff] %v1955
    %1972 = vst [vmem:[#allocation2 + $0x50] sm:$0xff] %v1956
    %1973 = vst [vmem:[#allocation2 + $0x58] sm:$0xff] %v1957
    %1974 = vst [vmem:[#allocation2 + $0x68] sm:$0xff] %v1958
    %1975 = vst [vmem:[#allocation2 + $0x70] sm:$0xff] %v1959
    %1976 = vst [vmem:[#allocation2 + $0x80] sm:$0xff] %v1960
    %1977 = vst [vmem:[#allocation2 + $0x88] sm:$0xff] %v1961
    %1978 = vst [vmem:[#allocation2 + $0x98] sm:$0xff] %v1962
    %1979 = vst [vmem:[#allocation2 + $0xa0] sm:$0xff] %v1963
    %1980 = vst [vmem:[#allocation2 + $0xb0] sm:$0xff] %v1964
    %1981 = vst [vmem:[#allocation2 + $0xb8] sm:$0xff] %v1965
    %v1982 = vld [vmem:[#allocation2 + $0x4] sm:$0xff]
    %v1983 = vld [vmem:[#allocation2 + $0xc] sm:$0xff]
    %v1984 = vld [vmem:[#allocation2 + $0x1c] sm:$0xff]
    %v1985 = vld [vmem:[#allocation2 + $0x24] sm:$0xff]
    %v1986 = vld [vmem:[#allocation2 + $0x34] sm:$0xff]
    %v1987 = vld [vmem:[#allocation2 + $0x3c] sm:$0xff]
    %v1988 = vld [vmem:[#allocation2 + $0x4c] sm:$0xff]
    %v1989 = vld [vmem:[#allocation2 + $0x54] sm:$0xff]
    %v1990 = vld [vmem:[#allocation2 + $0x64] sm:$0xff]
    %v1991 = vld [vmem:[#allocation2 + $0x6c] sm:$0xff]
    %v1992 = vld [vmem:[#allocation2 + $0x7c] sm:$0xff]
    %v1993 = vld [vmem:[#allocation2 + $0x84] sm:$0xff]
    %v1994 = vld [vmem:[#allocation2 + $0x94] sm:$0xff]
    %v1995 = vld [vmem:[#allocation2 + $0x9c] sm:$0xff]
    %v1996 = vld [vmem:[#allocation2 + $0xac] sm:$0xff]
    %v1997 = vld [vmem:[#allocation2 + $0xb4] sm:$0xff]
    %v1998 = vpack.c.bf16 %v1983, %v1982
    %v1999 = vpack.c.bf16 %v1985, %v1984
    %v2000 = vpack.c.bf16 %v1987, %v1986
    %v2001 = vpack.c.bf16 %v1989, %v1988
    %v2002 = vpack.c.bf16 %v1991, %v1990
    %v2003 = vpack.c.bf16 %v1993, %v1992
    %v2004 = vpack.c.bf16 %v1995, %v1994
    %v2005 = vpack.c.bf16 %v1997, %v1996
    %v2006 = vld [vmem:[#allocation7 + $0x2c0] sm:$0xf]
    %v2007 = vld [vmem:[#allocation7 + $0x2c4] sm:$0xf]
    %v2008 = vld [vmem:[#allocation7 + $0x2c8] sm:$0xf]
    %v2009 = vld [vmem:[#allocation7 + $0x2cc] sm:$0xf]
    %v2010 = vld [vmem:[#allocation7 + $0x2d0] sm:$0xf]
    %v2011 = vld [vmem:[#allocation7 + $0x2d4] sm:$0xf]
    %v2012 = vld [vmem:[#allocation7 + $0x2d8] sm:$0xf]
    %v2013 = vld [vmem:[#allocation7 + $0x2dc] sm:$0xf]
    %v2014 = vld [vmem:[#allocation7 + $0x2e0] sm:$0xf]
    %v2015 = vld [vmem:[#allocation7 + $0x2e4] sm:$0xf]
    %v2016 = vld [vmem:[#allocation7 + $0x2e8] sm:$0xf]
    %v2017 = vld [vmem:[#allocation7 + $0x2ec] sm:$0xf]
    %v2018 = vld [vmem:[#allocation7 + $0x2f0] sm:$0xf]
    %v2019 = vld [vmem:[#allocation7 + $0x2f4] sm:$0xf]
    %v2020 = vld [vmem:[#allocation7 + $0x2f8] sm:$0xf]
    %v2021 = vld [vmem:[#allocation7 + $0x2fc] sm:$0xf]
    %v2022 = vld [vmem:[#allocation2 + $0x8] sm:$0xff]
    %v2023 = vld [vmem:[#allocation2 + $0x10] sm:$0xff]
    %v2024 = vld [vmem:[#allocation2 + $0x20] sm:$0xff]
    %v2025 = vld [vmem:[#allocation2 + $0x28] sm:$0xff]
    %v2026 = vld [vmem:[#allocation2 + $0x38] sm:$0xff]
    %v2027 = vld [vmem:[#allocation2 + $0x40] sm:$0xff]
    %v2028 = vld [vmem:[#allocation2 + $0x50] sm:$0xff]
    %v2029 = vld [vmem:[#allocation2 + $0x58] sm:$0xff]
    %v2030 = vld [vmem:[#allocation2 + $0x68] sm:$0xff]
    %v2031 = vld [vmem:[#allocation2 + $0x70] sm:$0xff]
    %v2032 = vld [vmem:[#allocation2 + $0x80] sm:$0xff]
    %v2033 = vld [vmem:[#allocation2 + $0x88] sm:$0xff]
    %v2034 = vld [vmem:[#allocation2 + $0x98] sm:$0xff]
    %v2035 = vld [vmem:[#allocation2 + $0xa0] sm:$0xff]
    %v2036 = vld [vmem:[#allocation2 + $0xb0] sm:$0xff]
    %v2037 = vld [vmem:[#allocation2 + $0xb8] sm:$0xff]
    %v2038 = vpack.c.bf16 %v2023, %v2022
    %v2039 = vpack.c.bf16 %v2025, %v2024
    %v2040 = vpack.c.bf16 %v2027, %v2026
    %v2041 = vpack.c.bf16 %v2029, %v2028
    %v2042 = vpack.c.bf16 %v2031, %v2030
    %v2043 = vpack.c.bf16 %v2033, %v2032
    %v2044 = vpack.c.bf16 %v2035, %v2034
    %v2045 = vpack.c.bf16 %v2037, %v2036
    %v2046 = vld [vmem:[#allocation7 + $0x300] sm:$0xf]
    %v2047 = vld [vmem:[#allocation7 + $0x304] sm:$0xf]
    %v2048 = vld [vmem:[#allocation7 + $0x308] sm:$0xf]
    %v2049 = vld [vmem:[#allocation7 + $0x30c] sm:$0xf]
    %v2050 = vld [vmem:[#allocation7 + $0x310] sm:$0xf]
    %v2051 = vld [vmem:[#allocation7 + $0x314] sm:$0xf]
    %v2052 = vld [vmem:[#allocation7 + $0x318] sm:$0xf]
    %v2053 = vld [vmem:[#allocation7 + $0x31c] sm:$0xf]
    %v2054 = vld [vmem:[#allocation7 + $0x320] sm:$0xf]
    %v2055 = vld [vmem:[#allocation7 + $0x324] sm:$0xf]
    %v2056 = vld [vmem:[#allocation7 + $0x328] sm:$0xf]
    %v2057 = vld [vmem:[#allocation7 + $0x32c] sm:$0xf]
    %v2058 = vld [vmem:[#allocation7 + $0x330] sm:$0xf]
    %v2059 = vld [vmem:[#allocation7 + $0x334] sm:$0xf]
    %v2060 = vld [vmem:[#allocation7 + $0x338] sm:$0xf]
    %v2061 = vld [vmem:[#allocation7 + $0x33c] sm:$0xf]
    %v2078 = vunpack.c.l.b16 %v2046
    %v2079 = vunpack.c.l.b16 %v2047
    %v2080 = vunpack.c.l.b16 %v2048
    %v2081 = vunpack.c.l.b16 %v2049
    %v2082 = vunpack.c.l.b16 %v2050
    %v2083 = vunpack.c.l.b16 %v2051
    %v2084 = vunpack.c.l.b16 %v2052
    %v2085 = vunpack.c.l.b16 %v2053
    %v2086 = vunpack.c.l.b16 %v2054
    %v2087 = vunpack.c.l.b16 %v2055
    %v2088 = vunpack.c.l.b16 %v2056
    %v2089 = vunpack.c.l.b16 %v2057
    %v2090 = vunpack.c.l.b16 %v2058
    %v2091 = vunpack.c.l.b16 %v2059
    %v2092 = vunpack.c.l.b16 %v2060
    %v2093 = vunpack.c.l.b16 %v2061
    %v2094 = vpack.c.b16 %v2079, %v2078
    %v2095 = vpack.c.b16 %v2081, %v2080
    %v2096 = vpack.c.b16 %v2083, %v2082
    %v2097 = vpack.c.b16 %v2085, %v2084
    %v2098 = vpack.c.b16 %v2087, %v2086
    %v2099 = vpack.c.b16 %v2089, %v2088
    %v2100 = vpack.c.b16 %v2091, %v2090
    %v2101 = vpack.c.b16 %v2093, %v2092
    %2110 = vmatpush.bf16.msra.mxu0 %v2101
    %2111 = vmatpush.bf16.msra.mxu0 %v2100
    %2112 = vmatpush.bf16.msra.mxu0 %v2099
    %2113 = vmatpush.bf16.msra.mxu0 %v2098
    %2114 = vmatpush.bf16.msra.mxu0 %v2097
    %2115 = vmatpush.bf16.msra.mxu0 %v2096
    %2116 = vmatpush.bf16.msra.mxu0 %v2095
    %2117 = vmatpush.bf16.msra.mxu0 %v2094
    %2118 = vmatmul.bf16.gmra.mxu0 %v2038
    %v2119 = vpop.f32.mrf.mxu0
    %v2120 = vpop.f32.mrf.mxu0
    %v2121 = vadd.f32 0.0, %v2120
    %2122 = vmatmul.bf16.gmra.mxu0 %v2039
    %v2123 = vpop.f32.mrf.mxu0
    %v2124 = vpop.f32.mrf.mxu0
    %v2125 = vadd.f32 0.0, %v2124
    %2126 = vmatmul.bf16.gmra.mxu0 %v2040
    %v2127 = vpop.f32.mrf.mxu0
    %v2128 = vpop.f32.mrf.mxu0
    %v2129 = vadd.f32 0.0, %v2128
    %2130 = vmatmul.bf16.gmra.mxu0 %v2041
    %v2131 = vpop.f32.mrf.mxu0
    %v2132 = vpop.f32.mrf.mxu0
    %v2133 = vadd.f32 0.0, %v2132
    %2134 = vmatmul.bf16.gmra.mxu0 %v2042
    %v2135 = vpop.f32.mrf.mxu0
    %v2136 = vpop.f32.mrf.mxu0
    %v2137 = vadd.f32 0.0, %v2136
    %2138 = vmatmul.bf16.gmra.mxu0 %v2043
    %v2139 = vpop.f32.mrf.mxu0
    %v2140 = vpop.f32.mrf.mxu0
    %v2141 = vadd.f32 0.0, %v2140
    %2142 = vmatmul.bf16.gmra.mxu0 %v2044
    %v2143 = vpop.f32.mrf.mxu0
    %v2144 = vpop.f32.mrf.mxu0
    %v2145 = vadd.f32 0.0, %v2144
    %2146 = vmatmul.bf16.gmra.mxu0 %v2045
    %v2147 = vpop.f32.mrf.mxu0
    %v2148 = vpop.f32.mrf.mxu0
    %v2149 = vadd.f32 0.0, %v2148
    %2150 = vdwg.mxu0
    %v2167 = vunpack.c.l.b16 %v2006
    %v2168 = vunpack.c.l.b16 %v2007
    %v2169 = vunpack.c.l.b16 %v2008
    %v2170 = vunpack.c.l.b16 %v2009
    %v2171 = vunpack.c.l.b16 %v2010
    %v2172 = vunpack.c.l.b16 %v2011
    %v2173 = vunpack.c.l.b16 %v2012
    %v2174 = vunpack.c.l.b16 %v2013
    %v2175 = vunpack.c.l.b16 %v2014
    %v2176 = vunpack.c.l.b16 %v2015
    %v2177 = vunpack.c.l.b16 %v2016
    %v2178 = vunpack.c.l.b16 %v2017
    %v2179 = vunpack.c.l.b16 %v2018
    %v2180 = vunpack.c.l.b16 %v2019
    %v2181 = vunpack.c.l.b16 %v2020
    %v2182 = vunpack.c.l.b16 %v2021
    %v2183 = vpack.c.b16 %v2168, %v2167
    %v2184 = vpack.c.b16 %v2170, %v2169
    %v2185 = vpack.c.b16 %v2172, %v2171
    %v2186 = vpack.c.b16 %v2174, %v2173
    %v2187 = vpack.c.b16 %v2176, %v2175
    %v2188 = vpack.c.b16 %v2178, %v2177
    %v2189 = vpack.c.b16 %v2180, %v2179
    %v2190 = vpack.c.b16 %v2182, %v2181
    %2199 = vmatpush.bf16.msra.mxu0 %v2190
    %2200 = vmatpush.bf16.msra.mxu0 %v2189
    %2201 = vmatpush.bf16.msra.mxu0 %v2188
    %2202 = vmatpush.bf16.msra.mxu0 %v2187
    %2203 = vmatpush.bf16.msra.mxu0 %v2186
    %2204 = vmatpush.bf16.msra.mxu0 %v2185
    %2205 = vmatpush.bf16.msra.mxu0 %v2184
    %2206 = vmatpush.bf16.msra.mxu0 %v2183
    %2207 = vmatmul.bf16.gmra.mxu0 %v1998
    %v2208 = vpop.f32.mrf.mxu0
    %v2209 = vpop.f32.mrf.mxu0
    %v2210 = vadd.f32 %v2121, %v2209
    %2211 = vmatmul.bf16.gmra.mxu0 %v1999
    %v2212 = vpop.f32.mrf.mxu0
    %v2213 = vpop.f32.mrf.mxu0
    %v2214 = vadd.f32 %v2125, %v2213
    %2215 = vmatmul.bf16.gmra.mxu0 %v2000
    %v2216 = vpop.f32.mrf.mxu0
    %v2217 = vpop.f32.mrf.mxu0
    %v2218 = vadd.f32 %v2129, %v2217
    %2219 = vmatmul.bf16.gmra.mxu0 %v2001
    %v2220 = vpop.f32.mrf.mxu0
    %v2221 = vpop.f32.mrf.mxu0
    %v2222 = vadd.f32 %v2133, %v2221
    %2223 = vmatmul.bf16.gmra.mxu0 %v2002
    %v2224 = vpop.f32.mrf.mxu0
    %v2225 = vpop.f32.mrf.mxu0
    %v2226 = vadd.f32 %v2137, %v2225
    %2227 = vmatmul.bf16.gmra.mxu0 %v2003
    %v2228 = vpop.f32.mrf.mxu0
    %v2229 = vpop.f32.mrf.mxu0
    %v2230 = vadd.f32 %v2141, %v2229
    %2231 = vmatmul.bf16.gmra.mxu0 %v2004
    %v2232 = vpop.f32.mrf.mxu0
    %v2233 = vpop.f32.mrf.mxu0
    %v2234 = vadd.f32 %v2145, %v2233
    %2235 = vmatmul.bf16.gmra.mxu0 %v2005
    %v2236 = vpop.f32.mrf.mxu0
    %v2237 = vpop.f32.mrf.mxu0
    %v2238 = vadd.f32 %v2149, %v2237
    %2239 = vdwg.mxu0
    %v2240 = vperm.slane %v116, 6
    %v2241 = vadd.f32 %v2210, %v2240
    %v2242 = vadd.f32 %v2214, %v2240
    %v2243 = vadd.f32 %v2218, %v2240
    %v2244 = vadd.f32 %v2222, %v2240
    %v2245 = vadd.f32 %v2226, %v2240
    %v2246 = vadd.f32 %v2230, %v2240
    %v2247 = vadd.f32 %v2234, %v2240
    %v2248 = vadd.f32 %v2238, %v2240
    %v2249 = vmax.f32 %v2241, 0.0
    %v2250 = vmax.f32 %v2242, 0.0
    %v2251 = vmax.f32 %v2243, 0.0
    %v2252 = vmax.f32 %v2244, 0.0
    %v2253 = vmax.f32 %v2245, 0.0
    %v2254 = vmax.f32 %v2246, 0.0
    %v2255 = vmax.f32 %v2247, 0.0
    %v2256 = vmax.f32 %v2248, 0.0
    %v2257 = vld [vmem:[#allocation3 + $0x8] sm:$0xff]
    %v2258 = vld [vmem:[#allocation3 + $0x18] sm:$0xff]
    %v2259 = vld [vmem:[#allocation3 + $0x28] sm:$0xff]
    %v2260 = vld [vmem:[#allocation3 + $0x38] sm:$0xff]
    %v2261 = vld [vmem:[#allocation3 + $0x48] sm:$0xff]
    %v2262 = vld [vmem:[#allocation3 + $0x58] sm:$0xff]
    %v2263 = vld [vmem:[#allocation3 + $0x68] sm:$0xff]
    %v2264 = vld [vmem:[#allocation3 + $0x78] sm:$0xff]
    %v2265 = vadd.f32 %v2249, %v2257
    %v2266 = vadd.f32 %v2250, %v2258
    %v2267 = vadd.f32 %v2251, %v2259
    %v2268 = vadd.f32 %v2252, %v2260
    %v2269 = vadd.f32 %v2253, %v2261
    %v2270 = vadd.f32 %v2254, %v2262
    %v2271 = vadd.f32 %v2255, %v2263
    %v2272 = vadd.f32 %v2256, %v2264
    %v2273 = vmax.f32 %v2265, 0.0
    %v2274 = vmax.f32 %v2266, 0.0
    %v2275 = vmax.f32 %v2267, 0.0
    %v2276 = vmax.f32 %v2268, 0.0
    %v2277 = vmax.f32 %v2269, 0.0
    %v2278 = vmax.f32 %v2270, 0.0
    %v2279 = vmax.f32 %v2271, 0.0
    %v2280 = vmax.f32 %v2272, 0.0
    %v2281 = vld [vmem:[#allocation7 + $0x340] sm:$0xf]
    %v2282 = vld [vmem:[#allocation7 + $0x344] sm:$0xf]
    %v2283 = vld [vmem:[#allocation7 + $0x348] sm:$0xf]
    %v2284 = vld [vmem:[#allocation7 + $0x34c] sm:$0xf]
    %v2285 = vld [vmem:[#allocation7 + $0x350] sm:$0xf]
    %v2286 = vld [vmem:[#allocation7 + $0x354] sm:$0xf]
    %v2287 = vld [vmem:[#allocation7 + $0x358] sm:$0xf]
    %v2288 = vld [vmem:[#allocation7 + $0x35c] sm:$0xf]
    %v2289 = vld [vmem:[#allocation7 + $0x360] sm:$0xf]
    %v2290 = vld [vmem:[#allocation7 + $0x364] sm:$0xf]
    %v2291 = vld [vmem:[#allocation7 + $0x368] sm:$0xf]
    %v2292 = vld [vmem:[#allocation7 + $0x36c] sm:$0xf]
    %v2293 = vld [vmem:[#allocation7 + $0x370] sm:$0xf]
    %v2294 = vld [vmem:[#allocation7 + $0x374] sm:$0xf]
    %v2295 = vld [vmem:[#allocation7 + $0x378] sm:$0xf]
    %v2296 = vld [vmem:[#allocation7 + $0x37c] sm:$0xf]
    %v2297 = vpack.c.bf16 %v2273, %v2273
    %v2298 = vpack.c.bf16 %v2274, %v2274
    %v2299 = vpack.c.bf16 %v2275, %v2275
    %v2300 = vpack.c.bf16 %v2276, %v2276
    %v2301 = vpack.c.bf16 %v2277, %v2277
    %v2302 = vpack.c.bf16 %v2278, %v2278
    %v2303 = vpack.c.bf16 %v2279, %v2279
    %v2304 = vpack.c.bf16 %v2280, %v2280
    %v2305 = vperm.slane %v116, 7
    %v2314 = vunpack.c.l.b16 %v2297
    %v2315 = vunpack.c.l.b16 %v2298
    %v2316 = vunpack.c.l.b16 %v2299
    %v2317 = vunpack.c.l.b16 %v2300
    %v2318 = vunpack.c.l.b16 %v2301
    %v2319 = vunpack.c.l.b16 %v2302
    %v2320 = vunpack.c.l.b16 %v2303
    %v2321 = vunpack.c.l.b16 %v2304
    %v2322 = vrot.slane %v2314, 7
    %v2323 = vrot.slane %v2315, 6
    %vm2324 = vcmask 1041409
    %v2325 = vsel %vm2324, %v2323, %v2322
    %v2326 = vrot.slane %v2316, 5
    %vm2327 = vcmask 1042434
    %v2328 = vsel %vm2327, %v2326, %v2325
    %v2329 = vrot.slane %v2317, 4
    %vm2330 = vcmask 1043459
    %v2331 = vsel %vm2330, %v2329, %v2328
    %v2332 = vrot.slane %v2318, 3
    %vm2333 = vcmask 1044484
    %v2334 = vsel %vm2333, %v2332, %v2331
    %v2335 = vrot.slane %v2319, 2
    %vm2336 = vcmask 1045509
    %v2337 = vsel %vm2336, %v2335, %v2334
    %v2338 = vrot.slane %v2320, 1
    %vm2339 = vcmask 1046534
    %v2340 = vsel %vm2339, %v2338, %v2337
    %vm2341 = vcmask 1047559
    %v2342 = vsel %vm2341, %v2321, %v2340
    %v2343 = vpack.c.b16 %v2342, %v2342
    %v2361 = vunpack.c.l.b16 %v2281
    %v2362 = vunpack.c.l.b16 %v2282
    %v2363 = vunpack.c.l.b16 %v2283
    %v2364 = vunpack.c.l.b16 %v2284
    %v2365 = vunpack.c.l.b16 %v2285
    %v2366 = vunpack.c.l.b16 %v2286
    %v2367 = vunpack.c.l.b16 %v2287
    %v2368 = vunpack.c.l.b16 %v2288
    %v2369 = vunpack.c.l.b16 %v2289
    %v2370 = vunpack.c.l.b16 %v2290
    %v2371 = vunpack.c.l.b16 %v2291
    %v2372 = vunpack.c.l.b16 %v2292
    %v2373 = vunpack.c.l.b16 %v2293
    %v2374 = vunpack.c.l.b16 %v2294
    %v2375 = vunpack.c.l.b16 %v2295
    %v2376 = vunpack.c.l.b16 %v2296
    %v2377 = vpack.c.b16 %v2362, %v2361
    %v2378 = vpack.c.b16 %v2364, %v2363
    %v2379 = vpack.c.b16 %v2366, %v2365
    %v2380 = vpack.c.b16 %v2368, %v2367
    %v2381 = vpack.c.b16 %v2370, %v2369
    %v2382 = vpack.c.b16 %v2372, %v2371
    %v2383 = vpack.c.b16 %v2374, %v2373
    %v2384 = vpack.c.b16 %v2376, %v2375
    %2393 = vmatpush.bf16.msra.mxu0 %v2384
    %2394 = vmatpush.bf16.msra.mxu0 %v2383
    %2395 = vmatpush.bf16.msra.mxu0 %v2382
    %2396 = vmatpush.bf16.msra.mxu0 %v2381
    %2397 = vmatpush.bf16.msra.mxu0 %v2380
    %2398 = vmatpush.bf16.msra.mxu0 %v2379
    %2399 = vmatpush.bf16.msra.mxu0 %v2378
    %2400 = vmatpush.bf16.msra.mxu0 %v2377
    %2401 = vmatmul.bf16.gmra.mxu0 %v2343
    %v2402 = vpop.f32.mrf.mxu0
    %v2403 = vadd.f32 %v2305, %v2402
    %v2404 = vpop.f32.mrf.mxu0
    %2405 = vdwg.mxu0
    %2406 = vst [vmem:[#allocation10] sm:$0xff] %v2403
    // Predicated region
    $region26: #{tpu_custom_call.1} parent=1 // pred_check
      _
    $region27: #{tpu_custom_call.1} parent=1 // pred_check_branch
      %2408 = sbr.rel (0) target = $region29
    $region28: #{tpu_custom_call.1} parent=1 // pred_region
      %2410 = vsyncadd [#allocation6], 0
      %s2412 = sshll.u32 [#allocation10], 4
      %s2413 = int_to_ptr.vmem [resolvable:$true] %s2412
      %s2414 = sshll.u32 %s3, 4
      %s2415 = int_to_ptr.hbm [resolvable:$true] %s2414
      %2417 = dma.vmem_to_hbm [thread:$0]  %s2413, 128, %s2415, [#allocation6]
    $region29: #{tpu_custom_call.1} parent=1 // pred_fallthru
      _
    // Predicated region
    $region30: #{tpu_custom_call.1} parent=1 // pred_check
      _
    $region31: #{tpu_custom_call.1} parent=1 // pred_check_branch
      %2419 = sbr.rel (0) target = $region33
    $region32: #{tpu_custom_call.1} parent=1 // pred_region
      %2421 = dma.done [#allocation6], 128
    $region33: #{tpu_custom_call.1} parent=1 // pred_fallthru
      _
    %2422 = vsyncpa [#allocation5], 1
    %2423 = vsyncpa [#allocation8], 1
    %2424 = vsyncpa [#allocation6], 1

</llo_original>
